<compile_context>
chip_gen: v7x
topology: tpu7x:2x2x1
jax: 0.10.0
libtpu: 0.0.40
codegen_flags: <defaults>
</compile_context>

<pallas_src>
import jax
import jax.numpy as jnp
from jax.experimental import pallas as pl
from jax.experimental.pallas import tpu as pltpu


# ----------------------------- model dims -----------------------------------
B = 2                 # batch
N = 128               # num_points
BN = B * N
POS_DIM = 3
HID0 = 128            # backbone hidden (kept at 128: lane-full, matches v5e 128x128 MXU)
MAP_FEAT_DIM = 128    # map_feat_dim
GLB_DIM = 256         # feat_dims[-1]
NMASKS_PRED = 16      # args.pred_nmasks
MASKS_DIM = 24        # args.nmasks  (> NMASKS_PRED -> padding path)
PAD_MASKS = MASKS_DIM - NMASKS_PRED

# ----------------------------- packed parameter layout ------------------------
# Weight blob: bf16, 128 lanes wide, row segments 8-aligned.
# (name, padded_rows, (real_rows, real_cols))
WBLOB_COLS = 128
_WSEGS = [
    ("w0",   8,   (POS_DIM, HID0)),
    ("w1",   128, (HID0, MAP_FEAT_DIM)),
    ("w2a",  128, (MAP_FEAT_DIM, 128)),          # w2[:, :128]
    ("w2b",  128, (MAP_FEAT_DIM, 128)),          # w2[:, 128:]
    ("cw0",  128, (MAP_FEAT_DIM, MAP_FEAT_DIM)),
    ("cw1",  128, (MAP_FEAT_DIM, MAP_FEAT_DIM)),
    ("cw2",  128, (MAP_FEAT_DIM, NMASKS_PRED)),
    ("fw0a", 128, (128, 128)),                   # fw0[:128, :]
    ("fw0b", 128, (128, 128)),                   # fw0[128:, :]
    ("fw1",  128, (GLB_DIM // 2, GLB_DIM // 4)),
    ("fw2",  64,  (GLB_DIM // 4, GLB_DIM // 8)),
    ("fw3",  32,  (GLB_DIM // 8, NMASKS_PRED)),
]
W_OFF = {}
_off = 0
for _name, _rp, _ in _WSEGS:
    W_OFF[_name] = _off
    _off += _rp
WBLOB_ROWS = _off  # 1256

# Bias blob: f32, one bias per row (b2 uses the full 256 lanes).
BBLOB_COLS = 256
_B_NAMES = ["b0", "b1", "b2", "cb0", "cb1", "cb2", "fb0", "fb1", "fb2", "fb3"]
B_ROW = {n: i for i, n in enumerate(_B_NAMES)}
NBIAS = len(_B_NAMES)


def _relu(x):
    return jnp.maximum(x, 0.0)


def _qf(w):
    """bf16-round a weight, back to f32 (what the kernel effectively computes with)."""
    return w.astype(jnp.bfloat16).astype(jnp.float32)


# ----------------------------- fused kernel -----------------------------------
def fused_kernel(pos_ref, w_ref, b_ref, x_out, seg_out, conf_out):
    f32 = jnp.float32
    p = pos_ref[...]                                     # (BN, 3) f32

    def wv(name, k, n):
        r = W_OFF[name]
        return w_ref[r:r + k, :n].astype(f32)            # bf16 blob view -> f32

    def bv(name, n):
        r = B_ROW[name]
        return b_ref[r:r + 1, :n]                        # (1, n) f32

    # ---------------- backbone ----------------
    # K=3 first layer: three VPU broadcast-FMAs (an MXU pass would waste >95% of the tile)
    w0 = wv("w0", POS_DIM, HID0)                         # (3, 128)
    h = (p[:, 0:1] * w0[0:1, :]
         + p[:, 1:2] * w0[1:2, :]
         + p[:, 2:3] * w0[2:3, :]
         + bv("b0", HID0))
    h = _relu(h)                                         # (BN, 128)

    x = _relu(jnp.dot(h, wv("w1", HID0, MAP_FEAT_DIM),
                      preferred_element_type=f32) + bv("b1", MAP_FEAT_DIM))
    for bi in range(B):                                  # static loop, B=2
        x_out[bi] = x[bi * N:(bi + 1) * N, :]

    # global branch: 128->256 layer done as two lane-full 128-wide halves
    ga = _relu(jnp.dot(x, wv("w2a", MAP_FEAT_DIM, 128),
                       preferred_element_type=f32) + b_ref[B_ROW["b2"]:B_ROW["b2"] + 1, 0:128])
    gb = _relu(jnp.dot(x, wv("w2b", MAP_FEAT_DIM, 128),
                       preferred_element_type=f32) + b_ref[B_ROW["b2"]:B_ROW["b2"] + 1, 128:256])
    # per-batch global max-pool -> (B, 128) per half (== global_x split in two)
    gxa = jnp.concatenate(
        [jnp.max(ga[bi * N:(bi + 1) * N], axis=0, keepdims=True) for bi in range(B)], axis=0)
    gxb = jnp.concatenate(
        [jnp.max(gb[bi * N:(bi + 1) * N], axis=0, keepdims=True) for bi in range(B)], axis=0)

    # ---------------- cls head (top-down segmentation) ----------------
    hc = _relu(jnp.dot(x, wv("cw0", 128, 128), preferred_element_type=f32) + bv("cb0", 128))
    hc = _relu(jnp.dot(hc, wv("cw1", 128, 128), preferred_element_type=f32) + bv("cb1", 128))
    logits = jnp.dot(hc, wv("cw2", 128, NMASKS_PRED),
                     preferred_element_type=f32) + bv("cb2", NMASKS_PRED)   # (BN, 16)
    logits = jnp.clip(logits, -20.0, 20.0)               # torch.clamp
    # exact softmax over the mask axis (matches torch.softmax; no approx reciprocal)
    m = jnp.max(logits, axis=-1, keepdims=True)
    e = jnp.exp(logits - m)
    seg = e / jnp.sum(e, axis=-1, keepdims=True)         # (BN, 16)
    # transpose only the SMALL (BN,16) result (never the big (BN,128) activation)
    seg_t = jnp.transpose(seg, (1, 0))                   # (16, BN) lane-dense over points
    for bi in range(B):
        seg_out[bi, :NMASKS_PRED, :] = seg_t[:, bi * N:(bi + 1) * N]
    seg_out[:, NMASKS_PRED:, :] = jnp.zeros((B, PAD_MASKS, N), f32)

    # ---------------- conf head (M = B = 2 rows, negligible compute) ----------------
    c = _relu(jnp.dot(gxa, wv("fw0a", 128, 128), preferred_element_type=f32)
              + jnp.dot(gxb, wv("fw0b", 128, 128), preferred_element_type=f32)
              + bv("fb0", 128))
    c = _relu(jnp.dot(c, wv("fw1", 128, 64), preferred_element_type=f32) + bv("fb1", 64))
    c = _relu(jnp.dot(c, wv("fw2", 64, 32), preferred_element_type=f32) + bv("fb2", 32))
    c = jnp.dot(c, wv("fw3", 32, NMASKS_PRED), preferred_element_type=f32) + bv("fb3", NMASKS_PRED)
    c = jnp.clip(c, -20.0, 20.0)                         # (B, 16)
    conf_out[:, :NMASKS_PRED] = c
    conf_out[:, NMASKS_PRED:] = jnp.zeros((B, PAD_MASKS), f32)


# ----------------------------- pallas wrapper ---------------------------------
def fused_forward_pallas(pos, wblob, bblob):
    pos2d = pos.reshape(BN, POS_DIM).astype(jnp.float32)
    vmem = pl.BlockSpec(memory_space=pltpu.MemorySpace.VMEM)
    x, segpred, confpred = pl.pallas_call(
        fused_kernel,
        in_specs=[vmem, vmem, vmem],
        out_specs=[vmem, vmem, vmem],
        out_shape=[
            jax.ShapeDtypeStruct((B, N, MAP_FEAT_DIM), jnp.float32),   # x (statistics)
            jax.ShapeDtypeStruct((B, MASKS_DIM, N), jnp.float32),      # segpred (padded)
            jax.ShapeDtypeStruct((B, MASKS_DIM), jnp.float32),         # confpred (padded)
        ],
    )(pos2d, wblob, bblob)
    return x, segpred, confpred


# ----------------------------- parameter packing ------------------------------
def pack_params(params):
    """Pack all weights (bf16) / biases (f32) into two contiguous blobs."""
    backbone_p, cls_p, conf_p = params
    w0, b0, w1, b1, w2, b2 = backbone_p
    cw0, cb0, cw1, cb1, cw2, cb2 = cls_p
    fw0, fb0, fw1, fb1, fw2, fb2, fw3, fb3 = conf_p

    wmap = {
        "w0": w0, "w1": w1, "w2a": w2[:, :128], "w2b": w2[:, 128:],
        "cw0": cw0, "cw1": cw1, "cw2": cw2,
        "fw0a": fw0[:128, :], "fw0b": fw0[128:, :],
        "fw1": fw1, "fw2": fw2, "fw3": fw3,
    }
    blocks = []
    for name, rp, (r, c) in _WSEGS:
        wq = wmap[name].astype(jnp.bfloat16)
        blk = jnp.zeros((rp, WBLOB_COLS), jnp.bfloat16).at[:r, :c].set(wq)
        blocks.append(blk)
    wblob = jnp.concatenate(blocks, axis=0)              # (WBLOB_ROWS, 128) bf16

    bmap = {"b0": b0, "b1": b1, "b2": b2, "cb0": cb0, "cb1": cb1, "cb2": cb2,
            "fb0": fb0, "fb1": fb1, "fb2": fb2, "fb3": fb3}
    brows = []
    for name in _B_NAMES:
        v = bmap[name].reshape(-1).astype(jnp.float32)
        brows.append(jnp.zeros((1, BBLOB_COLS), jnp.float32).at[0, :v.shape[0]].set(v))
    bblob = jnp.concatenate(brows, axis=0)               # (NBIAS, 256) f32
    return wblob, bblob


# ----------------------------- parameter init ---------------------------------
def init_linear(key, fan_in, fan_out):
    kw, kb = jax.random.split(key)
    w = jax.random.normal(kw, (fan_in, fan_out), jnp.float32) / jnp.sqrt(float(fan_in))
    b = 0.01 * jax.random.normal(kb, (1, fan_out), jnp.float32)
    return w, b


def init_params(key):
    keys = jax.random.split(key, 10)
    backbone = []
    for k, (ci, co) in zip(keys[0:3], [(POS_DIM, HID0), (HID0, MAP_FEAT_DIM),
                                       (MAP_FEAT_DIM, GLB_DIM)]):
        backbone.extend(init_linear(k, ci, co))
    cls = []
    for k, (ci, co) in zip(keys[3:6], [(MAP_FEAT_DIM, MAP_FEAT_DIM),
                                       (MAP_FEAT_DIM, MAP_FEAT_DIM),
                                       (MAP_FEAT_DIM, NMASKS_PRED)]):
        cls.extend(init_linear(k, ci, co))
    conf = []
    for k, (ci, co) in zip(keys[6:10], [(GLB_DIM, GLB_DIM // 2),
                                        (GLB_DIM // 2, GLB_DIM // 4),
                                        (GLB_DIM // 4, GLB_DIM // 8),
                                        (GLB_DIM // 8, NMASKS_PRED)]):
        conf.extend(init_linear(k, ci, co))
    return tuple(backbone), tuple(cls), tuple(conf)


# ----------------------------- forward (glue) ---------------------------------
@jax.jit
def primitive_fitting_net_forward(pos, masks, wblob, bblob):
    # masks only contributes its last-dim size (args.nmasks), which is baked into
    # the kernel as MASKS_DIM; segpred/confpred come back already padded/transposed.
    del masks
    x, segpred, confpred = fused_forward_pallas(pos, wblob, bblob)
    gt_l = jnp.zeros((1,), jnp.float32)
    statistics = {"x": x, "confpred": confpred}
    fps_idx = None
    return segpred, gt_l, confpred, statistics, fps_idx


# ----------------------------- reference (pure JAX) ----------------------------
def _ref_forward(pos, params):
    backbone_p, cls_p, conf_p = params
    w0, b0, w1, b1, w2, b2 = backbone_p
    cw0, cb0, cw1, cb1, cw2, cb2 = cls_p
    fw0, fb0, fw1, fb1, fw2, fb2, fw3, fb3 = conf_p

    p = pos.reshape(BN, POS_DIM).astype(jnp.float32)
    w0q = _qf(w0)
    h = _relu(p[:, 0:1] * w0q[0:1, :] + p[:, 1:2] * w0q[1:2, :]
              + p[:, 2:3] * w0q[2:3, :] + b0)
    x = _relu(h @ _qf(w1) + b1)
    g = _relu(x @ _qf(w2) + b2)
    gx = jnp.max(g.reshape(B, N, GLB_DIM), axis=1)                    # (B, GLB)

    hc = _relu(x @ _qf(cw0) + cb0)
    hc = _relu(hc @ _qf(cw1) + cb1)
    logits = jnp.clip(hc @ _qf(cw2) + cb2, -20.0, 20.0)               # (BN, 16)
    seg = jax.nn.softmax(logits, axis=-1)
    seg = jnp.transpose(seg.reshape(B, N, NMASKS_PRED), (0, 2, 1))    # (B, 16, N)
    seg = jnp.concatenate([seg, jnp.zeros((B, PAD_MASKS, N), jnp.float32)], axis=1)

    c = _relu(gx @ _qf(fw0) + fb0)
    c = _relu(c @ _qf(fw1) + fb1)
    c = _relu(c @ _qf(fw2) + fb2)
    c = jnp.clip(c @ _qf(fw3) + fb3, -20.0, 20.0)
    c = jnp.concatenate([c, jnp.zeros((B, PAD_MASKS), jnp.float32)], axis=-1)
    return x.reshape(B, N, MAP_FEAT_DIM), seg, c


# ----------------------------- main -------------------------------------------
if __name__ == "__main__":
    key = jax.random.PRNGKey(0)
    k_pos, k_masks, k_params = jax.random.split(key, 3)

    pos = jax.random.normal(k_pos, (B, N, POS_DIM), jnp.float32)
    # masks: (B, N, MASKS_DIM) one-hot gt masks (only last-dim size matters here)
    mask_ids = jax.random.randint(k_masks, (B, N), 0, MASKS_DIM)
    masks = jax.nn.one_hot(mask_ids, MASKS_DIM, dtype=jnp.float32)

    params = init_params(k_params)
    wblob, bblob = pack_params(params)     # one-time host-side packing (bf16 W / f32 b)

    segpred, gt_l, confpred, statistics, fps_idx = primitive_fitting_net_forward(
        pos, masks, wblob, bblob)
    jax.block_until_ready((segpred, gt_l, confpred, statistics["x"]))

    # correctness check against a pure-JAX reference (same bf16-rounded weights, f32 math)
    x_ref, seg_ref, conf_ref = _ref_forward(pos, params)
    assert segpred.shape == (B, MASKS_DIM, N)
    assert confpred.shape == (B, MASKS_DIM)
    assert statistics["x"].shape == (B, N, MAP_FEAT_DIM)
    assert gt_l.shape == (1,)
    assert fps_idx is None
    assert jnp.allclose(statistics["x"], x_ref, atol=1e-2, rtol=1e-2)
    assert jnp.allclose(segpred, seg_ref, atol=1e-2, rtol=1e-2)
    assert jnp.allclose(confpred, conf_ref, atol=1e-2, rtol=1e-2)

    print("KERNEL_OK")
</pallas_src>

<mosaic_0001>
module attributes {stable_mosaic.version = 11 : i64} {
  func.func @fused_kernel(%arg0: memref<256x3xf32, #tpu.memory_space<vmem>>, %arg1: memref<1256x128xbf16, #tpu.memory_space<vmem>>, %arg2: memref<10x256xf32, #tpu.memory_space<vmem>>, %arg3: memref<2x128x128xf32, #tpu.memory_space<vmem>>, %arg4: memref<2x24x128xf32, #tpu.memory_space<vmem>>, %arg5: memref<2x24xf32, #tpu.memory_space<vmem>>) attributes {dimension_semantics = [], scalar_prefetch = 0 : i64, scratch_operands = 0 : i64, tpu.core_type = #tpu.core_type<tc>} {
    %c0 = arith.constant 0 : index
    %c0_0 = arith.constant 0 : index
    %0 = vector.load %arg0[%c0, %c0_0] : memref<256x3xf32, #tpu.memory_space<vmem>>, vector<256x3xf32>
    %c0_1 = arith.constant 0 : index
    %c0_2 = arith.constant 0 : index
    %1 = vector.load %arg1[%c0_1, %c0_2] : memref<1256x128xbf16, #tpu.memory_space<vmem>>, vector<3x128xbf16>
    %2 = arith.extf %1 : vector<3x128xbf16> to vector<3x128xf32>
    %3 = vector.extract_strided_slice %0 {offsets = [0, 0], sizes = [256, 1], strides = [1, 1]} : vector<256x3xf32> to vector<256x1xf32>
    %4 = vector.extract_strided_slice %2 {offsets = [0, 0], sizes = [1, 128], strides = [1, 1]} : vector<3x128xf32> to vector<1x128xf32>
    %5 = vector.broadcast %3 : vector<256x1xf32> to vector<256x128xf32>
    %6 = vector.broadcast %4 : vector<1x128xf32> to vector<256x128xf32>
    %7 = arith.mulf %5, %6 : vector<256x128xf32>
    %8 = vector.extract_strided_slice %0 {offsets = [0, 1], sizes = [256, 1], strides = [1, 1]} : vector<256x3xf32> to vector<256x1xf32>
    %9 = vector.extract_strided_slice %2 {offsets = [1, 0], sizes = [1, 128], strides = [1, 1]} : vector<3x128xf32> to vector<1x128xf32>
    %10 = vector.broadcast %8 : vector<256x1xf32> to vector<256x128xf32>
    %11 = vector.broadcast %9 : vector<1x128xf32> to vector<256x128xf32>
    %12 = arith.mulf %10, %11 : vector<256x128xf32>
    %13 = arith.addf %7, %12 : vector<256x128xf32>
    %14 = vector.extract_strided_slice %0 {offsets = [0, 2], sizes = [256, 1], strides = [1, 1]} : vector<256x3xf32> to vector<256x1xf32>
    %15 = vector.extract_strided_slice %2 {offsets = [2, 0], sizes = [1, 128], strides = [1, 1]} : vector<3x128xf32> to vector<1x128xf32>
    %16 = vector.broadcast %14 : vector<256x1xf32> to vector<256x128xf32>
    %17 = vector.broadcast %15 : vector<1x128xf32> to vector<256x128xf32>
    %18 = arith.mulf %16, %17 : vector<256x128xf32>
    %19 = arith.addf %13, %18 : vector<256x128xf32>
    %c0_3 = arith.constant 0 : index
    %c0_4 = arith.constant 0 : index
    %20 = vector.load %arg2[%c0_3, %c0_4] : memref<10x256xf32, #tpu.memory_space<vmem>>, vector<1x128xf32>
    %21 = vector.broadcast %20 : vector<1x128xf32> to vector<256x128xf32>
    %22 = arith.addf %19, %21 : vector<256x128xf32>
    %cst = arith.constant 0.000000e+00 : f32
    %23 = vector.broadcast %cst : f32 to vector<256x128xf32>
    %24 = arith.maximumf %22, %23 : vector<256x128xf32>
    %c8 = arith.constant 8 : index
    %c0_5 = arith.constant 0 : index
    %25 = vector.load %arg1[%c8, %c0_5] : memref<1256x128xbf16, #tpu.memory_space<vmem>>, vector<128x128xbf16>
    %26 = arith.extf %25 : vector<128x128xbf16> to vector<128x128xf32>
    %cst_6 = arith.constant dense<0.000000e+00> : vector<256x128xf32>
    %27 = tpu.matmul %24, %26, %cst_6 {dimension_numbers = #tpu.dot_dimension_numbers<[1], [0], [0], [1], [0, 0, 1, 1], [], []>} : vector<256x128xf32>, vector<128x128xf32>, vector<256x128xf32> -> vector<256x128xf32>
    %c1 = arith.constant 1 : index
    %c0_7 = arith.constant 0 : index
    %28 = vector.load %arg2[%c1, %c0_7] : memref<10x256xf32, #tpu.memory_space<vmem>>, vector<1x128xf32>
    %29 = vector.broadcast %28 : vector<1x128xf32> to vector<256x128xf32>
    %30 = arith.addf %27, %29 : vector<256x128xf32>
    %cst_8 = arith.constant 0.000000e+00 : f32
    %31 = vector.broadcast %cst_8 : f32 to vector<256x128xf32>
    %32 = arith.maximumf %30, %31 : vector<256x128xf32>
    %33 = vector.extract_strided_slice %32 {offsets = [0, 0], sizes = [128, 128], strides = [1, 1]} : vector<256x128xf32> to vector<128x128xf32>
    %c0_9 = arith.constant 0 : index
    %c0_10 = arith.constant 0 : index
    %c0_11 = arith.constant 0 : index
    %34 = vector.load %arg3[%c0_9, %c0_10, %c0_11] : memref<2x128x128xf32, #tpu.memory_space<vmem>>, vector<1x128x128xf32>
    %35 = vector.shape_cast %34 : vector<1x128x128xf32> to vector<128x128xf32>
    %36 = vector.shape_cast %33 : vector<128x128xf32> to vector<1x128x128xf32>
    tpu.vector_store %arg3[%c0_9, %c0_10, %c0_11], %36 {strides = array<i32>} : memref<2x128x128xf32, #tpu.memory_space<vmem>>, vector<1x128x128xf32>,
    %37 = vector.extract_strided_slice %32 {offsets = [128, 0], sizes = [128, 128], strides = [1, 1]} : vector<256x128xf32> to vector<128x128xf32>
    %c1_12 = arith.constant 1 : index
    %c0_13 = arith.constant 0 : index
    %c0_14 = arith.constant 0 : index
    %38 = vector.load %arg3[%c1_12, %c0_13, %c0_14] : memref<2x128x128xf32, #tpu.memory_space<vmem>>, vector<1x128x128xf32>
    %39 = vector.shape_cast %38 : vector<1x128x128xf32> to vector<128x128xf32>
    %40 = vector.shape_cast %37 : vector<128x128xf32> to vector<1x128x128xf32>
    tpu.vector_store %arg3[%c1_12, %c0_13, %c0_14], %40 {strides = array<i32>} : memref<2x128x128xf32, #tpu.memory_space<vmem>>, vector<1x128x128xf32>,
    %c136 = arith.constant 136 : index
    %c0_15 = arith.constant 0 : index
    %41 = vector.load %arg1[%c136, %c0_15] : memref<1256x128xbf16, #tpu.memory_space<vmem>>, vector<128x128xbf16>
    %42 = arith.extf %41 : vector<128x128xbf16> to vector<128x128xf32>
    %cst_16 = arith.constant dense<0.000000e+00> : vector<256x128xf32>
    %43 = tpu.matmul %32, %42, %cst_16 {dimension_numbers = #tpu.dot_dimension_numbers<[1], [0], [0], [1], [0, 0, 1, 1], [], []>} : vector<256x128xf32>, vector<128x128xf32>, vector<256x128xf32> -> vector<256x128xf32>
    %c2 = arith.constant 2 : index
    %c0_17 = arith.constant 0 : index
    %44 = vector.load %arg2[%c2, %c0_17] : memref<10x256xf32, #tpu.memory_space<vmem>>, vector<1x128xf32>
    %45 = vector.broadcast %44 : vector<1x128xf32> to vector<256x128xf32>
    %46 = arith.addf %43, %45 : vector<256x128xf32>
    %cst_18 = arith.constant 0.000000e+00 : f32
    %47 = vector.broadcast %cst_18 : f32 to vector<256x128xf32>
    %48 = arith.maximumf %46, %47 : vector<256x128xf32>
    %c264 = arith.constant 264 : index
    %c0_19 = arith.constant 0 : index
    %49 = vector.load %arg1[%c264, %c0_19] : memref<1256x128xbf16, #tpu.memory_space<vmem>>, vector<128x128xbf16>
    %50 = arith.extf %49 : vector<128x128xbf16> to vector<128x128xf32>
    %cst_20 = arith.constant dense<0.000000e+00> : vector<256x128xf32>
    %51 = tpu.matmul %32, %50, %cst_20 {dimension_numbers = #tpu.dot_dimension_numbers<[1], [0], [0], [1], [0, 0, 1, 1], [], []>} : vector<256x128xf32>, vector<128x128xf32>, vector<256x128xf32> -> vector<256x128xf32>
    %c2_21 = arith.constant 2 : index
    %c128 = arith.constant 128 : index
    %52 = vector.load %arg2[%c2_21, %c128] : memref<10x256xf32, #tpu.memory_space<vmem>>, vector<1x128xf32>
    %53 = vector.broadcast %52 : vector<1x128xf32> to vector<256x128xf32>
    %54 = arith.addf %51, %53 : vector<256x128xf32>
    %cst_22 = arith.constant 0.000000e+00 : f32
    %55 = vector.broadcast %cst_22 : f32 to vector<256x128xf32>
    %56 = arith.maximumf %54, %55 : vector<256x128xf32>
    %57 = vector.extract_strided_slice %48 {offsets = [0, 0], sizes = [128, 128], strides = [1, 1]} : vector<256x128xf32> to vector<128x128xf32>
    %cst_23 = arith.constant dense<0xFF800000> : vector<128xf32>
    %58 = vector.multi_reduction <maximumf>, %57, %cst_23 [0] : vector<128x128xf32> to vector<128xf32>
    %59 = vector.shape_cast %58 : vector<128xf32> to vector<1x128xf32>
    %60 = vector.extract_strided_slice %48 {offsets = [128, 0], sizes = [128, 128], strides = [1, 1]} : vector<256x128xf32> to vector<128x128xf32>
    %cst_24 = arith.constant dense<0xFF800000> : vector<128xf32>
    %61 = vector.multi_reduction <maximumf>, %60, %cst_24 [0] : vector<128x128xf32> to vector<128xf32>
    %62 = vector.shape_cast %61 : vector<128xf32> to vector<1x128xf32>
    %63 = tpu.concatenate %59, %62 in 0 : vector<1x128xf32>, vector<1x128xf32> -> vector<2x128xf32>
    %64 = vector.extract_strided_slice %56 {offsets = [0, 0], sizes = [128, 128], strides = [1, 1]} : vector<256x128xf32> to vector<128x128xf32>
    %cst_25 = arith.constant dense<0xFF800000> : vector<128xf32>
    %65 = vector.multi_reduction <maximumf>, %64, %cst_25 [0] : vector<128x128xf32> to vector<128xf32>
    %66 = vector.shape_cast %65 : vector<128xf32> to vector<1x128xf32>
    %67 = vector.extract_strided_slice %56 {offsets = [128, 0], sizes = [128, 128], strides = [1, 1]} : vector<256x128xf32> to vector<128x128xf32>
    %cst_26 = arith.constant dense<0xFF800000> : vector<128xf32>
    %68 = vector.multi_reduction <maximumf>, %67, %cst_26 [0] : vector<128x128xf32> to vector<128xf32>
    %69 = vector.shape_cast %68 : vector<128xf32> to vector<1x128xf32>
    %70 = tpu.concatenate %66, %69 in 0 : vector<1x128xf32>, vector<1x128xf32> -> vector<2x128xf32>
    %c392 = arith.constant 392 : index
    %c0_27 = arith.constant 0 : index
    %71 = vector.load %arg1[%c392, %c0_27] : memref<1256x128xbf16, #tpu.memory_space<vmem>>, vector<128x128xbf16>
    %72 = arith.extf %71 : vector<128x128xbf16> to vector<128x128xf32>
    %cst_28 = arith.constant dense<0.000000e+00> : vector<256x128xf32>
    %73 = tpu.matmul %32, %72, %cst_28 {dimension_numbers = #tpu.dot_dimension_numbers<[1], [0], [0], [1], [0, 0, 1, 1], [], []>} : vector<256x128xf32>, vector<128x128xf32>, vector<256x128xf32> -> vector<256x128xf32>
    %c3 = arith.constant 3 : index
    %c0_29 = arith.constant 0 : index
    %74 = vector.load %arg2[%c3, %c0_29] : memref<10x256xf32, #tpu.memory_space<vmem>>, vector<1x128xf32>
    %75 = vector.broadcast %74 : vector<1x128xf32> to vector<256x128xf32>
    %76 = arith.addf %73, %75 : vector<256x128xf32>
    %cst_30 = arith.constant 0.000000e+00 : f32
    %77 = vector.broadcast %cst_30 : f32 to vector<256x128xf32>
    %78 = arith.maximumf %76, %77 : vector<256x128xf32>
    %c520 = arith.constant 520 : index
    %c0_31 = arith.constant 0 : index
    %79 = vector.load %arg1[%c520, %c0_31] : memref<1256x128xbf16, #tpu.memory_space<vmem>>, vector<128x128xbf16>
    %80 = arith.extf %79 : vector<128x128xbf16> to vector<128x128xf32>
    %cst_32 = arith.constant dense<0.000000e+00> : vector<256x128xf32>
    %81 = tpu.matmul %78, %80, %cst_32 {dimension_numbers = #tpu.dot_dimension_numbers<[1], [0], [0], [1], [0, 0, 1, 1], [], []>} : vector<256x128xf32>, vector<128x128xf32>, vector<256x128xf32> -> vector<256x128xf32>
    %c4 = arith.constant 4 : index
    %c0_33 = arith.constant 0 : index
    %82 = vector.load %arg2[%c4, %c0_33] : memref<10x256xf32, #tpu.memory_space<vmem>>, vector<1x128xf32>
    %83 = vector.broadcast %82 : vector<1x128xf32> to vector<256x128xf32>
    %84 = arith.addf %81, %83 : vector<256x128xf32>
    %cst_34 = arith.constant 0.000000e+00 : f32
    %85 = vector.broadcast %cst_34 : f32 to vector<256x128xf32>
    %86 = arith.maximumf %84, %85 : vector<256x128xf32>
    %c648 = arith.constant 648 : index
    %c0_35 = arith.constant 0 : index
    %87 = vector.load %arg1[%c648, %c0_35] : memref<1256x128xbf16, #tpu.memory_space<vmem>>, vector<128x16xbf16>
    %88 = arith.extf %87 : vector<128x16xbf16> to vector<128x16xf32>
    %cst_36 = arith.constant dense<0.000000e+00> : vector<256x16xf32>
    %89 = tpu.matmul %86, %88, %cst_36 {dimension_numbers = #tpu.dot_dimension_numbers<[1], [0], [0], [1], [0, 0, 1, 1], [], []>} : vector<256x128xf32>, vector<128x16xf32>, vector<256x16xf32> -> vector<256x16xf32>
    %c5 = arith.constant 5 : index
    %c0_37 = arith.constant 0 : index
    %90 = vector.load %arg2[%c5, %c0_37] : memref<10x256xf32, #tpu.memory_space<vmem>>, vector<1x16xf32>
    %91 = vector.broadcast %90 : vector<1x16xf32> to vector<256x16xf32>
    %92 = arith.addf %89, %91 : vector<256x16xf32>
    %cst_38 = arith.constant -2.000000e+01 : f32
    %cst_39 = arith.constant 2.000000e+01 : f32
    %93 = vector.broadcast %cst_38 : f32 to vector<256x16xf32>
    %94 = arith.maximumf %93, %92 : vector<256x16xf32>
    %95 = vector.broadcast %cst_39 : f32 to vector<256x16xf32>
    %96 = arith.minimumf %95, %94 : vector<256x16xf32>
    %cst_40 = arith.constant dense<0xFF800000> : vector<256xf32>
    %97 = vector.multi_reduction <maximumf>, %96, %cst_40 [1] : vector<256x16xf32> to vector<256xf32>
    %98 = vector.shape_cast %97 : vector<256xf32> to vector<256x1xf32>
    %99 = vector.broadcast %98 : vector<256x1xf32> to vector<256x16xf32>
    %100 = arith.subf %96, %99 : vector<256x16xf32>
    %101 = math.exp %100 : vector<256x16xf32>
    %cst_41 = arith.constant dense<0.000000e+00> : vector<256xf32>
    %102 = vector.multi_reduction <add>, %101, %cst_41 [1] : vector<256x16xf32> to vector<256xf32>
    %103 = vector.shape_cast %102 : vector<256xf32> to vector<256x1xf32>
    %104 = vector.broadcast %103 : vector<256x1xf32> to vector<256x16xf32>
    %105 = arith.divf %101, %104 : vector<256x16xf32>
    %106 = tpu.transpose %105, [1, 0] : vector<256x16xf32> -> vector<16x256xf32>
    %107 = vector.extract_strided_slice %106 {offsets = [0, 0], sizes = [16, 128], strides = [1, 1]} : vector<16x256xf32> to vector<16x128xf32>
    %c0_42 = arith.constant 0 : index
    %c0_43 = arith.constant 0 : index
    %c0_44 = arith.constant 0 : index
    %108 = vector.load %arg4[%c0_42, %c0_43, %c0_44] : memref<2x24x128xf32, #tpu.memory_space<vmem>>, vector<1x16x128xf32>
    %109 = vector.shape_cast %108 : vector<1x16x128xf32> to vector<16x128xf32>
    %110 = vector.shape_cast %107 : vector<16x128xf32> to vector<1x16x128xf32>
    tpu.vector_store %arg4[%c0_42, %c0_43, %c0_44], %110 {strides = array<i32>} : memref<2x24x128xf32, #tpu.memory_space<vmem>>, vector<1x16x128xf32>,
    %111 = vector.extract_strided_slice %106 {offsets = [0, 128], sizes = [16, 128], strides = [1, 1]} : vector<16x256xf32> to vector<16x128xf32>
    %c1_45 = arith.constant 1 : index
    %c0_46 = arith.constant 0 : index
    %c0_47 = arith.constant 0 : index
    %112 = vector.load %arg4[%c1_45, %c0_46, %c0_47] : memref<2x24x128xf32, #tpu.memory_space<vmem>>, vector<1x16x128xf32>
    %113 = vector.shape_cast %112 : vector<1x16x128xf32> to vector<16x128xf32>
    %114 = vector.shape_cast %111 : vector<16x128xf32> to vector<1x16x128xf32>
    tpu.vector_store %arg4[%c1_45, %c0_46, %c0_47], %114 {strides = array<i32>} : memref<2x24x128xf32, #tpu.memory_space<vmem>>, vector<1x16x128xf32>,
    %cst_48 = arith.constant 0.000000e+00 : f32
    %115 = vector.broadcast %cst_48 : f32 to vector<2x8x128xf32>
    %c0_49 = arith.constant 0 : index
    %c16 = arith.constant 16 : index
    %c0_50 = arith.constant 0 : index
    %116 = vector.load %arg4[%c0_49, %c16, %c0_50] : memref<2x24x128xf32, #tpu.memory_space<vmem>>, vector<2x8x128xf32>
    tpu.vector_store %arg4[%c0_49, %c16, %c0_50], %115 {strides = array<i32>} : memref<2x24x128xf32, #tpu.memory_space<vmem>>, vector<2x8x128xf32>,
    %c776 = arith.constant 776 : index
    %c0_51 = arith.constant 0 : index
    %117 = vector.load %arg1[%c776, %c0_51] : memref<1256x128xbf16, #tpu.memory_space<vmem>>, vector<128x128xbf16>
    %118 = arith.extf %117 : vector<128x128xbf16> to vector<128x128xf32>
    %cst_52 = arith.constant dense<0.000000e+00> : vector<2x128xf32>
    %119 = tpu.matmul %63, %118, %cst_52 {dimension_numbers = #tpu.dot_dimension_numbers<[1], [0], [0], [1], [0, 0, 1, 1], [], []>} : vector<2x128xf32>, vector<128x128xf32>, vector<2x128xf32> -> vector<2x128xf32>
    %c904 = arith.constant 904 : index
    %c0_53 = arith.constant 0 : index
    %120 = vector.load %arg1[%c904, %c0_53] : memref<1256x128xbf16, #tpu.memory_space<vmem>>, vector<128x128xbf16>
    %121 = arith.extf %120 : vector<128x128xbf16> to vector<128x128xf32>
    %cst_54 = arith.constant dense<0.000000e+00> : vector<2x128xf32>
    %122 = tpu.matmul %70, %121, %cst_54 {dimension_numbers = #tpu.dot_dimension_numbers<[1], [0], [0], [1], [0, 0, 1, 1], [], []>} : vector<2x128xf32>, vector<128x128xf32>, vector<2x128xf32> -> vector<2x128xf32>
    %123 = arith.addf %119, %122 : vector<2x128xf32>
    %c6 = arith.constant 6 : index
    %c0_55 = arith.constant 0 : index
    %124 = vector.load %arg2[%c6, %c0_55] : memref<10x256xf32, #tpu.memory_space<vmem>>, vector<1x128xf32>
    %125 = vector.broadcast %124 : vector<1x128xf32> to vector<2x128xf32>
    %126 = arith.addf %123, %125 : vector<2x128xf32>
    %cst_56 = arith.constant 0.000000e+00 : f32
    %127 = vector.broadcast %cst_56 : f32 to vector<2x128xf32>
    %128 = arith.maximumf %126, %127 : vector<2x128xf32>
    %c1032 = arith.constant 1032 : index
    %c0_57 = arith.constant 0 : index
    %129 = vector.load %arg1[%c1032, %c0_57] : memref<1256x128xbf16, #tpu.memory_space<vmem>>, vector<128x64xbf16>
    %130 = arith.extf %129 : vector<128x64xbf16> to vector<128x64xf32>
    %cst_58 = arith.constant dense<0.000000e+00> : vector<2x64xf32>
    %131 = tpu.matmul %128, %130, %cst_58 {dimension_numbers = #tpu.dot_dimension_numbers<[1], [0], [0], [1], [0, 0, 1, 1], [], []>} : vector<2x128xf32>, vector<128x64xf32>, vector<2x64xf32> -> vector<2x64xf32>
    %c7 = arith.constant 7 : index
    %c0_59 = arith.constant 0 : index
    %132 = vector.load %arg2[%c7, %c0_59] : memref<10x256xf32, #tpu.memory_space<vmem>>, vector<1x64xf32>
    %133 = vector.broadcast %132 : vector<1x64xf32> to vector<2x64xf32>
    %134 = arith.addf %131, %133 : vector<2x64xf32>
    %cst_60 = arith.constant 0.000000e+00 : f32
    %135 = vector.broadcast %cst_60 : f32 to vector<2x64xf32>
    %136 = arith.maximumf %134, %135 : vector<2x64xf32>
    %c1160 = arith.constant 1160 : index
    %c0_61 = arith.constant 0 : index
    %137 = vector.load %arg1[%c1160, %c0_61] : memref<1256x128xbf16, #tpu.memory_space<vmem>>, vector<64x32xbf16>
    %138 = arith.extf %137 : vector<64x32xbf16> to vector<64x32xf32>
    %cst_62 = arith.constant dense<0.000000e+00> : vector<2x32xf32>
    %139 = tpu.matmul %136, %138, %cst_62 {dimension_numbers = #tpu.dot_dimension_numbers<[1], [0], [0], [1], [0, 0, 1, 1], [], []>} : vector<2x64xf32>, vector<64x32xf32>, vector<2x32xf32> -> vector<2x32xf32>
    %c8_63 = arith.constant 8 : index
    %c0_64 = arith.constant 0 : index
    %140 = vector.load %arg2[%c8_63, %c0_64] : memref<10x256xf32, #tpu.memory_space<vmem>>, vector<1x32xf32>
    %141 = vector.broadcast %140 : vector<1x32xf32> to vector<2x32xf32>
    %142 = arith.addf %139, %141 : vector<2x32xf32>
    %cst_65 = arith.constant 0.000000e+00 : f32
    %143 = vector.broadcast %cst_65 : f32 to vector<2x32xf32>
    %144 = arith.maximumf %142, %143 : vector<2x32xf32>
    %c1224 = arith.constant 1224 : index
    %c0_66 = arith.constant 0 : index
    %145 = vector.load %arg1[%c1224, %c0_66] : memref<1256x128xbf16, #tpu.memory_space<vmem>>, vector<32x16xbf16>
    %146 = arith.extf %145 : vector<32x16xbf16> to vector<32x16xf32>
    %cst_67 = arith.constant dense<0.000000e+00> : vector<2x16xf32>
    %147 = tpu.matmul %144, %146, %cst_67 {dimension_numbers = #tpu.dot_dimension_numbers<[1], [0], [0], [1], [0, 0, 1, 1], [], []>} : vector<2x32xf32>, vector<32x16xf32>, vector<2x16xf32> -> vector<2x16xf32>
    %c9 = arith.constant 9 : index
    %c0_68 = arith.constant 0 : index
    %148 = vector.load %arg2[%c9, %c0_68] : memref<10x256xf32, #tpu.memory_space<vmem>>, vector<1x16xf32>
    %149 = vector.broadcast %148 : vector<1x16xf32> to vector<2x16xf32>
    %150 = arith.addf %147, %149 : vector<2x16xf32>
    %cst_69 = arith.constant -2.000000e+01 : f32
    %cst_70 = arith.constant 2.000000e+01 : f32
    %151 = vector.broadcast %cst_69 : f32 to vector<2x16xf32>
    %152 = arith.maximumf %151, %150 : vector<2x16xf32>
    %153 = vector.broadcast %cst_70 : f32 to vector<2x16xf32>
    %154 = arith.minimumf %153, %152 : vector<2x16xf32>
    %c0_71 = arith.constant 0 : index
    %c0_72 = arith.constant 0 : index
    %155 = vector.load %arg5[%c0_71, %c0_72] : memref<2x24xf32, #tpu.memory_space<vmem>>, vector<2x16xf32>
    tpu.vector_store %arg5[%c0_71, %c0_72], %154 {strides = array<i32>} : memref<2x24xf32, #tpu.memory_space<vmem>>, vector<2x16xf32>,
    %cst_73 = arith.constant 0.000000e+00 : f32
    %156 = vector.broadcast %cst_73 : f32 to vector<2x8xf32>
    %c0_74 = arith.constant 0 : index
    %c16_75 = arith.constant 16 : index
    %157 = vector.load %arg5[%c0_74, %c16_75] : memref<2x24xf32, #tpu.memory_space<vmem>>, vector<2x8xf32>
    tpu.vector_store %arg5[%c0_74, %c16_75], %156 {strides = array<i32>} : memref<2x24xf32, #tpu.memory_space<vmem>>, vector<2x8xf32>,
    return
  }
}

</mosaic_0001>

<llo_original>
// kernel: primitive_fitting_net_forward.1
$region0: #{primitive_fitting_net_forward.1}
  #allocation0 [shape = 'u32[]', space=smem, size = 0x4, offset = 0x4, fixed_abs, tag = 'smem constant byte address 0x4 - core index']
  #allocation1 [shape = 'u32[144,128]{1,0:T(1,128)}', space=vmem, size = 0x12000, scoped, tag = 'internal scratch']
  %s0 = inlined_call_operand.vmem [shape: f32[256,3], index: 0, kind: input, shape index: {}]
  %s1 = inlined_call_operand.hbm [shape: bf16[1256,128], index: 1, kind: input, shape index: {}]
  %s2 = inlined_call_operand.vmem [shape: f32[10,256], index: 2, kind: input, shape index: {}]
  %s3 = inlined_call_operand.hbm [shape: f32[2,128,128], index: 3, kind: output, shape index: {0}]
  %s4 = inlined_call_operand.hbm [shape: f32[2,24,128], index: 4, kind: output, shape index: {1}]
  %s5 = inlined_call_operand.vmem [shape: f32[2,24], index: 5, kind: output, shape index: {2}]
  %6 = xla_tuple %s3, %s4, %s5
  %s7 = sld [smem:[#allocation0]]
  $region42: #{primitive_fitting_net_forward.1} parent=0
    _
  %s9 = ssub.s32 1, %s7
  %s10 = scalar_select 0, %s9, %s7
  $region1: #{primitive_fitting_net_forward.1} parent=0
    #allocation2 [shape = 'u8[321536]{0}', space=vmem, size = 0x4e800, scoped, tag = 'input window, operand 1, single buffered']
    #allocation3 [shape = 's32[1]{0}', space=sflag, size = 0x4, scoped, tag = 'scoped memory for primitive_fitting_net_forward.1']
    #allocation4 [shape = 's32[1]{0}', space=sflag, size = 0x4, scoped, tag = 'scoped memory for primitive_fitting_net_forward.1']
    #allocation5 [shape = 'u8[131072]{0}', space=vmem, size = 0x20000, scoped, tag = 'output window, operand 0, single buffered']
    #allocation6 [shape = 'u8[24576]{0}', space=vmem, size = 0x6000, scoped, tag = 'output window, operand 1, single buffered']
    #allocation7 [shape = 's32[1]{0}', space=sflag, size = 0x4, scoped, tag = 'scoped memory for primitive_fitting_net_forward.1']
    %11 = vsyncpa [#allocation3], 0
    %12 = vsyncpa [#allocation4], 0
    %13 = vsyncpa [#allocation7], 0
    // Predicated region
    $region2: #{primitive_fitting_net_forward.1} parent=1 // pred_check
      _
    $region3: #{primitive_fitting_net_forward.1} parent=1 // pred_check_branch
      %15 = sbr.rel (0) target = $region5
    $region4: #{primitive_fitting_net_forward.1} parent=1 // pred_region
      _
    $region5: #{primitive_fitting_net_forward.1} parent=1 // pred_fallthru
      _
    // Predicated region
    $region6: #{primitive_fitting_net_forward.1} parent=1 // pred_check
      _
    $region7: #{primitive_fitting_net_forward.1} parent=1 // pred_check_branch
      %17 = sbr.rel (0) target = $region9
    $region8: #{primitive_fitting_net_forward.1} parent=1 // pred_region
      %s19 = ssub.s32 10048, 10048
      %20 = vsyncadd [#allocation3], %s19
      %s21 = sshll.u32 [#allocation2], 4
      %s22 = int_to_ptr.vmem [resolvable:$true] %s21
      %27 = dma.hbm_to_vmem [thread:$0]  %s1, 10048, %s22, [#allocation3], 64, 64, 4
    $region9: #{primitive_fitting_net_forward.1} parent=1 // pred_fallthru
      _
    // Predicated region
    $region10: #{primitive_fitting_net_forward.1} parent=1 // pred_check
      _
    $region11: #{primitive_fitting_net_forward.1} parent=1 // pred_check_branch
      %29 = sbr.rel (0) target = $region13
    $region12: #{primitive_fitting_net_forward.1} parent=1 // pred_region
      _
    $region13: #{primitive_fitting_net_forward.1} parent=1 // pred_fallthru
      _
    // Predicated region
    $region14: #{primitive_fitting_net_forward.1} parent=1 // pred_check
      _
    $region15: #{primitive_fitting_net_forward.1} parent=1 // pred_check_branch
      %31 = sbr.rel (0) target = $region17
    $region16: #{primitive_fitting_net_forward.1} parent=1 // pred_region
      %32 = dma.done [#allocation3], 10048
    $region17: #{primitive_fitting_net_forward.1} parent=1 // pred_fallthru
      _
    %v33 = vld [vmem:[%s0] sm:$0xff]
    %v34 = vld [vmem:[%s0 + $0x8] sm:$0xff]
    %v35 = vld [vmem:[%s0 + $0x10] sm:$0xff]
    %v36 = vld [vmem:[%s0 + $0x18] sm:$0xff]
    %v37 = vld [vmem:[%s0 + $0x20] sm:$0xff]
    %v38 = vld [vmem:[%s0 + $0x28] sm:$0xff]
    %v39 = vld [vmem:[%s0 + $0x30] sm:$0xff]
    %v40 = vld [vmem:[%s0 + $0x38] sm:$0xff]
    %v41 = vld [vmem:[%s0 + $0x40] sm:$0xff]
    %v42 = vld [vmem:[%s0 + $0x48] sm:$0xff]
    %v43 = vld [vmem:[%s0 + $0x50] sm:$0xff]
    %v44 = vld [vmem:[%s0 + $0x58] sm:$0xff]
    %v45 = vld [vmem:[%s0 + $0x60] sm:$0xff]
    %v46 = vld [vmem:[%s0 + $0x68] sm:$0xff]
    %v47 = vld [vmem:[%s0 + $0x70] sm:$0xff]
    %v48 = vld [vmem:[%s0 + $0x78] sm:$0xff]
    %v49 = vld [vmem:[%s0 + $0x80] sm:$0xff]
    %v50 = vld [vmem:[%s0 + $0x88] sm:$0xff]
    %v51 = vld [vmem:[%s0 + $0x90] sm:$0xff]
    %v52 = vld [vmem:[%s0 + $0x98] sm:$0xff]
    %v53 = vld [vmem:[%s0 + $0xa0] sm:$0xff]
    %v54 = vld [vmem:[%s0 + $0xa8] sm:$0xff]
    %v55 = vld [vmem:[%s0 + $0xb0] sm:$0xff]
    %v56 = vld [vmem:[%s0 + $0xb8] sm:$0xff]
    %v57 = vld [vmem:[%s0 + $0xc0] sm:$0xff]
    %v58 = vld [vmem:[%s0 + $0xc8] sm:$0xff]
    %v59 = vld [vmem:[%s0 + $0xd0] sm:$0xff]
    %v60 = vld [vmem:[%s0 + $0xd8] sm:$0xff]
    %v61 = vld [vmem:[%s0 + $0xe0] sm:$0xff]
    %v62 = vld [vmem:[%s0 + $0xe8] sm:$0xff]
    %v63 = vld [vmem:[%s0 + $0xf0] sm:$0xff]
    %v64 = vld [vmem:[%s0 + $0xf8] sm:$0xff]
    %v65 = vld [vmem:[#allocation2] sm:$0x3]
    %v66 = vunpack.c.l.bf16 %v65
    %68 = vset.pattern.permute.xlu0 0
    %69 = vperm.xlu0 %68, %v33
    %v70 = vpop.permute.xlu0 %69
    %73 = vset.pattern.permute.xlu0 0
    %74 = vperm.xlu0 %73, %v34
    %v75 = vpop.permute.xlu0 %74
    %78 = vset.pattern.permute.xlu0 0
    %79 = vperm.xlu0 %78, %v35
    %v80 = vpop.permute.xlu0 %79
    %83 = vset.pattern.permute.xlu0 0
    %84 = vperm.xlu0 %83, %v36
    %v85 = vpop.permute.xlu0 %84
    %88 = vset.pattern.permute.xlu0 0
    %89 = vperm.xlu0 %88, %v37
    %v90 = vpop.permute.xlu0 %89
    %93 = vset.pattern.permute.xlu0 0
    %94 = vperm.xlu0 %93, %v38
    %v95 = vpop.permute.xlu0 %94
    %98 = vset.pattern.permute.xlu0 0
    %99 = vperm.xlu0 %98, %v39
    %v100 = vpop.permute.xlu0 %99
    %103 = vset.pattern.permute.xlu0 0
    %104 = vperm.xlu0 %103, %v40
    %v105 = vpop.permute.xlu0 %104
    %108 = vset.pattern.permute.xlu0 0
    %109 = vperm.xlu0 %108, %v41
    %v110 = vpop.permute.xlu0 %109
    %113 = vset.pattern.permute.xlu0 0
    %114 = vperm.xlu0 %113, %v42
    %v115 = vpop.permute.xlu0 %114
    %118 = vset.pattern.permute.xlu0 0
    %119 = vperm.xlu0 %118, %v43
    %v120 = vpop.permute.xlu0 %119
    %123 = vset.pattern.permute.xlu0 0
    %124 = vperm.xlu0 %123, %v44
    %v125 = vpop.permute.xlu0 %124
    %128 = vset.pattern.permute.xlu0 0
    %129 = vperm.xlu0 %128, %v45
    %v130 = vpop.permute.xlu0 %129
    %133 = vset.pattern.permute.xlu0 0
    %134 = vperm.xlu0 %133, %v46
    %v135 = vpop.permute.xlu0 %134
    %138 = vset.pattern.permute.xlu0 0
    %139 = vperm.xlu0 %138, %v47
    %v140 = vpop.permute.xlu0 %139
    %143 = vset.pattern.permute.xlu0 0
    %144 = vperm.xlu0 %143, %v48
    %v145 = vpop.permute.xlu0 %144
    %148 = vset.pattern.permute.xlu0 0
    %149 = vperm.xlu0 %148, %v49
    %v150 = vpop.permute.xlu0 %149
    %153 = vset.pattern.permute.xlu0 0
    %154 = vperm.xlu0 %153, %v50
    %v155 = vpop.permute.xlu0 %154
    %158 = vset.pattern.permute.xlu0 0
    %159 = vperm.xlu0 %158, %v51
    %v160 = vpop.permute.xlu0 %159
    %163 = vset.pattern.permute.xlu0 0
    %164 = vperm.xlu0 %163, %v52
    %v165 = vpop.permute.xlu0 %164
    %168 = vset.pattern.permute.xlu0 0
    %169 = vperm.xlu0 %168, %v53
    %v170 = vpop.permute.xlu0 %169
    %173 = vset.pattern.permute.xlu0 0
    %174 = vperm.xlu0 %173, %v54
    %v175 = vpop.permute.xlu0 %174
    %178 = vset.pattern.permute.xlu0 0
    %179 = vperm.xlu0 %178, %v55
    %v180 = vpop.permute.xlu0 %179
    %183 = vset.pattern.permute.xlu0 0
    %184 = vperm.xlu0 %183, %v56
    %v185 = vpop.permute.xlu0 %184
    %188 = vset.pattern.permute.xlu0 0
    %189 = vperm.xlu0 %188, %v57
    %v190 = vpop.permute.xlu0 %189
    %193 = vset.pattern.permute.xlu0 0
    %194 = vperm.xlu0 %193, %v58
    %v195 = vpop.permute.xlu0 %194
    %198 = vset.pattern.permute.xlu0 0
    %199 = vperm.xlu0 %198, %v59
    %v200 = vpop.permute.xlu0 %199
    %203 = vset.pattern.permute.xlu0 0
    %204 = vperm.xlu0 %203, %v60
    %v205 = vpop.permute.xlu0 %204
    %208 = vset.pattern.permute.xlu0 0
    %209 = vperm.xlu0 %208, %v61
    %v210 = vpop.permute.xlu0 %209
    %213 = vset.pattern.permute.xlu0 0
    %214 = vperm.xlu0 %213, %v62
    %v215 = vpop.permute.xlu0 %214
    %218 = vset.pattern.permute.xlu0 0
    %219 = vperm.xlu0 %218, %v63
    %v220 = vpop.permute.xlu0 %219
    %223 = vset.pattern.permute.xlu0 0
    %224 = vperm.xlu0 %223, %v64
    %v225 = vpop.permute.xlu0 %224
    %v227 = vlaneseq
    %v228 = vshrl.u32 %v227, 7
    %v229 = vsub.s32 0, %v228
    %v230 = vrot.slane %v66, %v229
    %v231 = vmul.f32 %v70, %v230
    %v232 = vmul.f32 %v75, %v230
    %v233 = vmul.f32 %v80, %v230
    %v234 = vmul.f32 %v85, %v230
    %v235 = vmul.f32 %v90, %v230
    %v236 = vmul.f32 %v95, %v230
    %v237 = vmul.f32 %v100, %v230
    %v238 = vmul.f32 %v105, %v230
    %v239 = vmul.f32 %v110, %v230
    %v240 = vmul.f32 %v115, %v230
    %v241 = vmul.f32 %v120, %v230
    %v242 = vmul.f32 %v125, %v230
    %v243 = vmul.f32 %v130, %v230
    %v244 = vmul.f32 %v135, %v230
    %v245 = vmul.f32 %v140, %v230
    %v246 = vmul.f32 %v145, %v230
    %v247 = vmul.f32 %v150, %v230
    %v248 = vmul.f32 %v155, %v230
    %v249 = vmul.f32 %v160, %v230
    %v250 = vmul.f32 %v165, %v230
    %v251 = vmul.f32 %v170, %v230
    %v252 = vmul.f32 %v175, %v230
    %v253 = vmul.f32 %v180, %v230
    %v254 = vmul.f32 %v185, %v230
    %v255 = vmul.f32 %v190, %v230
    %v256 = vmul.f32 %v195, %v230
    %v257 = vmul.f32 %v200, %v230
    %v258 = vmul.f32 %v205, %v230
    %v259 = vmul.f32 %v210, %v230
    %v260 = vmul.f32 %v215, %v230
    %v261 = vmul.f32 %v220, %v230
    %v262 = vmul.f32 %v225, %v230
    %263 = vset.pattern.permute.xlu0 1
    %264 = vperm.xlu0 %263, %v33
    %v265 = vpop.permute.xlu0 %264
    %267 = vset.pattern.permute.xlu0 1
    %268 = vperm.xlu0 %267, %v34
    %v269 = vpop.permute.xlu0 %268
    %271 = vset.pattern.permute.xlu0 1
    %272 = vperm.xlu0 %271, %v35
    %v273 = vpop.permute.xlu0 %272
    %275 = vset.pattern.permute.xlu0 1
    %276 = vperm.xlu0 %275, %v36
    %v277 = vpop.permute.xlu0 %276
    %279 = vset.pattern.permute.xlu0 1
    %280 = vperm.xlu0 %279, %v37
    %v281 = vpop.permute.xlu0 %280
    %283 = vset.pattern.permute.xlu0 1
    %284 = vperm.xlu0 %283, %v38
    %v285 = vpop.permute.xlu0 %284
    %287 = vset.pattern.permute.xlu0 1
    %288 = vperm.xlu0 %287, %v39
    %v289 = vpop.permute.xlu0 %288
    %291 = vset.pattern.permute.xlu0 1
    %292 = vperm.xlu0 %291, %v40
    %v293 = vpop.permute.xlu0 %292
    %295 = vset.pattern.permute.xlu0 1
    %296 = vperm.xlu0 %295, %v41
    %v297 = vpop.permute.xlu0 %296
    %299 = vset.pattern.permute.xlu0 1
    %300 = vperm.xlu0 %299, %v42
    %v301 = vpop.permute.xlu0 %300
    %303 = vset.pattern.permute.xlu0 1
    %304 = vperm.xlu0 %303, %v43
    %v305 = vpop.permute.xlu0 %304
    %307 = vset.pattern.permute.xlu0 1
    %308 = vperm.xlu0 %307, %v44
    %v309 = vpop.permute.xlu0 %308
    %311 = vset.pattern.permute.xlu0 1
    %312 = vperm.xlu0 %311, %v45
    %v313 = vpop.permute.xlu0 %312
    %315 = vset.pattern.permute.xlu0 1
    %316 = vperm.xlu0 %315, %v46
    %v317 = vpop.permute.xlu0 %316
    %319 = vset.pattern.permute.xlu0 1
    %320 = vperm.xlu0 %319, %v47
    %v321 = vpop.permute.xlu0 %320
    %323 = vset.pattern.permute.xlu0 1
    %324 = vperm.xlu0 %323, %v48
    %v325 = vpop.permute.xlu0 %324
    %327 = vset.pattern.permute.xlu0 1
    %328 = vperm.xlu0 %327, %v49
    %v329 = vpop.permute.xlu0 %328
    %331 = vset.pattern.permute.xlu0 1
    %332 = vperm.xlu0 %331, %v50
    %v333 = vpop.permute.xlu0 %332
    %335 = vset.pattern.permute.xlu0 1
    %336 = vperm.xlu0 %335, %v51
    %v337 = vpop.permute.xlu0 %336
    %339 = vset.pattern.permute.xlu0 1
    %340 = vperm.xlu0 %339, %v52
    %v341 = vpop.permute.xlu0 %340
    %343 = vset.pattern.permute.xlu0 1
    %344 = vperm.xlu0 %343, %v53
    %v345 = vpop.permute.xlu0 %344
    %347 = vset.pattern.permute.xlu0 1
    %348 = vperm.xlu0 %347, %v54
    %v349 = vpop.permute.xlu0 %348
    %351 = vset.pattern.permute.xlu0 1
    %352 = vperm.xlu0 %351, %v55
    %v353 = vpop.permute.xlu0 %352
    %355 = vset.pattern.permute.xlu0 1
    %356 = vperm.xlu0 %355, %v56
    %v357 = vpop.permute.xlu0 %356
    %359 = vset.pattern.permute.xlu0 1
    %360 = vperm.xlu0 %359, %v57
    %v361 = vpop.permute.xlu0 %360
    %363 = vset.pattern.permute.xlu0 1
    %364 = vperm.xlu0 %363, %v58
    %v365 = vpop.permute.xlu0 %364
    %367 = vset.pattern.permute.xlu0 1
    %368 = vperm.xlu0 %367, %v59
    %v369 = vpop.permute.xlu0 %368
    %371 = vset.pattern.permute.xlu0 1
    %372 = vperm.xlu0 %371, %v60
    %v373 = vpop.permute.xlu0 %372
    %375 = vset.pattern.permute.xlu0 1
    %376 = vperm.xlu0 %375, %v61
    %v377 = vpop.permute.xlu0 %376
    %379 = vset.pattern.permute.xlu0 1
    %380 = vperm.xlu0 %379, %v62
    %v381 = vpop.permute.xlu0 %380
    %383 = vset.pattern.permute.xlu0 1
    %384 = vperm.xlu0 %383, %v63
    %v385 = vpop.permute.xlu0 %384
    %387 = vset.pattern.permute.xlu0 1
    %388 = vperm.xlu0 %387, %v64
    %v389 = vpop.permute.xlu0 %388
    %v391 = vlaneseq
    %v392 = vshrl.u32 %v391, 7
    %v393 = vsub.s32 1, %v392
    %v394 = vrot.slane %v66, %v393
    %v395 = vmul.f32 %v265, %v394
    %v396 = vmul.f32 %v269, %v394
    %v397 = vmul.f32 %v273, %v394
    %v398 = vmul.f32 %v277, %v394
    %v399 = vmul.f32 %v281, %v394
    %v400 = vmul.f32 %v285, %v394
    %v401 = vmul.f32 %v289, %v394
    %v402 = vmul.f32 %v293, %v394
    %v403 = vmul.f32 %v297, %v394
    %v404 = vmul.f32 %v301, %v394
    %v405 = vmul.f32 %v305, %v394
    %v406 = vmul.f32 %v309, %v394
    %v407 = vmul.f32 %v313, %v394
    %v408 = vmul.f32 %v317, %v394
    %v409 = vmul.f32 %v321, %v394
    %v410 = vmul.f32 %v325, %v394
    %v411 = vmul.f32 %v329, %v394
    %v412 = vmul.f32 %v333, %v394
    %v413 = vmul.f32 %v337, %v394
    %v414 = vmul.f32 %v341, %v394
    %v415 = vmul.f32 %v345, %v394
    %v416 = vmul.f32 %v349, %v394
    %v417 = vmul.f32 %v353, %v394
    %v418 = vmul.f32 %v357, %v394
    %v419 = vmul.f32 %v361, %v394
    %v420 = vmul.f32 %v365, %v394
    %v421 = vmul.f32 %v369, %v394
    %v422 = vmul.f32 %v373, %v394
    %v423 = vmul.f32 %v377, %v394
    %v424 = vmul.f32 %v381, %v394
    %v425 = vmul.f32 %v385, %v394
    %v426 = vmul.f32 %v389, %v394
    %v427 = vadd.f32 %v231, %v395
    %v428 = vadd.f32 %v232, %v396
    %v429 = vadd.f32 %v233, %v397
    %v430 = vadd.f32 %v234, %v398
    %v431 = vadd.f32 %v235, %v399
    %v432 = vadd.f32 %v236, %v400
    %v433 = vadd.f32 %v237, %v401
    %v434 = vadd.f32 %v238, %v402
    %v435 = vadd.f32 %v239, %v403
    %v436 = vadd.f32 %v240, %v404
    %v437 = vadd.f32 %v241, %v405
    %v438 = vadd.f32 %v242, %v406
    %v439 = vadd.f32 %v243, %v407
    %v440 = vadd.f32 %v244, %v408
    %v441 = vadd.f32 %v245, %v409
    %v442 = vadd.f32 %v246, %v410
    %v443 = vadd.f32 %v247, %v411
    %v444 = vadd.f32 %v248, %v412
    %v445 = vadd.f32 %v249, %v413
    %v446 = vadd.f32 %v250, %v414
    %v447 = vadd.f32 %v251, %v415
    %v448 = vadd.f32 %v252, %v416
    %v449 = vadd.f32 %v253, %v417
    %v450 = vadd.f32 %v254, %v418
    %v451 = vadd.f32 %v255, %v419
    %v452 = vadd.f32 %v256, %v420
    %v453 = vadd.f32 %v257, %v421
    %v454 = vadd.f32 %v258, %v422
    %v455 = vadd.f32 %v259, %v423
    %v456 = vadd.f32 %v260, %v424
    %v457 = vadd.f32 %v261, %v425
    %v458 = vadd.f32 %v262, %v426
    %459 = vset.pattern.permute.xlu0 2
    %460 = vperm.xlu0 %459, %v33
    %v461 = vpop.permute.xlu0 %460
    %463 = vset.pattern.permute.xlu0 2
    %464 = vperm.xlu0 %463, %v34
    %v465 = vpop.permute.xlu0 %464
    %467 = vset.pattern.permute.xlu0 2
    %468 = vperm.xlu0 %467, %v35
    %v469 = vpop.permute.xlu0 %468
    %471 = vset.pattern.permute.xlu0 2
    %472 = vperm.xlu0 %471, %v36
    %v473 = vpop.permute.xlu0 %472
    %475 = vset.pattern.permute.xlu0 2
    %476 = vperm.xlu0 %475, %v37
    %v477 = vpop.permute.xlu0 %476
    %479 = vset.pattern.permute.xlu0 2
    %480 = vperm.xlu0 %479, %v38
    %v481 = vpop.permute.xlu0 %480
    %483 = vset.pattern.permute.xlu0 2
    %484 = vperm.xlu0 %483, %v39
    %v485 = vpop.permute.xlu0 %484
    %487 = vset.pattern.permute.xlu0 2
    %488 = vperm.xlu0 %487, %v40
    %v489 = vpop.permute.xlu0 %488
    %491 = vset.pattern.permute.xlu0 2
    %492 = vperm.xlu0 %491, %v41
    %v493 = vpop.permute.xlu0 %492
    %495 = vset.pattern.permute.xlu0 2
    %496 = vperm.xlu0 %495, %v42
    %v497 = vpop.permute.xlu0 %496
    %499 = vset.pattern.permute.xlu0 2
    %500 = vperm.xlu0 %499, %v43
    %v501 = vpop.permute.xlu0 %500
    %503 = vset.pattern.permute.xlu0 2
    %504 = vperm.xlu0 %503, %v44
    %v505 = vpop.permute.xlu0 %504
    %507 = vset.pattern.permute.xlu0 2
    %508 = vperm.xlu0 %507, %v45
    %v509 = vpop.permute.xlu0 %508
    %511 = vset.pattern.permute.xlu0 2
    %512 = vperm.xlu0 %511, %v46
    %v513 = vpop.permute.xlu0 %512
    %515 = vset.pattern.permute.xlu0 2
    %516 = vperm.xlu0 %515, %v47
    %v517 = vpop.permute.xlu0 %516
    %519 = vset.pattern.permute.xlu0 2
    %520 = vperm.xlu0 %519, %v48
    %v521 = vpop.permute.xlu0 %520
    %523 = vset.pattern.permute.xlu0 2
    %524 = vperm.xlu0 %523, %v49
    %v525 = vpop.permute.xlu0 %524
    %527 = vset.pattern.permute.xlu0 2
    %528 = vperm.xlu0 %527, %v50
    %v529 = vpop.permute.xlu0 %528
    %531 = vset.pattern.permute.xlu0 2
    %532 = vperm.xlu0 %531, %v51
    %v533 = vpop.permute.xlu0 %532
    %535 = vset.pattern.permute.xlu0 2
    %536 = vperm.xlu0 %535, %v52
    %v537 = vpop.permute.xlu0 %536
    %539 = vset.pattern.permute.xlu0 2
    %540 = vperm.xlu0 %539, %v53
    %v541 = vpop.permute.xlu0 %540
    %543 = vset.pattern.permute.xlu0 2
    %544 = vperm.xlu0 %543, %v54
    %v545 = vpop.permute.xlu0 %544
    %547 = vset.pattern.permute.xlu0 2
    %548 = vperm.xlu0 %547, %v55
    %v549 = vpop.permute.xlu0 %548
    %551 = vset.pattern.permute.xlu0 2
    %552 = vperm.xlu0 %551, %v56
    %v553 = vpop.permute.xlu0 %552
    %555 = vset.pattern.permute.xlu0 2
    %556 = vperm.xlu0 %555, %v57
    %v557 = vpop.permute.xlu0 %556
    %559 = vset.pattern.permute.xlu0 2
    %560 = vperm.xlu0 %559, %v58
    %v561 = vpop.permute.xlu0 %560
    %563 = vset.pattern.permute.xlu0 2
    %564 = vperm.xlu0 %563, %v59
    %v565 = vpop.permute.xlu0 %564
    %567 = vset.pattern.permute.xlu0 2
    %568 = vperm.xlu0 %567, %v60
    %v569 = vpop.permute.xlu0 %568
    %571 = vset.pattern.permute.xlu0 2
    %572 = vperm.xlu0 %571, %v61
    %v573 = vpop.permute.xlu0 %572
    %575 = vset.pattern.permute.xlu0 2
    %576 = vperm.xlu0 %575, %v62
    %v577 = vpop.permute.xlu0 %576
    %579 = vset.pattern.permute.xlu0 2
    %580 = vperm.xlu0 %579, %v63
    %v581 = vpop.permute.xlu0 %580
    %583 = vset.pattern.permute.xlu0 2
    %584 = vperm.xlu0 %583, %v64
    %v585 = vpop.permute.xlu0 %584
    %v587 = vlaneseq
    %v588 = vshrl.u32 %v587, 7
    %v589 = vsub.s32 2, %v588
    %v590 = vrot.slane %v66, %v589
    %v591 = vmul.f32 %v461, %v590
    %v592 = vmul.f32 %v465, %v590
    %v593 = vmul.f32 %v469, %v590
    %v594 = vmul.f32 %v473, %v590
    %v595 = vmul.f32 %v477, %v590
    %v596 = vmul.f32 %v481, %v590
    %v597 = vmul.f32 %v485, %v590
    %v598 = vmul.f32 %v489, %v590
    %v599 = vmul.f32 %v493, %v590
    %v600 = vmul.f32 %v497, %v590
    %v601 = vmul.f32 %v501, %v590
    %v602 = vmul.f32 %v505, %v590
    %v603 = vmul.f32 %v509, %v590
    %v604 = vmul.f32 %v513, %v590
    %v605 = vmul.f32 %v517, %v590
    %v606 = vmul.f32 %v521, %v590
    %v607 = vmul.f32 %v525, %v590
    %v608 = vmul.f32 %v529, %v590
    %v609 = vmul.f32 %v533, %v590
    %v610 = vmul.f32 %v537, %v590
    %v611 = vmul.f32 %v541, %v590
    %v612 = vmul.f32 %v545, %v590
    %v613 = vmul.f32 %v549, %v590
    %v614 = vmul.f32 %v553, %v590
    %v615 = vmul.f32 %v557, %v590
    %v616 = vmul.f32 %v561, %v590
    %v617 = vmul.f32 %v565, %v590
    %v618 = vmul.f32 %v569, %v590
    %v619 = vmul.f32 %v573, %v590
    %v620 = vmul.f32 %v577, %v590
    %v621 = vmul.f32 %v581, %v590
    %v622 = vmul.f32 %v585, %v590
    %v623 = vadd.f32 %v427, %v591
    %v624 = vadd.f32 %v428, %v592
    %v625 = vadd.f32 %v429, %v593
    %v626 = vadd.f32 %v430, %v594
    %v627 = vadd.f32 %v431, %v595
    %v628 = vadd.f32 %v432, %v596
    %v629 = vadd.f32 %v433, %v597
    %v630 = vadd.f32 %v434, %v598
    %v631 = vadd.f32 %v435, %v599
    %v632 = vadd.f32 %v436, %v600
    %v633 = vadd.f32 %v437, %v601
    %v634 = vadd.f32 %v438, %v602
    %v635 = vadd.f32 %v439, %v603
    %v636 = vadd.f32 %v440, %v604
    %v637 = vadd.f32 %v441, %v605
    %v638 = vadd.f32 %v442, %v606
    %v639 = vadd.f32 %v443, %v607
    %v640 = vadd.f32 %v444, %v608
    %v641 = vadd.f32 %v445, %v609
    %v642 = vadd.f32 %v446, %v610
    %v643 = vadd.f32 %v447, %v611
    %v644 = vadd.f32 %v448, %v612
    %v645 = vadd.f32 %v449, %v613
    %v646 = vadd.f32 %v450, %v614
    %v647 = vadd.f32 %v451, %v615
    %v648 = vadd.f32 %v452, %v616
    %v649 = vadd.f32 %v453, %v617
    %v650 = vadd.f32 %v454, %v618
    %v651 = vadd.f32 %v455, %v619
    %v652 = vadd.f32 %v456, %v620
    %v653 = vadd.f32 %v457, %v621
    %v654 = vadd.f32 %v458, %v622
    %v655 = vld [vmem:[%s2] ss:$0 sm:$0xff]
    %v656 = vadd.f32 %v623, %v655
    %v657 = vadd.f32 %v624, %v655
    %v658 = vadd.f32 %v625, %v655
    %v659 = vadd.f32 %v626, %v655
    %v660 = vadd.f32 %v627, %v655
    %v661 = vadd.f32 %v628, %v655
    %v662 = vadd.f32 %v629, %v655
    %v663 = vadd.f32 %v630, %v655
    %v664 = vadd.f32 %v631, %v655
    %v665 = vadd.f32 %v632, %v655
    %v666 = vadd.f32 %v633, %v655
    %v667 = vadd.f32 %v634, %v655
    %v668 = vadd.f32 %v635, %v655
    %v669 = vadd.f32 %v636, %v655
    %v670 = vadd.f32 %v637, %v655
    %v671 = vadd.f32 %v638, %v655
    %v672 = vadd.f32 %v639, %v655
    %v673 = vadd.f32 %v640, %v655
    %v674 = vadd.f32 %v641, %v655
    %v675 = vadd.f32 %v642, %v655
    %v676 = vadd.f32 %v643, %v655
    %v677 = vadd.f32 %v644, %v655
    %v678 = vadd.f32 %v645, %v655
    %v679 = vadd.f32 %v646, %v655
    %v680 = vadd.f32 %v647, %v655
    %v681 = vadd.f32 %v648, %v655
    %v682 = vadd.f32 %v649, %v655
    %v683 = vadd.f32 %v650, %v655
    %v684 = vadd.f32 %v651, %v655
    %v685 = vadd.f32 %v652, %v655
    %v686 = vadd.f32 %v653, %v655
    %v687 = vadd.f32 %v654, %v655
    %v688 = vmax.f32 %v656, 0.0
    %v689 = vmax.f32 %v657, 0.0
    %v690 = vmax.f32 %v658, 0.0
    %v691 = vmax.f32 %v659, 0.0
    %v692 = vmax.f32 %v660, 0.0
    %v693 = vmax.f32 %v661, 0.0
    %v694 = vmax.f32 %v662, 0.0
    %v695 = vmax.f32 %v663, 0.0
    %v696 = vmax.f32 %v664, 0.0
    %v697 = vmax.f32 %v665, 0.0
    %v698 = vmax.f32 %v666, 0.0
    %v699 = vmax.f32 %v667, 0.0
    %v700 = vmax.f32 %v668, 0.0
    %v701 = vmax.f32 %v669, 0.0
    %v702 = vmax.f32 %v670, 0.0
    %v703 = vmax.f32 %v671, 0.0
    %v704 = vmax.f32 %v672, 0.0
    %v705 = vmax.f32 %v673, 0.0
    %v706 = vmax.f32 %v674, 0.0
    %v707 = vmax.f32 %v675, 0.0
    %v708 = vmax.f32 %v676, 0.0
    %v709 = vmax.f32 %v677, 0.0
    %v710 = vmax.f32 %v678, 0.0
    %v711 = vmax.f32 %v679, 0.0
    %v712 = vmax.f32 %v680, 0.0
    %v713 = vmax.f32 %v681, 0.0
    %v714 = vmax.f32 %v682, 0.0
    %v715 = vmax.f32 %v683, 0.0
    %v716 = vmax.f32 %v684, 0.0
    %v717 = vmax.f32 %v685, 0.0
    %v718 = vmax.f32 %v686, 0.0
    %v719 = vmax.f32 %v687, 0.0
    %v720 = vld [vmem:[#allocation2 + $0x4] sm:$0xf]
    %v721 = vld [vmem:[#allocation2 + $0x8] sm:$0xf]
    %v722 = vld [vmem:[#allocation2 + $0xc] sm:$0xf]
    %v723 = vld [vmem:[#allocation2 + $0x10] sm:$0xf]
    %v724 = vld [vmem:[#allocation2 + $0x14] sm:$0xf]
    %v725 = vld [vmem:[#allocation2 + $0x18] sm:$0xf]
    %v726 = vld [vmem:[#allocation2 + $0x1c] sm:$0xf]
    %v727 = vld [vmem:[#allocation2 + $0x20] sm:$0xf]
    %v728 = vld [vmem:[#allocation2 + $0x24] sm:$0xf]
    %v729 = vld [vmem:[#allocation2 + $0x28] sm:$0xf]
    %v730 = vld [vmem:[#allocation2 + $0x2c] sm:$0xf]
    %v731 = vld [vmem:[#allocation2 + $0x30] sm:$0xf]
    %v732 = vld [vmem:[#allocation2 + $0x34] sm:$0xf]
    %v733 = vld [vmem:[#allocation2 + $0x38] sm:$0xf]
    %v734 = vld [vmem:[#allocation2 + $0x3c] sm:$0xf]
    %v735 = vld [vmem:[#allocation2 + $0x40] sm:$0xf]
    %v736 = vunpack.c.l.bf16 %v720
    %v737 = vunpack.c.l.bf16 %v721
    %v738 = vunpack.c.l.bf16 %v722
    %v739 = vunpack.c.l.bf16 %v723
    %v740 = vunpack.c.l.bf16 %v724
    %v741 = vunpack.c.l.bf16 %v725
    %v742 = vunpack.c.l.bf16 %v726
    %v743 = vunpack.c.l.bf16 %v727
    %v744 = vunpack.c.l.bf16 %v728
    %v745 = vunpack.c.l.bf16 %v729
    %v746 = vunpack.c.l.bf16 %v730
    %v747 = vunpack.c.l.bf16 %v731
    %v748 = vunpack.c.l.bf16 %v732
    %v749 = vunpack.c.l.bf16 %v733
    %v750 = vunpack.c.l.bf16 %v734
    %v751 = vunpack.c.l.bf16 %v735
    %v752 = vld [vmem:[%s2 + $0x1] ss:$0 sm:$0xff]
    %753 = vmatprep.subr.mxu0 0.0
    %754 = vmatpush1.msra.mxu0 %v736
    %755 = vmatprep.subr.mxu0 0.0
    %756 = vmatpush1.msra.mxu0 %v737
    %757 = vmatprep.subr.mxu0 0.0
    %758 = vmatpush1.msra.mxu0 %v738
    %759 = vmatprep.subr.mxu0 0.0
    %760 = vmatpush1.msra.mxu0 %v739
    %761 = vmatprep.subr.mxu0 0.0
    %762 = vmatpush1.msra.mxu0 %v740
    %763 = vmatprep.subr.mxu0 0.0
    %764 = vmatpush1.msra.mxu0 %v741
    %765 = vmatprep.subr.mxu0 0.0
    %766 = vmatpush1.msra.mxu0 %v742
    %767 = vmatprep.subr.mxu0 0.0
    %768 = vmatpush1.msra.mxu0 %v743
    %769 = vmatprep.subr.mxu0 0.0
    %770 = vmatpush1.msra.mxu0 %v744
    %771 = vmatprep.subr.mxu0 0.0
    %772 = vmatpush1.msra.mxu0 %v745
    %773 = vmatprep.subr.mxu0 0.0
    %774 = vmatpush1.msra.mxu0 %v746
    %775 = vmatprep.subr.mxu0 0.0
    %776 = vmatpush1.msra.mxu0 %v747
    %777 = vmatprep.subr.mxu0 0.0
    %778 = vmatpush1.msra.mxu0 %v748
    %779 = vmatprep.subr.mxu0 0.0
    %780 = vmatpush1.msra.mxu0 %v749
    %781 = vmatprep.subr.mxu0 0.0
    %782 = vmatpush1.msra.mxu0 %v750
    %783 = vmatprep.subr.mxu0 0.0
    %784 = vmatpush1.msra.mxu0 %v751
    %785 = vmatprep.subr.mxu0 0.0
    %786 = vmatpush1.msra.mxu0 0.0
    %787 = vmatprep.subr.mxu0 0.0
    %788 = vmatpush1.msra.mxu0 0.0
    %789 = vmatprep.subr.mxu0 0.0
    %790 = vmatpush1.msra.mxu0 0.0
    %791 = vmatprep.subr.mxu0 0.0
    %792 = vmatpush1.msra.mxu0 0.0
    %793 = vmatprep.subr.mxu0 0.0
    %794 = vmatpush1.msra.mxu0 0.0
    %795 = vmatprep.subr.mxu0 0.0
    %796 = vmatpush1.msra.mxu0 0.0
    %797 = vmatprep.subr.mxu0 0.0
    %798 = vmatpush1.msra.mxu0 0.0
    %799 = vmatprep.subr.mxu0 0.0
    %800 = vmatpush1.msra.mxu0 0.0
    %801 = vmatprep.subr.mxu0 0.0
    %802 = vmatpush1.msra.mxu0 0.0
    %803 = vmatprep.subr.mxu0 0.0
    %804 = vmatpush1.msra.mxu0 0.0
    %805 = vmatprep.subr.mxu0 0.0
    %806 = vmatpush1.msra.mxu0 0.0
    %807 = vmatprep.subr.mxu0 0.0
    %808 = vmatpush1.msra.mxu0 0.0
    %809 = vmatprep.subr.mxu0 0.0
    %810 = vmatpush1.msra.mxu0 0.0
    %811 = vmatprep.subr.mxu0 0.0
    %812 = vmatpush1.msra.mxu0 0.0
    %813 = vmatprep.subr.mxu0 0.0
    %814 = vmatpush1.msra.mxu0 0.0
    %815 = vmatprep.subr.mxu0 0.0
    %816 = vmatpush1.msra.mxu0 0.0
    %817 = vmatprep.mubr.f32.mxu0 0.0
    %818 = vmatmul.mubr.f32.gmra.mrb[0].mxu0 %v688
    %v819 = vpop.f32.mrb[0].mxu0
    %v820 = vadd.f32 %v752, %v819
    %v821 = vpop.f32.mrb[0].mxu0
    %822 = vmatprep.mubr.f32.mxu0 0.0
    %823 = vmatmul.mubr.f32.gmra.mrb[0].mxu0 %v689
    %v824 = vpop.f32.mrb[0].mxu0
    %v825 = vadd.f32 %v752, %v824
    %v826 = vpop.f32.mrb[0].mxu0
    %827 = vmatprep.mubr.f32.mxu0 0.0
    %828 = vmatmul.mubr.f32.gmra.mrb[0].mxu0 %v690
    %v829 = vpop.f32.mrb[0].mxu0
    %v830 = vadd.f32 %v752, %v829
    %v831 = vpop.f32.mrb[0].mxu0
    %832 = vmatprep.mubr.f32.mxu0 0.0
    %833 = vmatmul.mubr.f32.gmra.mrb[0].mxu0 %v691
    %v834 = vpop.f32.mrb[0].mxu0
    %v835 = vadd.f32 %v752, %v834
    %v836 = vpop.f32.mrb[0].mxu0
    %837 = vmatprep.mubr.f32.mxu0 0.0
    %838 = vmatmul.mubr.f32.gmra.mrb[0].mxu0 %v692
    %v839 = vpop.f32.mrb[0].mxu0
    %v840 = vadd.f32 %v752, %v839
    %v841 = vpop.f32.mrb[0].mxu0
    %842 = vmatprep.mubr.f32.mxu0 0.0
    %843 = vmatmul.mubr.f32.gmra.mrb[0].mxu0 %v693
    %v844 = vpop.f32.mrb[0].mxu0
    %v845 = vadd.f32 %v752, %v844
    %v846 = vpop.f32.mrb[0].mxu0
    %847 = vmatprep.mubr.f32.mxu0 0.0
    %848 = vmatmul.mubr.f32.gmra.mrb[0].mxu0 %v694
    %v849 = vpop.f32.mrb[0].mxu0
    %v850 = vadd.f32 %v752, %v849
    %v851 = vpop.f32.mrb[0].mxu0
    %852 = vmatprep.mubr.f32.mxu0 0.0
    %853 = vmatmul.mubr.f32.gmra.mrb[0].mxu0 %v695
    %v854 = vpop.f32.mrb[0].mxu0
    %v855 = vadd.f32 %v752, %v854
    %v856 = vpop.f32.mrb[0].mxu0
    %857 = vmatprep.mubr.f32.mxu0 0.0
    %858 = vmatmul.mubr.f32.gmra.mrb[0].mxu0 %v696
    %v859 = vpop.f32.mrb[0].mxu0
    %v860 = vadd.f32 %v752, %v859
    %v861 = vpop.f32.mrb[0].mxu0
    %862 = vmatprep.mubr.f32.mxu0 0.0
    %863 = vmatmul.mubr.f32.gmra.mrb[0].mxu0 %v697
    %v864 = vpop.f32.mrb[0].mxu0
    %v865 = vadd.f32 %v752, %v864
    %v866 = vpop.f32.mrb[0].mxu0
    %867 = vmatprep.mubr.f32.mxu0 0.0
    %868 = vmatmul.mubr.f32.gmra.mrb[0].mxu0 %v698
    %v869 = vpop.f32.mrb[0].mxu0
    %v870 = vadd.f32 %v752, %v869
    %v871 = vpop.f32.mrb[0].mxu0
    %872 = vmatprep.mubr.f32.mxu0 0.0
    %873 = vmatmul.mubr.f32.gmra.mrb[0].mxu0 %v699
    %v874 = vpop.f32.mrb[0].mxu0
    %v875 = vadd.f32 %v752, %v874
    %v876 = vpop.f32.mrb[0].mxu0
    %877 = vmatprep.mubr.f32.mxu0 0.0
    %878 = vmatmul.mubr.f32.gmra.mrb[0].mxu0 %v700
    %v879 = vpop.f32.mrb[0].mxu0
    %v880 = vadd.f32 %v752, %v879
    %v881 = vpop.f32.mrb[0].mxu0
    %882 = vmatprep.mubr.f32.mxu0 0.0
    %883 = vmatmul.mubr.f32.gmra.mrb[0].mxu0 %v701
    %v884 = vpop.f32.mrb[0].mxu0
    %v885 = vadd.f32 %v752, %v884
    %v886 = vpop.f32.mrb[0].mxu0
    %887 = vmatprep.mubr.f32.mxu0 0.0
    %888 = vmatmul.mubr.f32.gmra.mrb[0].mxu0 %v702
    %v889 = vpop.f32.mrb[0].mxu0
    %v890 = vadd.f32 %v752, %v889
    %v891 = vpop.f32.mrb[0].mxu0
    %892 = vmatprep.mubr.f32.mxu0 0.0
    %893 = vmatmul.mubr.f32.gmra.mrb[0].mxu0 %v703
    %v894 = vpop.f32.mrb[0].mxu0
    %v895 = vadd.f32 %v752, %v894
    %v896 = vpop.f32.mrb[0].mxu0
    %897 = vmatprep.mubr.f32.mxu0 0.0
    %898 = vmatmul.mubr.f32.gmra.mrb[0].mxu0 %v704
    %v899 = vpop.f32.mrb[0].mxu0
    %v900 = vadd.f32 %v752, %v899
    %v901 = vpop.f32.mrb[0].mxu0
    %902 = vmatprep.mubr.f32.mxu0 0.0
    %903 = vmatmul.mubr.f32.gmra.mrb[0].mxu0 %v705
    %v904 = vpop.f32.mrb[0].mxu0
    %v905 = vadd.f32 %v752, %v904
    %v906 = vpop.f32.mrb[0].mxu0
    %907 = vmatprep.mubr.f32.mxu0 0.0
    %908 = vmatmul.mubr.f32.gmra.mrb[0].mxu0 %v706
    %v909 = vpop.f32.mrb[0].mxu0
    %v910 = vadd.f32 %v752, %v909
    %v911 = vpop.f32.mrb[0].mxu0
    %912 = vmatprep.mubr.f32.mxu0 0.0
    %913 = vmatmul.mubr.f32.gmra.mrb[0].mxu0 %v707
    %v914 = vpop.f32.mrb[0].mxu0
    %v915 = vadd.f32 %v752, %v914
    %v916 = vpop.f32.mrb[0].mxu0
    %917 = vmatprep.mubr.f32.mxu0 0.0
    %918 = vmatmul.mubr.f32.gmra.mrb[0].mxu0 %v708
    %v919 = vpop.f32.mrb[0].mxu0
    %v920 = vadd.f32 %v752, %v919
    %v921 = vpop.f32.mrb[0].mxu0
    %922 = vmatprep.mubr.f32.mxu0 0.0
    %923 = vmatmul.mubr.f32.gmra.mrb[0].mxu0 %v709
    %v924 = vpop.f32.mrb[0].mxu0
    %v925 = vadd.f32 %v752, %v924
    %v926 = vpop.f32.mrb[0].mxu0
    %927 = vmatprep.mubr.f32.mxu0 0.0
    %928 = vmatmul.mubr.f32.gmra.mrb[0].mxu0 %v710
    %v929 = vpop.f32.mrb[0].mxu0
    %v930 = vadd.f32 %v752, %v929
    %v931 = vpop.f32.mrb[0].mxu0
    %932 = vmatprep.mubr.f32.mxu0 0.0
    %933 = vmatmul.mubr.f32.gmra.mrb[0].mxu0 %v711
    %v934 = vpop.f32.mrb[0].mxu0
    %v935 = vadd.f32 %v752, %v934
    %v936 = vpop.f32.mrb[0].mxu0
    %937 = vmatprep.mubr.f32.mxu0 0.0
    %938 = vmatmul.mubr.f32.gmra.mrb[0].mxu0 %v712
    %v939 = vpop.f32.mrb[0].mxu0
    %v940 = vadd.f32 %v752, %v939
    %v941 = vpop.f32.mrb[0].mxu0
    %942 = vmatprep.mubr.f32.mxu0 0.0
    %943 = vmatmul.mubr.f32.gmra.mrb[0].mxu0 %v713
    %v944 = vpop.f32.mrb[0].mxu0
    %v945 = vadd.f32 %v752, %v944
    %v946 = vpop.f32.mrb[0].mxu0
    %947 = vmatprep.mubr.f32.mxu0 0.0
    %948 = vmatmul.mubr.f32.gmra.mrb[0].mxu0 %v714
    %v949 = vpop.f32.mrb[0].mxu0
    %v950 = vadd.f32 %v752, %v949
    %v951 = vpop.f32.mrb[0].mxu0
    %952 = vmatprep.mubr.f32.mxu0 0.0
    %953 = vmatmul.mubr.f32.gmra.mrb[0].mxu0 %v715
    %v954 = vpop.f32.mrb[0].mxu0
    %v955 = vadd.f32 %v752, %v954
    %v956 = vpop.f32.mrb[0].mxu0
    %957 = vmatprep.mubr.f32.mxu0 0.0
    %958 = vmatmul.mubr.f32.gmra.mrb[0].mxu0 %v716
    %v959 = vpop.f32.mrb[0].mxu0
    %v960 = vadd.f32 %v752, %v959
    %v961 = vpop.f32.mrb[0].mxu0
    %962 = vmatprep.mubr.f32.mxu0 0.0
    %963 = vmatmul.mubr.f32.gmra.mrb[0].mxu0 %v717
    %v964 = vpop.f32.mrb[0].mxu0
    %v965 = vadd.f32 %v752, %v964
    %v966 = vpop.f32.mrb[0].mxu0
    %967 = vmatprep.mubr.f32.mxu0 0.0
    %968 = vmatmul.mubr.f32.gmra.mrb[0].mxu0 %v718
    %v969 = vpop.f32.mrb[0].mxu0
    %v970 = vadd.f32 %v752, %v969
    %v971 = vpop.f32.mrb[0].mxu0
    %972 = vmatprep.mubr.f32.mxu0 0.0
    %973 = vmatmul.mubr.f32.gmra.mrb[0].mxu0 %v719
    %v974 = vpop.f32.mrb[0].mxu0
    %v975 = vadd.f32 %v752, %v974
    %v976 = vpop.f32.mrb[0].mxu0
    %977 = vdwg.mxu0
    %v978 = vmax.f32 %v820, 0.0
    %v979 = vmax.f32 %v825, 0.0
    %v980 = vmax.f32 %v830, 0.0
    %v981 = vmax.f32 %v835, 0.0
    %v982 = vmax.f32 %v840, 0.0
    %v983 = vmax.f32 %v845, 0.0
    %v984 = vmax.f32 %v850, 0.0
    %v985 = vmax.f32 %v855, 0.0
    %v986 = vmax.f32 %v860, 0.0
    %v987 = vmax.f32 %v865, 0.0
    %v988 = vmax.f32 %v870, 0.0
    %v989 = vmax.f32 %v875, 0.0
    %v990 = vmax.f32 %v880, 0.0
    %v991 = vmax.f32 %v885, 0.0
    %v992 = vmax.f32 %v890, 0.0
    %v993 = vmax.f32 %v895, 0.0
    %v994 = vmax.f32 %v900, 0.0
    %v995 = vmax.f32 %v905, 0.0
    %v996 = vmax.f32 %v910, 0.0
    %v997 = vmax.f32 %v915, 0.0
    %v998 = vmax.f32 %v920, 0.0
    %v999 = vmax.f32 %v925, 0.0
    %v1000 = vmax.f32 %v930, 0.0
    %v1001 = vmax.f32 %v935, 0.0
    %v1002 = vmax.f32 %v940, 0.0
    %v1003 = vmax.f32 %v945, 0.0
    %v1004 = vmax.f32 %v950, 0.0
    %v1005 = vmax.f32 %v955, 0.0
    %v1006 = vmax.f32 %v960, 0.0
    %v1007 = vmax.f32 %v965, 0.0
    %v1008 = vmax.f32 %v970, 0.0
    %v1009 = vmax.f32 %v975, 0.0
    %1010 = vst [vmem:[#allocation5] sm:$0xff] %v978
    %1011 = vst [vmem:[#allocation5 + $0x8] sm:$0xff] %v979
    %1012 = vst [vmem:[#allocation5 + $0x10] sm:$0xff] %v980
    %1013 = vst [vmem:[#allocation5 + $0x18] sm:$0xff] %v981
    %1014 = vst [vmem:[#allocation5 + $0x20] sm:$0xff] %v982
    %1015 = vst [vmem:[#allocation5 + $0x28] sm:$0xff] %v983
    %1016 = vst [vmem:[#allocation5 + $0x30] sm:$0xff] %v984
    %1017 = vst [vmem:[#allocation5 + $0x38] sm:$0xff] %v985
    %1018 = vst [vmem:[#allocation5 + $0x40] sm:$0xff] %v986
    %1019 = vst [vmem:[#allocation5 + $0x48] sm:$0xff] %v987
    %1020 = vst [vmem:[#allocation5 + $0x50] sm:$0xff] %v988
    %1021 = vst [vmem:[#allocation5 + $0x58] sm:$0xff] %v989
    %1022 = vst [vmem:[#allocation5 + $0x60] sm:$0xff] %v990
    %1023 = vst [vmem:[#allocation5 + $0x68] sm:$0xff] %v991
    %1024 = vst [vmem:[#allocation5 + $0x70] sm:$0xff] %v992
    %1025 = vst [vmem:[#allocation5 + $0x78] sm:$0xff] %v993
    %s1026 = scalar_lea.vmem [#allocation5], 128
    %1027 = vst [vmem:[%s1026] sm:$0xff] %v994
    %1028 = vst [vmem:[%s1026 + $0x8] sm:$0xff] %v995
    %1029 = vst [vmem:[%s1026 + $0x10] sm:$0xff] %v996
    %1030 = vst [vmem:[%s1026 + $0x18] sm:$0xff] %v997
    %1031 = vst [vmem:[%s1026 + $0x20] sm:$0xff] %v998
    %1032 = vst [vmem:[%s1026 + $0x28] sm:$0xff] %v999
    %1033 = vst [vmem:[%s1026 + $0x30] sm:$0xff] %v1000
    %1034 = vst [vmem:[%s1026 + $0x38] sm:$0xff] %v1001
    %1035 = vst [vmem:[%s1026 + $0x40] sm:$0xff] %v1002
    %1036 = vst [vmem:[%s1026 + $0x48] sm:$0xff] %v1003
    %1037 = vst [vmem:[%s1026 + $0x50] sm:$0xff] %v1004
    %1038 = vst [vmem:[%s1026 + $0x58] sm:$0xff] %v1005
    %1039 = vst [vmem:[%s1026 + $0x60] sm:$0xff] %v1006
    %1040 = vst [vmem:[%s1026 + $0x68] sm:$0xff] %v1007
    %1041 = vst [vmem:[%s1026 + $0x70] sm:$0xff] %v1008
    %1042 = vst [vmem:[%s1026 + $0x78] sm:$0xff] %v1009
    %v1043 = vld [vmem:[#allocation2 + $0x44] sm:$0xf]
    %v1044 = vld [vmem:[#allocation2 + $0x48] sm:$0xf]
    %v1045 = vld [vmem:[#allocation2 + $0x4c] sm:$0xf]
    %v1046 = vld [vmem:[#allocation2 + $0x50] sm:$0xf]
    %v1047 = vld [vmem:[#allocation2 + $0x54] sm:$0xf]
    %v1048 = vld [vmem:[#allocation2 + $0x58] sm:$0xf]
    %v1049 = vld [vmem:[#allocation2 + $0x5c] sm:$0xf]
    %v1050 = vld [vmem:[#allocation2 + $0x60] sm:$0xf]
    %v1051 = vld [vmem:[#allocation2 + $0x64] sm:$0xf]
    %v1052 = vld [vmem:[#allocation2 + $0x68] sm:$0xf]
    %v1053 = vld [vmem:[#allocation2 + $0x6c] sm:$0xf]
    %v1054 = vld [vmem:[#allocation2 + $0x70] sm:$0xf]
    %v1055 = vld [vmem:[#allocation2 + $0x74] sm:$0xf]
    %v1056 = vld [vmem:[#allocation2 + $0x78] sm:$0xf]
    %v1057 = vld [vmem:[#allocation2 + $0x7c] sm:$0xf]
    %v1058 = vld [vmem:[#allocation2 + $0x80] sm:$0xf]
    %v1059 = vunpack.c.l.bf16 %v1043
    %v1060 = vunpack.c.l.bf16 %v1044
    %v1061 = vunpack.c.l.bf16 %v1045
    %v1062 = vunpack.c.l.bf16 %v1046
    %v1063 = vunpack.c.l.bf16 %v1047
    %v1064 = vunpack.c.l.bf16 %v1048
    %v1065 = vunpack.c.l.bf16 %v1049
    %v1066 = vunpack.c.l.bf16 %v1050
    %v1067 = vunpack.c.l.bf16 %v1051
    %v1068 = vunpack.c.l.bf16 %v1052
    %v1069 = vunpack.c.l.bf16 %v1053
    %v1070 = vunpack.c.l.bf16 %v1054
    %v1071 = vunpack.c.l.bf16 %v1055
    %v1072 = vunpack.c.l.bf16 %v1056
    %v1073 = vunpack.c.l.bf16 %v1057
    %v1074 = vunpack.c.l.bf16 %v1058
    %v1075 = vld [vmem:[%s2 + $0x2] ss:$0 sm:$0xff]
    %1076 = vmatprep.subr.mxu0 0.0
    %1077 = vmatpush1.msra.mxu0 %v1059
    %1078 = vmatprep.subr.mxu0 0.0
    %1079 = vmatpush1.msra.mxu0 %v1060
    %1080 = vmatprep.subr.mxu0 0.0
    %1081 = vmatpush1.msra.mxu0 %v1061
    %1082 = vmatprep.subr.mxu0 0.0
    %1083 = vmatpush1.msra.mxu0 %v1062
    %1084 = vmatprep.subr.mxu0 0.0
    %1085 = vmatpush1.msra.mxu0 %v1063
    %1086 = vmatprep.subr.mxu0 0.0
    %1087 = vmatpush1.msra.mxu0 %v1064
    %1088 = vmatprep.subr.mxu0 0.0
    %1089 = vmatpush1.msra.mxu0 %v1065
    %1090 = vmatprep.subr.mxu0 0.0
    %1091 = vmatpush1.msra.mxu0 %v1066
    %1092 = vmatprep.subr.mxu0 0.0
    %1093 = vmatpush1.msra.mxu0 %v1067
    %1094 = vmatprep.subr.mxu0 0.0
    %1095 = vmatpush1.msra.mxu0 %v1068
    %1096 = vmatprep.subr.mxu0 0.0
    %1097 = vmatpush1.msra.mxu0 %v1069
    %1098 = vmatprep.subr.mxu0 0.0
    %1099 = vmatpush1.msra.mxu0 %v1070
    %1100 = vmatprep.subr.mxu0 0.0
    %1101 = vmatpush1.msra.mxu0 %v1071
    %1102 = vmatprep.subr.mxu0 0.0
    %1103 = vmatpush1.msra.mxu0 %v1072
    %1104 = vmatprep.subr.mxu0 0.0
    %1105 = vmatpush1.msra.mxu0 %v1073
    %1106 = vmatprep.subr.mxu0 0.0
    %1107 = vmatpush1.msra.mxu0 %v1074
    %1108 = vmatprep.subr.mxu0 0.0
    %1109 = vmatpush1.msra.mxu0 0.0
    %1110 = vmatprep.subr.mxu0 0.0
    %1111 = vmatpush1.msra.mxu0 0.0
    %1112 = vmatprep.subr.mxu0 0.0
    %1113 = vmatpush1.msra.mxu0 0.0
    %1114 = vmatprep.subr.mxu0 0.0
    %1115 = vmatpush1.msra.mxu0 0.0
    %1116 = vmatprep.subr.mxu0 0.0
    %1117 = vmatpush1.msra.mxu0 0.0
    %1118 = vmatprep.subr.mxu0 0.0
    %1119 = vmatpush1.msra.mxu0 0.0
    %1120 = vmatprep.subr.mxu0 0.0
    %1121 = vmatpush1.msra.mxu0 0.0
    %1122 = vmatprep.subr.mxu0 0.0
    %1123 = vmatpush1.msra.mxu0 0.0
    %1124 = vmatprep.subr.mxu0 0.0
    %1125 = vmatpush1.msra.mxu0 0.0
    %1126 = vmatprep.subr.mxu0 0.0
    %1127 = vmatpush1.msra.mxu0 0.0
    %1128 = vmatprep.subr.mxu0 0.0
    %1129 = vmatpush1.msra.mxu0 0.0
    %1130 = vmatprep.subr.mxu0 0.0
    %1131 = vmatpush1.msra.mxu0 0.0
    %1132 = vmatprep.subr.mxu0 0.0
    %1133 = vmatpush1.msra.mxu0 0.0
    %1134 = vmatprep.subr.mxu0 0.0
    %1135 = vmatpush1.msra.mxu0 0.0
    %1136 = vmatprep.subr.mxu0 0.0
    %1137 = vmatpush1.msra.mxu0 0.0
    %1138 = vmatprep.subr.mxu0 0.0
    %1139 = vmatpush1.msra.mxu0 0.0
    %1140 = vmatprep.mubr.f32.mxu0 0.0
    %1141 = vmatmul.mubr.f32.gmra.mrb[0].mxu0 %v978
    %v1142 = vpop.f32.mrb[0].mxu0
    %v1143 = vadd.f32 %v1075, %v1142
    %v1144 = vpop.f32.mrb[0].mxu0
    %1145 = vmatprep.mubr.f32.mxu0 0.0
    %1146 = vmatmul.mubr.f32.gmra.mrb[0].mxu0 %v979
    %v1147 = vpop.f32.mrb[0].mxu0
    %v1148 = vadd.f32 %v1075, %v1147
    %v1149 = vpop.f32.mrb[0].mxu0
    %1150 = vmatprep.mubr.f32.mxu0 0.0
    %1151 = vmatmul.mubr.f32.gmra.mrb[0].mxu0 %v980
    %v1152 = vpop.f32.mrb[0].mxu0
    %v1153 = vadd.f32 %v1075, %v1152
    %v1154 = vpop.f32.mrb[0].mxu0
    %1155 = vmatprep.mubr.f32.mxu0 0.0
    %1156 = vmatmul.mubr.f32.gmra.mrb[0].mxu0 %v981
    %v1157 = vpop.f32.mrb[0].mxu0
    %v1158 = vadd.f32 %v1075, %v1157
    %v1159 = vpop.f32.mrb[0].mxu0
    %1160 = vmatprep.mubr.f32.mxu0 0.0
    %1161 = vmatmul.mubr.f32.gmra.mrb[0].mxu0 %v982
    %v1162 = vpop.f32.mrb[0].mxu0
    %v1163 = vadd.f32 %v1075, %v1162
    %v1164 = vpop.f32.mrb[0].mxu0
    %1165 = vmatprep.mubr.f32.mxu0 0.0
    %1166 = vmatmul.mubr.f32.gmra.mrb[0].mxu0 %v983
    %v1167 = vpop.f32.mrb[0].mxu0
    %v1168 = vadd.f32 %v1075, %v1167
    %v1169 = vpop.f32.mrb[0].mxu0
    %1170 = vmatprep.mubr.f32.mxu0 0.0
    %1171 = vmatmul.mubr.f32.gmra.mrb[0].mxu0 %v984
    %v1172 = vpop.f32.mrb[0].mxu0
    %v1173 = vadd.f32 %v1075, %v1172
    %v1174 = vpop.f32.mrb[0].mxu0
    %1175 = vmatprep.mubr.f32.mxu0 0.0
    %1176 = vmatmul.mubr.f32.gmra.mrb[0].mxu0 %v985
    %v1177 = vpop.f32.mrb[0].mxu0
    %v1178 = vadd.f32 %v1075, %v1177
    %v1179 = vpop.f32.mrb[0].mxu0
    %1180 = vmatprep.mubr.f32.mxu0 0.0
    %1181 = vmatmul.mubr.f32.gmra.mrb[0].mxu0 %v986
    %v1182 = vpop.f32.mrb[0].mxu0
    %v1183 = vadd.f32 %v1075, %v1182
    %v1184 = vpop.f32.mrb[0].mxu0
    %1185 = vmatprep.mubr.f32.mxu0 0.0
    %1186 = vmatmul.mubr.f32.gmra.mrb[0].mxu0 %v987
    %v1187 = vpop.f32.mrb[0].mxu0
    %v1188 = vadd.f32 %v1075, %v1187
    %v1189 = vpop.f32.mrb[0].mxu0
    %1190 = vmatprep.mubr.f32.mxu0 0.0
    %1191 = vmatmul.mubr.f32.gmra.mrb[0].mxu0 %v988
    %v1192 = vpop.f32.mrb[0].mxu0
    %v1193 = vadd.f32 %v1075, %v1192
    %v1194 = vpop.f32.mrb[0].mxu0
    %1195 = vmatprep.mubr.f32.mxu0 0.0
    %1196 = vmatmul.mubr.f32.gmra.mrb[0].mxu0 %v989
    %v1197 = vpop.f32.mrb[0].mxu0
    %v1198 = vadd.f32 %v1075, %v1197
    %v1199 = vpop.f32.mrb[0].mxu0
    %1200 = vmatprep.mubr.f32.mxu0 0.0
    %1201 = vmatmul.mubr.f32.gmra.mrb[0].mxu0 %v990
    %v1202 = vpop.f32.mrb[0].mxu0
    %v1203 = vadd.f32 %v1075, %v1202
    %v1204 = vpop.f32.mrb[0].mxu0
    %1205 = vmatprep.mubr.f32.mxu0 0.0
    %1206 = vmatmul.mubr.f32.gmra.mrb[0].mxu0 %v991
    %v1207 = vpop.f32.mrb[0].mxu0
    %v1208 = vadd.f32 %v1075, %v1207
    %v1209 = vpop.f32.mrb[0].mxu0
    %1210 = vmatprep.mubr.f32.mxu0 0.0
    %1211 = vmatmul.mubr.f32.gmra.mrb[0].mxu0 %v992
    %v1212 = vpop.f32.mrb[0].mxu0
    %v1213 = vadd.f32 %v1075, %v1212
    %v1214 = vpop.f32.mrb[0].mxu0
    %1215 = vmatprep.mubr.f32.mxu0 0.0
    %1216 = vmatmul.mubr.f32.gmra.mrb[0].mxu0 %v993
    %v1217 = vpop.f32.mrb[0].mxu0
    %v1218 = vadd.f32 %v1075, %v1217
    %v1219 = vpop.f32.mrb[0].mxu0
    %1220 = vmatprep.mubr.f32.mxu0 0.0
    %1221 = vmatmul.mubr.f32.gmra.mrb[0].mxu0 %v994
    %v1222 = vpop.f32.mrb[0].mxu0
    %v1223 = vadd.f32 %v1075, %v1222
    %v1224 = vpop.f32.mrb[0].mxu0
    %1225 = vmatprep.mubr.f32.mxu0 0.0
    %1226 = vmatmul.mubr.f32.gmra.mrb[0].mxu0 %v995
    %v1227 = vpop.f32.mrb[0].mxu0
    %v1228 = vadd.f32 %v1075, %v1227
    %v1229 = vpop.f32.mrb[0].mxu0
    %1230 = vmatprep.mubr.f32.mxu0 0.0
    %1231 = vmatmul.mubr.f32.gmra.mrb[0].mxu0 %v996
    %v1232 = vpop.f32.mrb[0].mxu0
    %v1233 = vadd.f32 %v1075, %v1232
    %v1234 = vpop.f32.mrb[0].mxu0
    %1235 = vmatprep.mubr.f32.mxu0 0.0
    %1236 = vmatmul.mubr.f32.gmra.mrb[0].mxu0 %v997
    %v1237 = vpop.f32.mrb[0].mxu0
    %v1238 = vadd.f32 %v1075, %v1237
    %v1239 = vpop.f32.mrb[0].mxu0
    %1240 = vmatprep.mubr.f32.mxu0 0.0
    %1241 = vmatmul.mubr.f32.gmra.mrb[0].mxu0 %v998
    %v1242 = vpop.f32.mrb[0].mxu0
    %v1243 = vadd.f32 %v1075, %v1242
    %v1244 = vpop.f32.mrb[0].mxu0
    %1245 = vmatprep.mubr.f32.mxu0 0.0
    %1246 = vmatmul.mubr.f32.gmra.mrb[0].mxu0 %v999
    %v1247 = vpop.f32.mrb[0].mxu0
    %v1248 = vadd.f32 %v1075, %v1247
    %v1249 = vpop.f32.mrb[0].mxu0
    %1250 = vmatprep.mubr.f32.mxu0 0.0
    %1251 = vmatmul.mubr.f32.gmra.mrb[0].mxu0 %v1000
    %v1252 = vpop.f32.mrb[0].mxu0
    %v1253 = vadd.f32 %v1075, %v1252
    %v1254 = vpop.f32.mrb[0].mxu0
    %1255 = vmatprep.mubr.f32.mxu0 0.0
    %1256 = vmatmul.mubr.f32.gmra.mrb[0].mxu0 %v1001
    %v1257 = vpop.f32.mrb[0].mxu0
    %v1258 = vadd.f32 %v1075, %v1257
    %v1259 = vpop.f32.mrb[0].mxu0
    %1260 = vmatprep.mubr.f32.mxu0 0.0
    %1261 = vmatmul.mubr.f32.gmra.mrb[0].mxu0 %v1002
    %v1262 = vpop.f32.mrb[0].mxu0
    %v1263 = vadd.f32 %v1075, %v1262
    %v1264 = vpop.f32.mrb[0].mxu0
    %1265 = vmatprep.mubr.f32.mxu0 0.0
    %1266 = vmatmul.mubr.f32.gmra.mrb[0].mxu0 %v1003
    %v1267 = vpop.f32.mrb[0].mxu0
    %v1268 = vadd.f32 %v1075, %v1267
    %v1269 = vpop.f32.mrb[0].mxu0
    %1270 = vmatprep.mubr.f32.mxu0 0.0
    %1271 = vmatmul.mubr.f32.gmra.mrb[0].mxu0 %v1004
    %v1272 = vpop.f32.mrb[0].mxu0
    %v1273 = vadd.f32 %v1075, %v1272
    %v1274 = vpop.f32.mrb[0].mxu0
    %1275 = vmatprep.mubr.f32.mxu0 0.0
    %1276 = vmatmul.mubr.f32.gmra.mrb[0].mxu0 %v1005
    %v1277 = vpop.f32.mrb[0].mxu0
    %v1278 = vadd.f32 %v1075, %v1277
    %v1279 = vpop.f32.mrb[0].mxu0
    %1280 = vmatprep.mubr.f32.mxu0 0.0
    %1281 = vmatmul.mubr.f32.gmra.mrb[0].mxu0 %v1006
    %v1282 = vpop.f32.mrb[0].mxu0
    %v1283 = vadd.f32 %v1075, %v1282
    %v1284 = vpop.f32.mrb[0].mxu0
    %1285 = vmatprep.mubr.f32.mxu0 0.0
    %1286 = vmatmul.mubr.f32.gmra.mrb[0].mxu0 %v1007
    %v1287 = vpop.f32.mrb[0].mxu0
    %v1288 = vadd.f32 %v1075, %v1287
    %v1289 = vpop.f32.mrb[0].mxu0
    %1290 = vmatprep.mubr.f32.mxu0 0.0
    %1291 = vmatmul.mubr.f32.gmra.mrb[0].mxu0 %v1008
    %v1292 = vpop.f32.mrb[0].mxu0
    %v1293 = vadd.f32 %v1075, %v1292
    %v1294 = vpop.f32.mrb[0].mxu0
    %1295 = vmatprep.mubr.f32.mxu0 0.0
    %1296 = vmatmul.mubr.f32.gmra.mrb[0].mxu0 %v1009
    %v1297 = vpop.f32.mrb[0].mxu0
    %v1298 = vadd.f32 %v1075, %v1297
    %v1299 = vpop.f32.mrb[0].mxu0
    %1300 = vdwg.mxu0
    %v1301 = vmax.f32 %v1143, 0.0
    %v1302 = vmax.f32 %v1148, 0.0
    %v1303 = vmax.f32 %v1153, 0.0
    %v1304 = vmax.f32 %v1158, 0.0
    %v1305 = vmax.f32 %v1163, 0.0
    %v1306 = vmax.f32 %v1168, 0.0
    %v1307 = vmax.f32 %v1173, 0.0
    %v1308 = vmax.f32 %v1178, 0.0
    %v1309 = vmax.f32 %v1183, 0.0
    %v1310 = vmax.f32 %v1188, 0.0
    %v1311 = vmax.f32 %v1193, 0.0
    %v1312 = vmax.f32 %v1198, 0.0
    %v1313 = vmax.f32 %v1203, 0.0
    %v1314 = vmax.f32 %v1208, 0.0
    %v1315 = vmax.f32 %v1213, 0.0
    %v1316 = vmax.f32 %v1218, 0.0
    %v1317 = vmax.f32 %v1223, 0.0
    %v1318 = vmax.f32 %v1228, 0.0
    %v1319 = vmax.f32 %v1233, 0.0
    %v1320 = vmax.f32 %v1238, 0.0
    %v1321 = vmax.f32 %v1243, 0.0
    %v1322 = vmax.f32 %v1248, 0.0
    %v1323 = vmax.f32 %v1253, 0.0
    %v1324 = vmax.f32 %v1258, 0.0
    %v1325 = vmax.f32 %v1263, 0.0
    %v1326 = vmax.f32 %v1268, 0.0
    %v1327 = vmax.f32 %v1273, 0.0
    %v1328 = vmax.f32 %v1278, 0.0
    %v1329 = vmax.f32 %v1283, 0.0
    %v1330 = vmax.f32 %v1288, 0.0
    %v1331 = vmax.f32 %v1293, 0.0
    %v1332 = vmax.f32 %v1298, 0.0
    %v1333 = vld [vmem:[#allocation2 + $0x84] sm:$0xf]
    %v1334 = vld [vmem:[#allocation2 + $0x88] sm:$0xf]
    %v1335 = vld [vmem:[#allocation2 + $0x8c] sm:$0xf]
    %v1336 = vld [vmem:[#allocation2 + $0x90] sm:$0xf]
    %v1337 = vld [vmem:[#allocation2 + $0x94] sm:$0xf]
    %v1338 = vld [vmem:[#allocation2 + $0x98] sm:$0xf]
    %v1339 = vld [vmem:[#allocation2 + $0x9c] sm:$0xf]
    %v1340 = vld [vmem:[#allocation2 + $0xa0] sm:$0xf]
    %v1341 = vld [vmem:[#allocation2 + $0xa4] sm:$0xf]
    %v1342 = vld [vmem:[#allocation2 + $0xa8] sm:$0xf]
    %v1343 = vld [vmem:[#allocation2 + $0xac] sm:$0xf]
    %v1344 = vld [vmem:[#allocation2 + $0xb0] sm:$0xf]
    %v1345 = vld [vmem:[#allocation2 + $0xb4] sm:$0xf]
    %v1346 = vld [vmem:[#allocation2 + $0xb8] sm:$0xf]
    %v1347 = vld [vmem:[#allocation2 + $0xbc] sm:$0xf]
    %v1348 = vld [vmem:[#allocation2 + $0xc0] sm:$0xf]
    %v1349 = vunpack.c.l.bf16 %v1333
    %v1350 = vunpack.c.l.bf16 %v1334
    %v1351 = vunpack.c.l.bf16 %v1335
    %v1352 = vunpack.c.l.bf16 %v1336
    %v1353 = vunpack.c.l.bf16 %v1337
    %v1354 = vunpack.c.l.bf16 %v1338
    %v1355 = vunpack.c.l.bf16 %v1339
    %v1356 = vunpack.c.l.bf16 %v1340
    %v1357 = vunpack.c.l.bf16 %v1341
    %v1358 = vunpack.c.l.bf16 %v1342
    %v1359 = vunpack.c.l.bf16 %v1343
    %v1360 = vunpack.c.l.bf16 %v1344
    %v1361 = vunpack.c.l.bf16 %v1345
    %v1362 = vunpack.c.l.bf16 %v1346
    %v1363 = vunpack.c.l.bf16 %v1347
    %v1364 = vunpack.c.l.bf16 %v1348
    %v1365 = vld [vmem:[%s2 + $0xa] ss:$0 sm:$0xff]
    %1366 = vmatprep.subr.mxu0 0.0
    %1367 = vmatpush1.msra.mxu0 %v1349
    %1368 = vmatprep.subr.mxu0 0.0
    %1369 = vmatpush1.msra.mxu0 %v1350
    %1370 = vmatprep.subr.mxu0 0.0
    %1371 = vmatpush1.msra.mxu0 %v1351
    %1372 = vmatprep.subr.mxu0 0.0
    %1373 = vmatpush1.msra.mxu0 %v1352
    %1374 = vmatprep.subr.mxu0 0.0
    %1375 = vmatpush1.msra.mxu0 %v1353
    %1376 = vmatprep.subr.mxu0 0.0
    %1377 = vmatpush1.msra.mxu0 %v1354
    %1378 = vmatprep.subr.mxu0 0.0
    %1379 = vmatpush1.msra.mxu0 %v1355
    %1380 = vmatprep.subr.mxu0 0.0
    %1381 = vmatpush1.msra.mxu0 %v1356
    %1382 = vmatprep.subr.mxu0 0.0
    %1383 = vmatpush1.msra.mxu0 %v1357
    %1384 = vmatprep.subr.mxu0 0.0
    %1385 = vmatpush1.msra.mxu0 %v1358
    %1386 = vmatprep.subr.mxu0 0.0
    %1387 = vmatpush1.msra.mxu0 %v1359
    %1388 = vmatprep.subr.mxu0 0.0
    %1389 = vmatpush1.msra.mxu0 %v1360
    %1390 = vmatprep.subr.mxu0 0.0
    %1391 = vmatpush1.msra.mxu0 %v1361
    %1392 = vmatprep.subr.mxu0 0.0
    %1393 = vmatpush1.msra.mxu0 %v1362
    %1394 = vmatprep.subr.mxu0 0.0
    %1395 = vmatpush1.msra.mxu0 %v1363
    %1396 = vmatprep.subr.mxu0 0.0
    %1397 = vmatpush1.msra.mxu0 %v1364
    %1398 = vmatprep.subr.mxu0 0.0
    %1399 = vmatpush1.msra.mxu0 0.0
    %1400 = vmatprep.subr.mxu0 0.0
    %1401 = vmatpush1.msra.mxu0 0.0
    %1402 = vmatprep.subr.mxu0 0.0
    %1403 = vmatpush1.msra.mxu0 0.0
    %1404 = vmatprep.subr.mxu0 0.0
    %1405 = vmatpush1.msra.mxu0 0.0
    %1406 = vmatprep.subr.mxu0 0.0
    %1407 = vmatpush1.msra.mxu0 0.0
    %1408 = vmatprep.subr.mxu0 0.0
    %1409 = vmatpush1.msra.mxu0 0.0
    %1410 = vmatprep.subr.mxu0 0.0
    %1411 = vmatpush1.msra.mxu0 0.0
    %1412 = vmatprep.subr.mxu0 0.0
    %1413 = vmatpush1.msra.mxu0 0.0
    %1414 = vmatprep.subr.mxu0 0.0
    %1415 = vmatpush1.msra.mxu0 0.0
    %1416 = vmatprep.subr.mxu0 0.0
    %1417 = vmatpush1.msra.mxu0 0.0
    %1418 = vmatprep.subr.mxu0 0.0
    %1419 = vmatpush1.msra.mxu0 0.0
    %1420 = vmatprep.subr.mxu0 0.0
    %1421 = vmatpush1.msra.mxu0 0.0
    %1422 = vmatprep.subr.mxu0 0.0
    %1423 = vmatpush1.msra.mxu0 0.0
    %1424 = vmatprep.subr.mxu0 0.0
    %1425 = vmatpush1.msra.mxu0 0.0
    %1426 = vmatprep.subr.mxu0 0.0
    %1427 = vmatpush1.msra.mxu0 0.0
    %1428 = vmatprep.subr.mxu0 0.0
    %1429 = vmatpush1.msra.mxu0 0.0
    %1430 = vmatprep.mubr.f32.mxu0 0.0
    %1431 = vmatmul.mubr.f32.gmra.mrb[0].mxu0 %v978
    %v1432 = vpop.f32.mrb[0].mxu0
    %v1433 = vadd.f32 %v1365, %v1432
    %v1434 = vpop.f32.mrb[0].mxu0
    %1435 = vmatprep.mubr.f32.mxu0 0.0
    %1436 = vmatmul.mubr.f32.gmra.mrb[0].mxu0 %v979
    %v1437 = vpop.f32.mrb[0].mxu0
    %v1438 = vadd.f32 %v1365, %v1437
    %v1439 = vpop.f32.mrb[0].mxu0
    %1440 = vmatprep.mubr.f32.mxu0 0.0
    %1441 = vmatmul.mubr.f32.gmra.mrb[0].mxu0 %v980
    %v1442 = vpop.f32.mrb[0].mxu0
    %v1443 = vadd.f32 %v1365, %v1442
    %v1444 = vpop.f32.mrb[0].mxu0
    %1445 = vmatprep.mubr.f32.mxu0 0.0
    %1446 = vmatmul.mubr.f32.gmra.mrb[0].mxu0 %v981
    %v1447 = vpop.f32.mrb[0].mxu0
    %v1448 = vadd.f32 %v1365, %v1447
    %v1449 = vpop.f32.mrb[0].mxu0
    %1450 = vmatprep.mubr.f32.mxu0 0.0
    %1451 = vmatmul.mubr.f32.gmra.mrb[0].mxu0 %v982
    %v1452 = vpop.f32.mrb[0].mxu0
    %v1453 = vadd.f32 %v1365, %v1452
    %v1454 = vpop.f32.mrb[0].mxu0
    %1455 = vmatprep.mubr.f32.mxu0 0.0
    %1456 = vmatmul.mubr.f32.gmra.mrb[0].mxu0 %v983
    %v1457 = vpop.f32.mrb[0].mxu0
    %v1458 = vadd.f32 %v1365, %v1457
    %v1459 = vpop.f32.mrb[0].mxu0
    %1460 = vmatprep.mubr.f32.mxu0 0.0
    %1461 = vmatmul.mubr.f32.gmra.mrb[0].mxu0 %v984
    %v1462 = vpop.f32.mrb[0].mxu0
    %v1463 = vadd.f32 %v1365, %v1462
    %v1464 = vpop.f32.mrb[0].mxu0
    %1465 = vmatprep.mubr.f32.mxu0 0.0
    %1466 = vmatmul.mubr.f32.gmra.mrb[0].mxu0 %v985
    %v1467 = vpop.f32.mrb[0].mxu0
    %v1468 = vadd.f32 %v1365, %v1467
    %v1469 = vpop.f32.mrb[0].mxu0
    %1470 = vmatprep.mubr.f32.mxu0 0.0
    %1471 = vmatmul.mubr.f32.gmra.mrb[0].mxu0 %v986
    %v1472 = vpop.f32.mrb[0].mxu0
    %v1473 = vadd.f32 %v1365, %v1472
    %v1474 = vpop.f32.mrb[0].mxu0
    %1475 = vmatprep.mubr.f32.mxu0 0.0
    %1476 = vmatmul.mubr.f32.gmra.mrb[0].mxu0 %v987
    %v1477 = vpop.f32.mrb[0].mxu0
    %v1478 = vadd.f32 %v1365, %v1477
    %v1479 = vpop.f32.mrb[0].mxu0
    %1480 = vmatprep.mubr.f32.mxu0 0.0
    %1481 = vmatmul.mubr.f32.gmra.mrb[0].mxu0 %v988
    %v1482 = vpop.f32.mrb[0].mxu0
    %v1483 = vadd.f32 %v1365, %v1482
    %v1484 = vpop.f32.mrb[0].mxu0
    %1485 = vmatprep.mubr.f32.mxu0 0.0
    %1486 = vmatmul.mubr.f32.gmra.mrb[0].mxu0 %v989
    %v1487 = vpop.f32.mrb[0].mxu0
    %v1488 = vadd.f32 %v1365, %v1487
    %v1489 = vpop.f32.mrb[0].mxu0
    %1490 = vmatprep.mubr.f32.mxu0 0.0
    %1491 = vmatmul.mubr.f32.gmra.mrb[0].mxu0 %v990
    %v1492 = vpop.f32.mrb[0].mxu0
    %v1493 = vadd.f32 %v1365, %v1492
    %v1494 = vpop.f32.mrb[0].mxu0
    %1495 = vmatprep.mubr.f32.mxu0 0.0
    %1496 = vmatmul.mubr.f32.gmra.mrb[0].mxu0 %v991
    %v1497 = vpop.f32.mrb[0].mxu0
    %v1498 = vadd.f32 %v1365, %v1497
    %v1499 = vpop.f32.mrb[0].mxu0
    %1500 = vmatprep.mubr.f32.mxu0 0.0
    %1501 = vmatmul.mubr.f32.gmra.mrb[0].mxu0 %v992
    %v1502 = vpop.f32.mrb[0].mxu0
    %v1503 = vadd.f32 %v1365, %v1502
    %v1504 = vpop.f32.mrb[0].mxu0
    %1505 = vmatprep.mubr.f32.mxu0 0.0
    %1506 = vmatmul.mubr.f32.gmra.mrb[0].mxu0 %v993
    %v1507 = vpop.f32.mrb[0].mxu0
    %v1508 = vadd.f32 %v1365, %v1507
    %v1509 = vpop.f32.mrb[0].mxu0
    %1510 = vmatprep.mubr.f32.mxu0 0.0
    %1511 = vmatmul.mubr.f32.gmra.mrb[0].mxu0 %v994
    %v1512 = vpop.f32.mrb[0].mxu0
    %v1513 = vadd.f32 %v1365, %v1512
    %v1514 = vpop.f32.mrb[0].mxu0
    %1515 = vmatprep.mubr.f32.mxu0 0.0
    %1516 = vmatmul.mubr.f32.gmra.mrb[0].mxu0 %v995
    %v1517 = vpop.f32.mrb[0].mxu0
    %v1518 = vadd.f32 %v1365, %v1517
    %v1519 = vpop.f32.mrb[0].mxu0
    %1520 = vmatprep.mubr.f32.mxu0 0.0
    %1521 = vmatmul.mubr.f32.gmra.mrb[0].mxu0 %v996
    %v1522 = vpop.f32.mrb[0].mxu0
    %v1523 = vadd.f32 %v1365, %v1522
    %v1524 = vpop.f32.mrb[0].mxu0
    %1525 = vmatprep.mubr.f32.mxu0 0.0
    %1526 = vmatmul.mubr.f32.gmra.mrb[0].mxu0 %v997
    %v1527 = vpop.f32.mrb[0].mxu0
    %v1528 = vadd.f32 %v1365, %v1527
    %v1529 = vpop.f32.mrb[0].mxu0
    %1530 = vmatprep.mubr.f32.mxu0 0.0
    %1531 = vmatmul.mubr.f32.gmra.mrb[0].mxu0 %v998
    %v1532 = vpop.f32.mrb[0].mxu0
    %v1533 = vadd.f32 %v1365, %v1532
    %v1534 = vpop.f32.mrb[0].mxu0
    %1535 = vmatprep.mubr.f32.mxu0 0.0
    %1536 = vmatmul.mubr.f32.gmra.mrb[0].mxu0 %v999
    %v1537 = vpop.f32.mrb[0].mxu0
    %v1538 = vadd.f32 %v1365, %v1537
    %v1539 = vpop.f32.mrb[0].mxu0
    %1540 = vmatprep.mubr.f32.mxu0 0.0
    %1541 = vmatmul.mubr.f32.gmra.mrb[0].mxu0 %v1000
    %v1542 = vpop.f32.mrb[0].mxu0
    %v1543 = vadd.f32 %v1365, %v1542
    %v1544 = vpop.f32.mrb[0].mxu0
    %1545 = vmatprep.mubr.f32.mxu0 0.0
    %1546 = vmatmul.mubr.f32.gmra.mrb[0].mxu0 %v1001
    %v1547 = vpop.f32.mrb[0].mxu0
    %v1548 = vadd.f32 %v1365, %v1547
    %v1549 = vpop.f32.mrb[0].mxu0
    %1550 = vmatprep.mubr.f32.mxu0 0.0
    %1551 = vmatmul.mubr.f32.gmra.mrb[0].mxu0 %v1002
    %v1552 = vpop.f32.mrb[0].mxu0
    %v1553 = vadd.f32 %v1365, %v1552
    %v1554 = vpop.f32.mrb[0].mxu0
    %1555 = vmatprep.mubr.f32.mxu0 0.0
    %1556 = vmatmul.mubr.f32.gmra.mrb[0].mxu0 %v1003
    %v1557 = vpop.f32.mrb[0].mxu0
    %v1558 = vadd.f32 %v1365, %v1557
    %v1559 = vpop.f32.mrb[0].mxu0
    %1560 = vmatprep.mubr.f32.mxu0 0.0
    %1561 = vmatmul.mubr.f32.gmra.mrb[0].mxu0 %v1004
    %v1562 = vpop.f32.mrb[0].mxu0
    %v1563 = vadd.f32 %v1365, %v1562
    %v1564 = vpop.f32.mrb[0].mxu0
    %1565 = vmatprep.mubr.f32.mxu0 0.0
    %1566 = vmatmul.mubr.f32.gmra.mrb[0].mxu0 %v1005
    %v1567 = vpop.f32.mrb[0].mxu0
    %v1568 = vadd.f32 %v1365, %v1567
    %v1569 = vpop.f32.mrb[0].mxu0
    %1570 = vmatprep.mubr.f32.mxu0 0.0
    %1571 = vmatmul.mubr.f32.gmra.mrb[0].mxu0 %v1006
    %v1572 = vpop.f32.mrb[0].mxu0
    %v1573 = vadd.f32 %v1365, %v1572
    %v1574 = vpop.f32.mrb[0].mxu0
    %1575 = vmatprep.mubr.f32.mxu0 0.0
    %1576 = vmatmul.mubr.f32.gmra.mrb[0].mxu0 %v1007
    %v1577 = vpop.f32.mrb[0].mxu0
    %v1578 = vadd.f32 %v1365, %v1577
    %v1579 = vpop.f32.mrb[0].mxu0
    %1580 = vmatprep.mubr.f32.mxu0 0.0
    %1581 = vmatmul.mubr.f32.gmra.mrb[0].mxu0 %v1008
    %v1582 = vpop.f32.mrb[0].mxu0
    %v1583 = vadd.f32 %v1365, %v1582
    %v1584 = vpop.f32.mrb[0].mxu0
    %1585 = vmatprep.mubr.f32.mxu0 0.0
    %1586 = vmatmul.mubr.f32.gmra.mrb[0].mxu0 %v1009
    %v1587 = vpop.f32.mrb[0].mxu0
    %v1588 = vadd.f32 %v1365, %v1587
    %v1589 = vpop.f32.mrb[0].mxu0
    %1590 = vdwg.mxu0
    %v1591 = vmax.f32 %v1433, 0.0
    %v1592 = vmax.f32 %v1438, 0.0
    %v1593 = vmax.f32 %v1443, 0.0
    %v1594 = vmax.f32 %v1448, 0.0
    %v1595 = vmax.f32 %v1453, 0.0
    %v1596 = vmax.f32 %v1458, 0.0
    %v1597 = vmax.f32 %v1463, 0.0
    %v1598 = vmax.f32 %v1468, 0.0
    %v1599 = vmax.f32 %v1473, 0.0
    %v1600 = vmax.f32 %v1478, 0.0
    %v1601 = vmax.f32 %v1483, 0.0
    %v1602 = vmax.f32 %v1488, 0.0
    %v1603 = vmax.f32 %v1493, 0.0
    %v1604 = vmax.f32 %v1498, 0.0
    %v1605 = vmax.f32 %v1503, 0.0
    %v1606 = vmax.f32 %v1508, 0.0
    %v1607 = vmax.f32 %v1513, 0.0
    %v1608 = vmax.f32 %v1518, 0.0
    %v1609 = vmax.f32 %v1523, 0.0
    %v1610 = vmax.f32 %v1528, 0.0
    %v1611 = vmax.f32 %v1533, 0.0
    %v1612 = vmax.f32 %v1538, 0.0
    %v1613 = vmax.f32 %v1543, 0.0
    %v1614 = vmax.f32 %v1548, 0.0
    %v1615 = vmax.f32 %v1553, 0.0
    %v1616 = vmax.f32 %v1558, 0.0
    %v1617 = vmax.f32 %v1563, 0.0
    %v1618 = vmax.f32 %v1568, 0.0
    %v1619 = vmax.f32 %v1573, 0.0
    %v1620 = vmax.f32 %v1578, 0.0
    %v1621 = vmax.f32 %v1583, 0.0
    %v1622 = vmax.f32 %v1588, 0.0
    %v1623 = vmax.f32 %v1301, %v1305
    %v1624 = vmax.f32 %v1302, %v1306
    %v1625 = vmax.f32 %v1303, %v1307
    %v1626 = vmax.f32 %v1304, %v1308
    %v1627 = vmax.f32 %v1623, %v1309
    %v1628 = vmax.f32 %v1624, %v1310
    %v1629 = vmax.f32 %v1625, %v1311
    %v1630 = vmax.f32 %v1626, %v1312
    %v1631 = vmax.f32 %v1627, %v1313
    %v1632 = vmax.f32 %v1628, %v1314
    %v1633 = vmax.f32 %v1629, %v1315
    %v1634 = vmax.f32 %v1630, %v1316
    %v1635 = vmax.f32 %v1631, %v1632
    %v1636 = vmax.f32 %v1633, %v1634
    %v1637 = vmax.f32 %v1635, %v1636
    %v1638 = vrot.slane %v1637, 4
    %v1639 = vmax.f32 %v1637, %v1638
    %v1640 = vrot.slane %v1639, 2
    %v1641 = vmax.f32 %v1639, %v1640
    %v1642 = vrot.slane %v1641, 1
    %v1643 = vmax.f32 %v1641, %v1642
    %v1644 = vmax.f32 %v1317, %v1321
    %v1645 = vmax.f32 %v1318, %v1322
    %v1646 = vmax.f32 %v1319, %v1323
    %v1647 = vmax.f32 %v1320, %v1324
    %v1648 = vmax.f32 %v1644, %v1325
    %v1649 = vmax.f32 %v1645, %v1326
    %v1650 = vmax.f32 %v1646, %v1327
    %v1651 = vmax.f32 %v1647, %v1328
    %v1652 = vmax.f32 %v1648, %v1329
    %v1653 = vmax.f32 %v1649, %v1330
    %v1654 = vmax.f32 %v1650, %v1331
    %v1655 = vmax.f32 %v1651, %v1332
    %v1656 = vmax.f32 %v1652, %v1653
    %v1657 = vmax.f32 %v1654, %v1655
    %v1658 = vmax.f32 %v1656, %v1657
    %v1659 = vrot.slane %v1658, 4
    %v1660 = vmax.f32 %v1658, %v1659
    %v1661 = vrot.slane %v1660, 2
    %v1662 = vmax.f32 %v1660, %v1661
    %v1663 = vrot.slane %v1662, 1
    %v1664 = vmax.f32 %v1662, %v1663
    %vm1665 = vcmask 1040384
    %v1666 = vsel %vm1665, %v1643, %v1664
    %v1667 = vmax.f32 %v1591, %v1595
    %v1668 = vmax.f32 %v1592, %v1596
    %v1669 = vmax.f32 %v1593, %v1597
    %v1670 = vmax.f32 %v1594, %v1598
    %v1671 = vmax.f32 %v1667, %v1599
    %v1672 = vmax.f32 %v1668, %v1600
    %v1673 = vmax.f32 %v1669, %v1601
    %v1674 = vmax.f32 %v1670, %v1602
    %v1675 = vmax.f32 %v1671, %v1603
    %v1676 = vmax.f32 %v1672, %v1604
    %v1677 = vmax.f32 %v1673, %v1605
    %v1678 = vmax.f32 %v1674, %v1606
    %v1679 = vmax.f32 %v1675, %v1676
    %v1680 = vmax.f32 %v1677, %v1678
    %v1681 = vmax.f32 %v1679, %v1680
    %v1682 = vrot.slane %v1681, 4
    %v1683 = vmax.f32 %v1681, %v1682
    %v1684 = vrot.slane %v1683, 2
    %v1685 = vmax.f32 %v1683, %v1684
    %v1686 = vrot.slane %v1685, 1
    %v1687 = vmax.f32 %v1685, %v1686
    %v1688 = vmax.f32 %v1607, %v1611
    %v1689 = vmax.f32 %v1608, %v1612
    %v1690 = vmax.f32 %v1609, %v1613
    %v1691 = vmax.f32 %v1610, %v1614
    %v1692 = vmax.f32 %v1688, %v1615
    %v1693 = vmax.f32 %v1689, %v1616
    %v1694 = vmax.f32 %v1690, %v1617
    %v1695 = vmax.f32 %v1691, %v1618
    %v1696 = vmax.f32 %v1692, %v1619
    %v1697 = vmax.f32 %v1693, %v1620
    %v1698 = vmax.f32 %v1694, %v1621
    %v1699 = vmax.f32 %v1695, %v1622
    %v1700 = vmax.f32 %v1696, %v1697
    %v1701 = vmax.f32 %v1698, %v1699
    %v1702 = vmax.f32 %v1700, %v1701
    %v1703 = vrot.slane %v1702, 4
    %v1704 = vmax.f32 %v1702, %v1703
    %v1705 = vrot.slane %v1704, 2
    %v1706 = vmax.f32 %v1704, %v1705
    %v1707 = vrot.slane %v1706, 1
    %v1708 = vmax.f32 %v1706, %v1707
    %v1709 = vsel %vm1665, %v1687, %v1708
    %v1710 = vld [vmem:[#allocation2 + $0xc4] sm:$0xf]
    %v1711 = vld [vmem:[#allocation2 + $0xc8] sm:$0xf]
    %v1712 = vld [vmem:[#allocation2 + $0xcc] sm:$0xf]
    %v1713 = vld [vmem:[#allocation2 + $0xd0] sm:$0xf]
    %v1714 = vld [vmem:[#allocation2 + $0xd4] sm:$0xf]
    %v1715 = vld [vmem:[#allocation2 + $0xd8] sm:$0xf]
    %v1716 = vld [vmem:[#allocation2 + $0xdc] sm:$0xf]
    %v1717 = vld [vmem:[#allocation2 + $0xe0] sm:$0xf]
    %v1718 = vld [vmem:[#allocation2 + $0xe4] sm:$0xf]
    %v1719 = vld [vmem:[#allocation2 + $0xe8] sm:$0xf]
    %v1720 = vld [vmem:[#allocation2 + $0xec] sm:$0xf]
    %v1721 = vld [vmem:[#allocation2 + $0xf0] sm:$0xf]
    %v1722 = vld [vmem:[#allocation2 + $0xf4] sm:$0xf]
    %v1723 = vld [vmem:[#allocation2 + $0xf8] sm:$0xf]
    %v1724 = vld [vmem:[#allocation2 + $0xfc] sm:$0xf]
    %v1725 = vld [vmem:[#allocation2 + $0x100] sm:$0xf]
    %v1726 = vunpack.c.l.bf16 %v1710
    %v1727 = vunpack.c.l.bf16 %v1711
    %v1728 = vunpack.c.l.bf16 %v1712
    %v1729 = vunpack.c.l.bf16 %v1713
    %v1730 = vunpack.c.l.bf16 %v1714
    %v1731 = vunpack.c.l.bf16 %v1715
    %v1732 = vunpack.c.l.bf16 %v1716
    %v1733 = vunpack.c.l.bf16 %v1717
    %v1734 = vunpack.c.l.bf16 %v1718
    %v1735 = vunpack.c.l.bf16 %v1719
    %v1736 = vunpack.c.l.bf16 %v1720
    %v1737 = vunpack.c.l.bf16 %v1721
    %v1738 = vunpack.c.l.bf16 %v1722
    %v1739 = vunpack.c.l.bf16 %v1723
    %v1740 = vunpack.c.l.bf16 %v1724
    %v1741 = vunpack.c.l.bf16 %v1725
    %v1742 = vld [vmem:[%s2 + $0x3] ss:$0 sm:$0xff]
    %1743 = vmatprep.subr.mxu0 0.0
    %1744 = vmatpush1.msra.mxu0 %v1726
    %1745 = vmatprep.subr.mxu0 0.0
    %1746 = vmatpush1.msra.mxu0 %v1727
    %1747 = vmatprep.subr.mxu0 0.0
    %1748 = vmatpush1.msra.mxu0 %v1728
    %1749 = vmatprep.subr.mxu0 0.0
    %1750 = vmatpush1.msra.mxu0 %v1729
    %1751 = vmatprep.subr.mxu0 0.0
    %1752 = vmatpush1.msra.mxu0 %v1730
    %1753 = vmatprep.subr.mxu0 0.0
    %1754 = vmatpush1.msra.mxu0 %v1731
    %1755 = vmatprep.subr.mxu0 0.0
    %1756 = vmatpush1.msra.mxu0 %v1732
    %1757 = vmatprep.subr.mxu0 0.0
    %1758 = vmatpush1.msra.mxu0 %v1733
    %1759 = vmatprep.subr.mxu0 0.0
    %1760 = vmatpush1.msra.mxu0 %v1734
    %1761 = vmatprep.subr.mxu0 0.0
    %1762 = vmatpush1.msra.mxu0 %v1735
    %1763 = vmatprep.subr.mxu0 0.0
    %1764 = vmatpush1.msra.mxu0 %v1736
    %1765 = vmatprep.subr.mxu0 0.0
    %1766 = vmatpush1.msra.mxu0 %v1737
    %1767 = vmatprep.subr.mxu0 0.0
    %1768 = vmatpush1.msra.mxu0 %v1738
    %1769 = vmatprep.subr.mxu0 0.0
    %1770 = vmatpush1.msra.mxu0 %v1739
    %1771 = vmatprep.subr.mxu0 0.0
    %1772 = vmatpush1.msra.mxu0 %v1740
    %1773 = vmatprep.subr.mxu0 0.0
    %1774 = vmatpush1.msra.mxu0 %v1741
    %1775 = vmatprep.subr.mxu0 0.0
    %1776 = vmatpush1.msra.mxu0 0.0
    %1777 = vmatprep.subr.mxu0 0.0
    %1778 = vmatpush1.msra.mxu0 0.0
    %1779 = vmatprep.subr.mxu0 0.0
    %1780 = vmatpush1.msra.mxu0 0.0
    %1781 = vmatprep.subr.mxu0 0.0
    %1782 = vmatpush1.msra.mxu0 0.0
    %1783 = vmatprep.subr.mxu0 0.0
    %1784 = vmatpush1.msra.mxu0 0.0
    %1785 = vmatprep.subr.mxu0 0.0
    %1786 = vmatpush1.msra.mxu0 0.0
    %1787 = vmatprep.subr.mxu0 0.0
    %1788 = vmatpush1.msra.mxu0 0.0
    %1789 = vmatprep.subr.mxu0 0.0
    %1790 = vmatpush1.msra.mxu0 0.0
    %1791 = vmatprep.subr.mxu0 0.0
    %1792 = vmatpush1.msra.mxu0 0.0
    %1793 = vmatprep.subr.mxu0 0.0
    %1794 = vmatpush1.msra.mxu0 0.0
    %1795 = vmatprep.subr.mxu0 0.0
    %1796 = vmatpush1.msra.mxu0 0.0
    %1797 = vmatprep.subr.mxu0 0.0
    %1798 = vmatpush1.msra.mxu0 0.0
    %1799 = vmatprep.subr.mxu0 0.0
    %1800 = vmatpush1.msra.mxu0 0.0
    %1801 = vmatprep.subr.mxu0 0.0
    %1802 = vmatpush1.msra.mxu0 0.0
    %1803 = vmatprep.subr.mxu0 0.0
    %1804 = vmatpush1.msra.mxu0 0.0
    %1805 = vmatprep.subr.mxu0 0.0
    %1806 = vmatpush1.msra.mxu0 0.0
    %1807 = vmatprep.mubr.f32.mxu0 0.0
    %1808 = vmatmul.mubr.f32.gmra.mrb[0].mxu0 %v978
    %v1809 = vpop.f32.mrb[0].mxu0
    %v1810 = vadd.f32 %v1742, %v1809
    %v1811 = vpop.f32.mrb[0].mxu0
    %1812 = vmatprep.mubr.f32.mxu0 0.0
    %1813 = vmatmul.mubr.f32.gmra.mrb[0].mxu0 %v979
    %v1814 = vpop.f32.mrb[0].mxu0
    %v1815 = vadd.f32 %v1742, %v1814
    %v1816 = vpop.f32.mrb[0].mxu0
    %1817 = vmatprep.mubr.f32.mxu0 0.0
    %1818 = vmatmul.mubr.f32.gmra.mrb[0].mxu0 %v980
    %v1819 = vpop.f32.mrb[0].mxu0
    %v1820 = vadd.f32 %v1742, %v1819
    %v1821 = vpop.f32.mrb[0].mxu0
    %1822 = vmatprep.mubr.f32.mxu0 0.0
    %1823 = vmatmul.mubr.f32.gmra.mrb[0].mxu0 %v981
    %v1824 = vpop.f32.mrb[0].mxu0
    %v1825 = vadd.f32 %v1742, %v1824
    %v1826 = vpop.f32.mrb[0].mxu0
    %1827 = vmatprep.mubr.f32.mxu0 0.0
    %1828 = vmatmul.mubr.f32.gmra.mrb[0].mxu0 %v982
    %v1829 = vpop.f32.mrb[0].mxu0
    %v1830 = vadd.f32 %v1742, %v1829
    %v1831 = vpop.f32.mrb[0].mxu0
    %1832 = vmatprep.mubr.f32.mxu0 0.0
    %1833 = vmatmul.mubr.f32.gmra.mrb[0].mxu0 %v983
    %v1834 = vpop.f32.mrb[0].mxu0
    %v1835 = vadd.f32 %v1742, %v1834
    %v1836 = vpop.f32.mrb[0].mxu0
    %1837 = vmatprep.mubr.f32.mxu0 0.0
    %1838 = vmatmul.mubr.f32.gmra.mrb[0].mxu0 %v984
    %v1839 = vpop.f32.mrb[0].mxu0
    %v1840 = vadd.f32 %v1742, %v1839
    %v1841 = vpop.f32.mrb[0].mxu0
    %1842 = vmatprep.mubr.f32.mxu0 0.0
    %1843 = vmatmul.mubr.f32.gmra.mrb[0].mxu0 %v985
    %v1844 = vpop.f32.mrb[0].mxu0
    %v1845 = vadd.f32 %v1742, %v1844
    %v1846 = vpop.f32.mrb[0].mxu0
    %1847 = vmatprep.mubr.f32.mxu0 0.0
    %1848 = vmatmul.mubr.f32.gmra.mrb[0].mxu0 %v986
    %v1849 = vpop.f32.mrb[0].mxu0
    %v1850 = vadd.f32 %v1742, %v1849
    %v1851 = vpop.f32.mrb[0].mxu0
    %1852 = vmatprep.mubr.f32.mxu0 0.0
    %1853 = vmatmul.mubr.f32.gmra.mrb[0].mxu0 %v987
    %v1854 = vpop.f32.mrb[0].mxu0
    %v1855 = vadd.f32 %v1742, %v1854
    %v1856 = vpop.f32.mrb[0].mxu0
    %1857 = vmatprep.mubr.f32.mxu0 0.0
    %1858 = vmatmul.mubr.f32.gmra.mrb[0].mxu0 %v988
    %v1859 = vpop.f32.mrb[0].mxu0
    %v1860 = vadd.f32 %v1742, %v1859
    %v1861 = vpop.f32.mrb[0].mxu0
    %1862 = vmatprep.mubr.f32.mxu0 0.0
    %1863 = vmatmul.mubr.f32.gmra.mrb[0].mxu0 %v989
    %v1864 = vpop.f32.mrb[0].mxu0
    %v1865 = vadd.f32 %v1742, %v1864
    %v1866 = vpop.f32.mrb[0].mxu0
    %1867 = vmatprep.mubr.f32.mxu0 0.0
    %1868 = vmatmul.mubr.f32.gmra.mrb[0].mxu0 %v990
    %v1869 = vpop.f32.mrb[0].mxu0
    %v1870 = vadd.f32 %v1742, %v1869
    %v1871 = vpop.f32.mrb[0].mxu0
    %1872 = vmatprep.mubr.f32.mxu0 0.0
    %1873 = vmatmul.mubr.f32.gmra.mrb[0].mxu0 %v991
    %v1874 = vpop.f32.mrb[0].mxu0
    %v1875 = vadd.f32 %v1742, %v1874
    %v1876 = vpop.f32.mrb[0].mxu0
    %1877 = vmatprep.mubr.f32.mxu0 0.0
    %1878 = vmatmul.mubr.f32.gmra.mrb[0].mxu0 %v992
    %v1879 = vpop.f32.mrb[0].mxu0
    %v1880 = vadd.f32 %v1742, %v1879
    %v1881 = vpop.f32.mrb[0].mxu0
    %1882 = vmatprep.mubr.f32.mxu0 0.0
    %1883 = vmatmul.mubr.f32.gmra.mrb[0].mxu0 %v993
    %v1884 = vpop.f32.mrb[0].mxu0
    %v1885 = vadd.f32 %v1742, %v1884
    %v1886 = vpop.f32.mrb[0].mxu0
    %1887 = vmatprep.mubr.f32.mxu0 0.0
    %1888 = vmatmul.mubr.f32.gmra.mrb[0].mxu0 %v994
    %v1889 = vpop.f32.mrb[0].mxu0
    %v1890 = vadd.f32 %v1742, %v1889
    %v1891 = vpop.f32.mrb[0].mxu0
    %1892 = vmatprep.mubr.f32.mxu0 0.0
    %1893 = vmatmul.mubr.f32.gmra.mrb[0].mxu0 %v995
    %v1894 = vpop.f32.mrb[0].mxu0
    %v1895 = vadd.f32 %v1742, %v1894
    %v1896 = vpop.f32.mrb[0].mxu0
    %1897 = vmatprep.mubr.f32.mxu0 0.0
    %1898 = vmatmul.mubr.f32.gmra.mrb[0].mxu0 %v996
    %v1899 = vpop.f32.mrb[0].mxu0
    %v1900 = vadd.f32 %v1742, %v1899
    %v1901 = vpop.f32.mrb[0].mxu0
    %1902 = vmatprep.mubr.f32.mxu0 0.0
    %1903 = vmatmul.mubr.f32.gmra.mrb[0].mxu0 %v997
    %v1904 = vpop.f32.mrb[0].mxu0
    %v1905 = vadd.f32 %v1742, %v1904
    %v1906 = vpop.f32.mrb[0].mxu0
    %1907 = vmatprep.mubr.f32.mxu0 0.0
    %1908 = vmatmul.mubr.f32.gmra.mrb[0].mxu0 %v998
    %v1909 = vpop.f32.mrb[0].mxu0
    %v1910 = vadd.f32 %v1742, %v1909
    %v1911 = vpop.f32.mrb[0].mxu0
    %1912 = vmatprep.mubr.f32.mxu0 0.0
    %1913 = vmatmul.mubr.f32.gmra.mrb[0].mxu0 %v999
    %v1914 = vpop.f32.mrb[0].mxu0
    %v1915 = vadd.f32 %v1742, %v1914
    %v1916 = vpop.f32.mrb[0].mxu0
    %1917 = vmatprep.mubr.f32.mxu0 0.0
    %1918 = vmatmul.mubr.f32.gmra.mrb[0].mxu0 %v1000
    %v1919 = vpop.f32.mrb[0].mxu0
    %v1920 = vadd.f32 %v1742, %v1919
    %v1921 = vpop.f32.mrb[0].mxu0
    %1922 = vmatprep.mubr.f32.mxu0 0.0
    %1923 = vmatmul.mubr.f32.gmra.mrb[0].mxu0 %v1001
    %v1924 = vpop.f32.mrb[0].mxu0
    %v1925 = vadd.f32 %v1742, %v1924
    %v1926 = vpop.f32.mrb[0].mxu0
    %1927 = vmatprep.mubr.f32.mxu0 0.0
    %1928 = vmatmul.mubr.f32.gmra.mrb[0].mxu0 %v1002
    %v1929 = vpop.f32.mrb[0].mxu0
    %v1930 = vadd.f32 %v1742, %v1929
    %v1931 = vpop.f32.mrb[0].mxu0
    %1932 = vmatprep.mubr.f32.mxu0 0.0
    %1933 = vmatmul.mubr.f32.gmra.mrb[0].mxu0 %v1003
    %v1934 = vpop.f32.mrb[0].mxu0
    %v1935 = vadd.f32 %v1742, %v1934
    %v1936 = vpop.f32.mrb[0].mxu0
    %1937 = vmatprep.mubr.f32.mxu0 0.0
    %1938 = vmatmul.mubr.f32.gmra.mrb[0].mxu0 %v1004
    %v1939 = vpop.f32.mrb[0].mxu0
    %v1940 = vadd.f32 %v1742, %v1939
    %v1941 = vpop.f32.mrb[0].mxu0
    %1942 = vmatprep.mubr.f32.mxu0 0.0
    %1943 = vmatmul.mubr.f32.gmra.mrb[0].mxu0 %v1005
    %v1944 = vpop.f32.mrb[0].mxu0
    %v1945 = vadd.f32 %v1742, %v1944
    %v1946 = vpop.f32.mrb[0].mxu0
    %1947 = vmatprep.mubr.f32.mxu0 0.0
    %1948 = vmatmul.mubr.f32.gmra.mrb[0].mxu0 %v1006
    %v1949 = vpop.f32.mrb[0].mxu0
    %v1950 = vadd.f32 %v1742, %v1949
    %v1951 = vpop.f32.mrb[0].mxu0
    %1952 = vmatprep.mubr.f32.mxu0 0.0
    %1953 = vmatmul.mubr.f32.gmra.mrb[0].mxu0 %v1007
    %v1954 = vpop.f32.mrb[0].mxu0
    %v1955 = vadd.f32 %v1742, %v1954
    %v1956 = vpop.f32.mrb[0].mxu0
    %1957 = vmatprep.mubr.f32.mxu0 0.0
    %1958 = vmatmul.mubr.f32.gmra.mrb[0].mxu0 %v1008
    %v1959 = vpop.f32.mrb[0].mxu0
    %v1960 = vadd.f32 %v1742, %v1959
    %v1961 = vpop.f32.mrb[0].mxu0
    %1962 = vmatprep.mubr.f32.mxu0 0.0
    %1963 = vmatmul.mubr.f32.gmra.mrb[0].mxu0 %v1009
    %v1964 = vpop.f32.mrb[0].mxu0
    %v1965 = vadd.f32 %v1742, %v1964
    %v1966 = vpop.f32.mrb[0].mxu0
    %1967 = vdwg.mxu0
    %v1968 = vmax.f32 %v1810, 0.0
    %v1969 = vmax.f32 %v1815, 0.0
    %v1970 = vmax.f32 %v1820, 0.0
    %v1971 = vmax.f32 %v1825, 0.0
    %v1972 = vmax.f32 %v1830, 0.0
    %v1973 = vmax.f32 %v1835, 0.0
    %v1974 = vmax.f32 %v1840, 0.0
    %v1975 = vmax.f32 %v1845, 0.0
    %v1976 = vmax.f32 %v1850, 0.0
    %v1977 = vmax.f32 %v1855, 0.0
    %v1978 = vmax.f32 %v1860, 0.0
    %v1979 = vmax.f32 %v1865, 0.0
    %v1980 = vmax.f32 %v1870, 0.0
    %v1981 = vmax.f32 %v1875, 0.0
    %v1982 = vmax.f32 %v1880, 0.0
    %v1983 = vmax.f32 %v1885, 0.0
    %v1984 = vmax.f32 %v1890, 0.0
    %v1985 = vmax.f32 %v1895, 0.0
    %v1986 = vmax.f32 %v1900, 0.0
    %v1987 = vmax.f32 %v1905, 0.0
    %v1988 = vmax.f32 %v1910, 0.0
    %v1989 = vmax.f32 %v1915, 0.0
    %v1990 = vmax.f32 %v1920, 0.0
    %v1991 = vmax.f32 %v1925, 0.0
    %v1992 = vmax.f32 %v1930, 0.0
    %v1993 = vmax.f32 %v1935, 0.0
    %v1994 = vmax.f32 %v1940, 0.0
    %v1995 = vmax.f32 %v1945, 0.0
    %v1996 = vmax.f32 %v1950, 0.0
    %v1997 = vmax.f32 %v1955, 0.0
    %v1998 = vmax.f32 %v1960, 0.0
    %v1999 = vmax.f32 %v1965, 0.0
    %v2000 = vld [vmem:[#allocation2 + $0x104] sm:$0xf]
    %v2001 = vld [vmem:[#allocation2 + $0x108] sm:$0xf]
    %v2002 = vld [vmem:[#allocation2 + $0x10c] sm:$0xf]
    %v2003 = vld [vmem:[#allocation2 + $0x110] sm:$0xf]
    %v2004 = vld [vmem:[#allocation2 + $0x114] sm:$0xf]
    %v2005 = vld [vmem:[#allocation2 + $0x118] sm:$0xf]
    %v2006 = vld [vmem:[#allocation2 + $0x11c] sm:$0xf]
    %v2007 = vld [vmem:[#allocation2 + $0x120] sm:$0xf]
    %v2008 = vld [vmem:[#allocation2 + $0x124] sm:$0xf]
    %v2009 = vld [vmem:[#allocation2 + $0x128] sm:$0xf]
    %v2010 = vld [vmem:[#allocation2 + $0x12c] sm:$0xf]
    %v2011 = vld [vmem:[#allocation2 + $0x130] sm:$0xf]
    %v2012 = vld [vmem:[#allocation2 + $0x134] sm:$0xf]
    %v2013 = vld [vmem:[#allocation2 + $0x138] sm:$0xf]
    %v2014 = vld [vmem:[#allocation2 + $0x13c] sm:$0xf]
    %v2015 = vld [vmem:[#allocation2 + $0x140] sm:$0xf]
    %v2016 = vunpack.c.l.bf16 %v2000
    %v2017 = vunpack.c.l.bf16 %v2001
    %v2018 = vunpack.c.l.bf16 %v2002
    %v2019 = vunpack.c.l.bf16 %v2003
    %v2020 = vunpack.c.l.bf16 %v2004
    %v2021 = vunpack.c.l.bf16 %v2005
    %v2022 = vunpack.c.l.bf16 %v2006
    %v2023 = vunpack.c.l.bf16 %v2007
    %v2024 = vunpack.c.l.bf16 %v2008
    %v2025 = vunpack.c.l.bf16 %v2009
    %v2026 = vunpack.c.l.bf16 %v2010
    %v2027 = vunpack.c.l.bf16 %v2011
    %v2028 = vunpack.c.l.bf16 %v2012
    %v2029 = vunpack.c.l.bf16 %v2013
    %v2030 = vunpack.c.l.bf16 %v2014
    %v2031 = vunpack.c.l.bf16 %v2015
    %v2032 = vld [vmem:[%s2 + $0x4] ss:$0 sm:$0xff]
    %2033 = vmatprep.subr.mxu0 0.0
    %2034 = vmatpush1.msra.mxu0 %v2016
    %2035 = vmatprep.subr.mxu0 0.0
    %2036 = vmatpush1.msra.mxu0 %v2017
    %2037 = vmatprep.subr.mxu0 0.0
    %2038 = vmatpush1.msra.mxu0 %v2018
    %2039 = vmatprep.subr.mxu0 0.0
    %2040 = vmatpush1.msra.mxu0 %v2019
    %2041 = vmatprep.subr.mxu0 0.0
    %2042 = vmatpush1.msra.mxu0 %v2020
    %2043 = vmatprep.subr.mxu0 0.0
    %2044 = vmatpush1.msra.mxu0 %v2021
    %2045 = vmatprep.subr.mxu0 0.0
    %2046 = vmatpush1.msra.mxu0 %v2022
    %2047 = vmatprep.subr.mxu0 0.0
    %2048 = vmatpush1.msra.mxu0 %v2023
    %2049 = vmatprep.subr.mxu0 0.0
    %2050 = vmatpush1.msra.mxu0 %v2024
    %2051 = vmatprep.subr.mxu0 0.0
    %2052 = vmatpush1.msra.mxu0 %v2025
    %2053 = vmatprep.subr.mxu0 0.0
    %2054 = vmatpush1.msra.mxu0 %v2026
    %2055 = vmatprep.subr.mxu0 0.0
    %2056 = vmatpush1.msra.mxu0 %v2027
    %2057 = vmatprep.subr.mxu0 0.0
    %2058 = vmatpush1.msra.mxu0 %v2028
    %2059 = vmatprep.subr.mxu0 0.0
    %2060 = vmatpush1.msra.mxu0 %v2029
    %2061 = vmatprep.subr.mxu0 0.0
    %2062 = vmatpush1.msra.mxu0 %v2030
    %2063 = vmatprep.subr.mxu0 0.0
    %2064 = vmatpush1.msra.mxu0 %v2031
    %2065 = vmatprep.subr.mxu0 0.0
    %2066 = vmatpush1.msra.mxu0 0.0
    %2067 = vmatprep.subr.mxu0 0.0
    %2068 = vmatpush1.msra.mxu0 0.0
    %2069 = vmatprep.subr.mxu0 0.0
    %2070 = vmatpush1.msra.mxu0 0.0
    %2071 = vmatprep.subr.mxu0 0.0
    %2072 = vmatpush1.msra.mxu0 0.0
    %2073 = vmatprep.subr.mxu0 0.0
    %2074 = vmatpush1.msra.mxu0 0.0
    %2075 = vmatprep.subr.mxu0 0.0
    %2076 = vmatpush1.msra.mxu0 0.0
    %2077 = vmatprep.subr.mxu0 0.0
    %2078 = vmatpush1.msra.mxu0 0.0
    %2079 = vmatprep.subr.mxu0 0.0
    %2080 = vmatpush1.msra.mxu0 0.0
    %2081 = vmatprep.subr.mxu0 0.0
    %2082 = vmatpush1.msra.mxu0 0.0
    %2083 = vmatprep.subr.mxu0 0.0
    %2084 = vmatpush1.msra.mxu0 0.0
    %2085 = vmatprep.subr.mxu0 0.0
    %2086 = vmatpush1.msra.mxu0 0.0
    %2087 = vmatprep.subr.mxu0 0.0
    %2088 = vmatpush1.msra.mxu0 0.0
    %2089 = vmatprep.subr.mxu0 0.0
    %2090 = vmatpush1.msra.mxu0 0.0
    %2091 = vmatprep.subr.mxu0 0.0
    %2092 = vmatpush1.msra.mxu0 0.0
    %2093 = vmatprep.subr.mxu0 0.0
    %2094 = vmatpush1.msra.mxu0 0.0
    %2095 = vmatprep.subr.mxu0 0.0
    %2096 = vmatpush1.msra.mxu0 0.0
    %2097 = vmatprep.mubr.f32.mxu0 0.0
    %2098 = vmatmul.mubr.f32.gmra.mrb[0].mxu0 %v1968
    %v2099 = vpop.f32.mrb[0].mxu0
    %v2100 = vadd.f32 %v2032, %v2099
    %v2101 = vpop.f32.mrb[0].mxu0
    %2102 = vmatprep.mubr.f32.mxu0 0.0
    %2103 = vmatmul.mubr.f32.gmra.mrb[0].mxu0 %v1969
    %v2104 = vpop.f32.mrb[0].mxu0
    %v2105 = vadd.f32 %v2032, %v2104
    %v2106 = vpop.f32.mrb[0].mxu0
    %2107 = vmatprep.mubr.f32.mxu0 0.0
    %2108 = vmatmul.mubr.f32.gmra.mrb[0].mxu0 %v1970
    %v2109 = vpop.f32.mrb[0].mxu0
    %v2110 = vadd.f32 %v2032, %v2109
    %v2111 = vpop.f32.mrb[0].mxu0
    %2112 = vmatprep.mubr.f32.mxu0 0.0
    %2113 = vmatmul.mubr.f32.gmra.mrb[0].mxu0 %v1971
    %v2114 = vpop.f32.mrb[0].mxu0
    %v2115 = vadd.f32 %v2032, %v2114
    %v2116 = vpop.f32.mrb[0].mxu0
    %2117 = vmatprep.mubr.f32.mxu0 0.0
    %2118 = vmatmul.mubr.f32.gmra.mrb[0].mxu0 %v1972
    %v2119 = vpop.f32.mrb[0].mxu0
    %v2120 = vadd.f32 %v2032, %v2119
    %v2121 = vpop.f32.mrb[0].mxu0
    %2122 = vmatprep.mubr.f32.mxu0 0.0
    %2123 = vmatmul.mubr.f32.gmra.mrb[0].mxu0 %v1973
    %v2124 = vpop.f32.mrb[0].mxu0
    %v2125 = vadd.f32 %v2032, %v2124
    %v2126 = vpop.f32.mrb[0].mxu0
    %2127 = vmatprep.mubr.f32.mxu0 0.0
    %2128 = vmatmul.mubr.f32.gmra.mrb[0].mxu0 %v1974
    %v2129 = vpop.f32.mrb[0].mxu0
    %v2130 = vadd.f32 %v2032, %v2129
    %v2131 = vpop.f32.mrb[0].mxu0
    %2132 = vmatprep.mubr.f32.mxu0 0.0
    %2133 = vmatmul.mubr.f32.gmra.mrb[0].mxu0 %v1975
    %v2134 = vpop.f32.mrb[0].mxu0
    %v2135 = vadd.f32 %v2032, %v2134
    %v2136 = vpop.f32.mrb[0].mxu0
    %2137 = vmatprep.mubr.f32.mxu0 0.0
    %2138 = vmatmul.mubr.f32.gmra.mrb[0].mxu0 %v1976
    %v2139 = vpop.f32.mrb[0].mxu0
    %v2140 = vadd.f32 %v2032, %v2139
    %v2141 = vpop.f32.mrb[0].mxu0
    %2142 = vmatprep.mubr.f32.mxu0 0.0
    %2143 = vmatmul.mubr.f32.gmra.mrb[0].mxu0 %v1977
    %v2144 = vpop.f32.mrb[0].mxu0
    %v2145 = vadd.f32 %v2032, %v2144
    %v2146 = vpop.f32.mrb[0].mxu0
    %2147 = vmatprep.mubr.f32.mxu0 0.0
    %2148 = vmatmul.mubr.f32.gmra.mrb[0].mxu0 %v1978
    %v2149 = vpop.f32.mrb[0].mxu0
    %v2150 = vadd.f32 %v2032, %v2149
    %v2151 = vpop.f32.mrb[0].mxu0
    %2152 = vmatprep.mubr.f32.mxu0 0.0
    %2153 = vmatmul.mubr.f32.gmra.mrb[0].mxu0 %v1979
    %v2154 = vpop.f32.mrb[0].mxu0
    %v2155 = vadd.f32 %v2032, %v2154
    %v2156 = vpop.f32.mrb[0].mxu0
    %2157 = vmatprep.mubr.f32.mxu0 0.0
    %2158 = vmatmul.mubr.f32.gmra.mrb[0].mxu0 %v1980
    %v2159 = vpop.f32.mrb[0].mxu0
    %v2160 = vadd.f32 %v2032, %v2159
    %v2161 = vpop.f32.mrb[0].mxu0
    %2162 = vmatprep.mubr.f32.mxu0 0.0
    %2163 = vmatmul.mubr.f32.gmra.mrb[0].mxu0 %v1981
    %v2164 = vpop.f32.mrb[0].mxu0
    %v2165 = vadd.f32 %v2032, %v2164
    %v2166 = vpop.f32.mrb[0].mxu0
    %2167 = vmatprep.mubr.f32.mxu0 0.0
    %2168 = vmatmul.mubr.f32.gmra.mrb[0].mxu0 %v1982
    %v2169 = vpop.f32.mrb[0].mxu0
    %v2170 = vadd.f32 %v2032, %v2169
    %v2171 = vpop.f32.mrb[0].mxu0
    %2172 = vmatprep.mubr.f32.mxu0 0.0
    %2173 = vmatmul.mubr.f32.gmra.mrb[0].mxu0 %v1983
    %v2174 = vpop.f32.mrb[0].mxu0
    %v2175 = vadd.f32 %v2032, %v2174
    %v2176 = vpop.f32.mrb[0].mxu0
    %2177 = vmatprep.mubr.f32.mxu0 0.0
    %2178 = vmatmul.mubr.f32.gmra.mrb[0].mxu0 %v1984
    %v2179 = vpop.f32.mrb[0].mxu0
    %v2180 = vadd.f32 %v2032, %v2179
    %v2181 = vpop.f32.mrb[0].mxu0
    %2182 = vmatprep.mubr.f32.mxu0 0.0
    %2183 = vmatmul.mubr.f32.gmra.mrb[0].mxu0 %v1985
    %v2184 = vpop.f32.mrb[0].mxu0
    %v2185 = vadd.f32 %v2032, %v2184
    %v2186 = vpop.f32.mrb[0].mxu0
    %2187 = vmatprep.mubr.f32.mxu0 0.0
    %2188 = vmatmul.mubr.f32.gmra.mrb[0].mxu0 %v1986
    %v2189 = vpop.f32.mrb[0].mxu0
    %v2190 = vadd.f32 %v2032, %v2189
    %v2191 = vpop.f32.mrb[0].mxu0
    %2192 = vmatprep.mubr.f32.mxu0 0.0
    %2193 = vmatmul.mubr.f32.gmra.mrb[0].mxu0 %v1987
    %v2194 = vpop.f32.mrb[0].mxu0
    %v2195 = vadd.f32 %v2032, %v2194
    %v2196 = vpop.f32.mrb[0].mxu0
    %2197 = vmatprep.mubr.f32.mxu0 0.0
    %2198 = vmatmul.mubr.f32.gmra.mrb[0].mxu0 %v1988
    %v2199 = vpop.f32.mrb[0].mxu0
    %v2200 = vadd.f32 %v2032, %v2199
    %v2201 = vpop.f32.mrb[0].mxu0
    %2202 = vmatprep.mubr.f32.mxu0 0.0
    %2203 = vmatmul.mubr.f32.gmra.mrb[0].mxu0 %v1989
    %v2204 = vpop.f32.mrb[0].mxu0
    %v2205 = vadd.f32 %v2032, %v2204
    %v2206 = vpop.f32.mrb[0].mxu0
    %2207 = vmatprep.mubr.f32.mxu0 0.0
    %2208 = vmatmul.mubr.f32.gmra.mrb[0].mxu0 %v1990
    %v2209 = vpop.f32.mrb[0].mxu0
    %v2210 = vadd.f32 %v2032, %v2209
    %v2211 = vpop.f32.mrb[0].mxu0
    %2212 = vmatprep.mubr.f32.mxu0 0.0
    %2213 = vmatmul.mubr.f32.gmra.mrb[0].mxu0 %v1991
    %v2214 = vpop.f32.mrb[0].mxu0
    %v2215 = vadd.f32 %v2032, %v2214
    %v2216 = vpop.f32.mrb[0].mxu0
    %2217 = vmatprep.mubr.f32.mxu0 0.0
    %2218 = vmatmul.mubr.f32.gmra.mrb[0].mxu0 %v1992
    %v2219 = vpop.f32.mrb[0].mxu0
    %v2220 = vadd.f32 %v2032, %v2219
    %v2221 = vpop.f32.mrb[0].mxu0
    %2222 = vmatprep.mubr.f32.mxu0 0.0
    %2223 = vmatmul.mubr.f32.gmra.mrb[0].mxu0 %v1993
    %v2224 = vpop.f32.mrb[0].mxu0
    %v2225 = vadd.f32 %v2032, %v2224
    %v2226 = vpop.f32.mrb[0].mxu0
    %2227 = vmatprep.mubr.f32.mxu0 0.0
    %2228 = vmatmul.mubr.f32.gmra.mrb[0].mxu0 %v1994
    %v2229 = vpop.f32.mrb[0].mxu0
    %v2230 = vadd.f32 %v2032, %v2229
    %v2231 = vpop.f32.mrb[0].mxu0
    %2232 = vmatprep.mubr.f32.mxu0 0.0
    %2233 = vmatmul.mubr.f32.gmra.mrb[0].mxu0 %v1995
    %v2234 = vpop.f32.mrb[0].mxu0
    %v2235 = vadd.f32 %v2032, %v2234
    %v2236 = vpop.f32.mrb[0].mxu0
    %2237 = vmatprep.mubr.f32.mxu0 0.0
    %2238 = vmatmul.mubr.f32.gmra.mrb[0].mxu0 %v1996
    %v2239 = vpop.f32.mrb[0].mxu0
    %v2240 = vadd.f32 %v2032, %v2239
    %v2241 = vpop.f32.mrb[0].mxu0
    %2242 = vmatprep.mubr.f32.mxu0 0.0
    %2243 = vmatmul.mubr.f32.gmra.mrb[0].mxu0 %v1997
    %v2244 = vpop.f32.mrb[0].mxu0
    %v2245 = vadd.f32 %v2032, %v2244
    %v2246 = vpop.f32.mrb[0].mxu0
    %2247 = vmatprep.mubr.f32.mxu0 0.0
    %2248 = vmatmul.mubr.f32.gmra.mrb[0].mxu0 %v1998
    %v2249 = vpop.f32.mrb[0].mxu0
    %v2250 = vadd.f32 %v2032, %v2249
    %v2251 = vpop.f32.mrb[0].mxu0
    %2252 = vmatprep.mubr.f32.mxu0 0.0
    %2253 = vmatmul.mubr.f32.gmra.mrb[0].mxu0 %v1999
    %v2254 = vpop.f32.mrb[0].mxu0
    %v2255 = vadd.f32 %v2032, %v2254
    %v2256 = vpop.f32.mrb[0].mxu0
    %2257 = vdwg.mxu0
    %v2258 = vmax.f32 %v2100, 0.0
    %v2259 = vmax.f32 %v2105, 0.0
    %v2260 = vmax.f32 %v2110, 0.0
    %v2261 = vmax.f32 %v2115, 0.0
    %v2262 = vmax.f32 %v2120, 0.0
    %v2263 = vmax.f32 %v2125, 0.0
    %v2264 = vmax.f32 %v2130, 0.0
    %v2265 = vmax.f32 %v2135, 0.0
    %v2266 = vmax.f32 %v2140, 0.0
    %v2267 = vmax.f32 %v2145, 0.0
    %v2268 = vmax.f32 %v2150, 0.0
    %v2269 = vmax.f32 %v2155, 0.0
    %v2270 = vmax.f32 %v2160, 0.0
    %v2271 = vmax.f32 %v2165, 0.0
    %v2272 = vmax.f32 %v2170, 0.0
    %v2273 = vmax.f32 %v2175, 0.0
    %v2274 = vmax.f32 %v2180, 0.0
    %v2275 = vmax.f32 %v2185, 0.0
    %v2276 = vmax.f32 %v2190, 0.0
    %v2277 = vmax.f32 %v2195, 0.0
    %v2278 = vmax.f32 %v2200, 0.0
    %v2279 = vmax.f32 %v2205, 0.0
    %v2280 = vmax.f32 %v2210, 0.0
    %v2281 = vmax.f32 %v2215, 0.0
    %v2282 = vmax.f32 %v2220, 0.0
    %v2283 = vmax.f32 %v2225, 0.0
    %v2284 = vmax.f32 %v2230, 0.0
    %v2285 = vmax.f32 %v2235, 0.0
    %v2286 = vmax.f32 %v2240, 0.0
    %v2287 = vmax.f32 %v2245, 0.0
    %v2288 = vmax.f32 %v2250, 0.0
    %v2289 = vmax.f32 %v2255, 0.0
    %v2290 = vld [vmem:[#allocation2 + $0x144] sm:$0xf]
    %v2291 = vld [vmem:[#allocation2 + $0x148] sm:$0xf]
    %v2292 = vld [vmem:[#allocation2 + $0x14c] sm:$0xf]
    %v2293 = vld [vmem:[#allocation2 + $0x150] sm:$0xf]
    %v2294 = vld [vmem:[#allocation2 + $0x154] sm:$0xf]
    %v2295 = vld [vmem:[#allocation2 + $0x158] sm:$0xf]
    %v2296 = vld [vmem:[#allocation2 + $0x15c] sm:$0xf]
    %v2297 = vld [vmem:[#allocation2 + $0x160] sm:$0xf]
    %v2298 = vld [vmem:[#allocation2 + $0x164] sm:$0xf]
    %v2299 = vld [vmem:[#allocation2 + $0x168] sm:$0xf]
    %v2300 = vld [vmem:[#allocation2 + $0x16c] sm:$0xf]
    %v2301 = vld [vmem:[#allocation2 + $0x170] sm:$0xf]
    %v2302 = vld [vmem:[#allocation2 + $0x174] sm:$0xf]
    %v2303 = vld [vmem:[#allocation2 + $0x178] sm:$0xf]
    %v2304 = vld [vmem:[#allocation2 + $0x17c] sm:$0xf]
    %v2305 = vld [vmem:[#allocation2 + $0x180] sm:$0xf]
    %v2306 = vunpack.c.l.bf16 %v2290
    %v2307 = vunpack.c.l.bf16 %v2291
    %v2308 = vunpack.c.l.bf16 %v2292
    %v2309 = vunpack.c.l.bf16 %v2293
    %v2310 = vunpack.c.l.bf16 %v2294
    %v2311 = vunpack.c.l.bf16 %v2295
    %v2312 = vunpack.c.l.bf16 %v2296
    %v2313 = vunpack.c.l.bf16 %v2297
    %v2314 = vunpack.c.l.bf16 %v2298
    %v2315 = vunpack.c.l.bf16 %v2299
    %v2316 = vunpack.c.l.bf16 %v2300
    %v2317 = vunpack.c.l.bf16 %v2301
    %v2318 = vunpack.c.l.bf16 %v2302
    %v2319 = vunpack.c.l.bf16 %v2303
    %v2320 = vunpack.c.l.bf16 %v2304
    %v2321 = vunpack.c.l.bf16 %v2305
    %v2322 = vld [vmem:[%s2 + $0x5] ss:$0 sm:$0xff]
    %2323 = vmatprep.subr.mxu0 0.0
    %2324 = vmatpush1.msra.mxu0 %v2306
    %2325 = vmatprep.subr.mxu0 0.0
    %2326 = vmatpush1.msra.mxu0 %v2307
    %2327 = vmatprep.subr.mxu0 0.0
    %2328 = vmatpush1.msra.mxu0 %v2308
    %2329 = vmatprep.subr.mxu0 0.0
    %2330 = vmatpush1.msra.mxu0 %v2309
    %2331 = vmatprep.subr.mxu0 0.0
    %2332 = vmatpush1.msra.mxu0 %v2310
    %2333 = vmatprep.subr.mxu0 0.0
    %2334 = vmatpush1.msra.mxu0 %v2311
    %2335 = vmatprep.subr.mxu0 0.0
    %2336 = vmatpush1.msra.mxu0 %v2312
    %2337 = vmatprep.subr.mxu0 0.0
    %2338 = vmatpush1.msra.mxu0 %v2313
    %2339 = vmatprep.subr.mxu0 0.0
    %2340 = vmatpush1.msra.mxu0 %v2314
    %2341 = vmatprep.subr.mxu0 0.0
    %2342 = vmatpush1.msra.mxu0 %v2315
    %2343 = vmatprep.subr.mxu0 0.0
    %2344 = vmatpush1.msra.mxu0 %v2316
    %2345 = vmatprep.subr.mxu0 0.0
    %2346 = vmatpush1.msra.mxu0 %v2317
    %2347 = vmatprep.subr.mxu0 0.0
    %2348 = vmatpush1.msra.mxu0 %v2318
    %2349 = vmatprep.subr.mxu0 0.0
    %2350 = vmatpush1.msra.mxu0 %v2319
    %2351 = vmatprep.subr.mxu0 0.0
    %2352 = vmatpush1.msra.mxu0 %v2320
    %2353 = vmatprep.subr.mxu0 0.0
    %2354 = vmatpush1.msra.mxu0 %v2321
    %2355 = vmatprep.subr.mxu0 0.0
    %2356 = vmatpush1.msra.mxu0 0.0
    %2357 = vmatprep.subr.mxu0 0.0
    %2358 = vmatpush1.msra.mxu0 0.0
    %2359 = vmatprep.subr.mxu0 0.0
    %2360 = vmatpush1.msra.mxu0 0.0
    %2361 = vmatprep.subr.mxu0 0.0
    %2362 = vmatpush1.msra.mxu0 0.0
    %2363 = vmatprep.subr.mxu0 0.0
    %2364 = vmatpush1.msra.mxu0 0.0
    %2365 = vmatprep.subr.mxu0 0.0
    %2366 = vmatpush1.msra.mxu0 0.0
    %2367 = vmatprep.subr.mxu0 0.0
    %2368 = vmatpush1.msra.mxu0 0.0
    %2369 = vmatprep.subr.mxu0 0.0
    %2370 = vmatpush1.msra.mxu0 0.0
    %2371 = vmatprep.subr.mxu0 0.0
    %2372 = vmatpush1.msra.mxu0 0.0
    %2373 = vmatprep.subr.mxu0 0.0
    %2374 = vmatpush1.msra.mxu0 0.0
    %2375 = vmatprep.subr.mxu0 0.0
    %2376 = vmatpush1.msra.mxu0 0.0
    %2377 = vmatprep.subr.mxu0 0.0
    %2378 = vmatpush1.msra.mxu0 0.0
    %2379 = vmatprep.subr.mxu0 0.0
    %2380 = vmatpush1.msra.mxu0 0.0
    %2381 = vmatprep.subr.mxu0 0.0
    %2382 = vmatpush1.msra.mxu0 0.0
    %2383 = vmatprep.subr.mxu0 0.0
    %2384 = vmatpush1.msra.mxu0 0.0
    %2385 = vmatprep.subr.mxu0 0.0
    %2386 = vmatpush1.msra.mxu0 0.0
    %2387 = vmatprep.mubr.f32.mxu0 0.0
    %2388 = vmatmul.mubr.f32.gmra.mrb[0].mxu0 %v2258
    %v2389 = vpop.f32.mrb[0].mxu0
    %v2390 = vadd.f32 %v2322, %v2389
    %v2391 = vpop.f32.mrb[0].mxu0
    %2392 = vmatprep.mubr.f32.mxu0 0.0
    %2393 = vmatmul.mubr.f32.gmra.mrb[0].mxu0 %v2259
    %v2394 = vpop.f32.mrb[0].mxu0
    %v2395 = vadd.f32 %v2322, %v2394
    %v2396 = vpop.f32.mrb[0].mxu0
    %2397 = vmatprep.mubr.f32.mxu0 0.0
    %2398 = vmatmul.mubr.f32.gmra.mrb[0].mxu0 %v2260
    %v2399 = vpop.f32.mrb[0].mxu0
    %v2400 = vadd.f32 %v2322, %v2399
    %v2401 = vpop.f32.mrb[0].mxu0
    %2402 = vmatprep.mubr.f32.mxu0 0.0
    %2403 = vmatmul.mubr.f32.gmra.mrb[0].mxu0 %v2261
    %v2404 = vpop.f32.mrb[0].mxu0
    %v2405 = vadd.f32 %v2322, %v2404
    %v2406 = vpop.f32.mrb[0].mxu0
    %2407 = vmatprep.mubr.f32.mxu0 0.0
    %2408 = vmatmul.mubr.f32.gmra.mrb[0].mxu0 %v2262
    %v2409 = vpop.f32.mrb[0].mxu0
    %v2410 = vadd.f32 %v2322, %v2409
    %v2411 = vpop.f32.mrb[0].mxu0
    %2412 = vmatprep.mubr.f32.mxu0 0.0
    %2413 = vmatmul.mubr.f32.gmra.mrb[0].mxu0 %v2263
    %v2414 = vpop.f32.mrb[0].mxu0
    %v2415 = vadd.f32 %v2322, %v2414
    %v2416 = vpop.f32.mrb[0].mxu0
    %2417 = vmatprep.mubr.f32.mxu0 0.0
    %2418 = vmatmul.mubr.f32.gmra.mrb[0].mxu0 %v2264
    %v2419 = vpop.f32.mrb[0].mxu0
    %v2420 = vadd.f32 %v2322, %v2419
    %v2421 = vpop.f32.mrb[0].mxu0
    %2422 = vmatprep.mubr.f32.mxu0 0.0
    %2423 = vmatmul.mubr.f32.gmra.mrb[0].mxu0 %v2265
    %v2424 = vpop.f32.mrb[0].mxu0
    %v2425 = vadd.f32 %v2322, %v2424
    %v2426 = vpop.f32.mrb[0].mxu0
    %2427 = vmatprep.mubr.f32.mxu0 0.0
    %2428 = vmatmul.mubr.f32.gmra.mrb[0].mxu0 %v2266
    %v2429 = vpop.f32.mrb[0].mxu0
    %v2430 = vadd.f32 %v2322, %v2429
    %v2431 = vpop.f32.mrb[0].mxu0
    %2432 = vmatprep.mubr.f32.mxu0 0.0
    %2433 = vmatmul.mubr.f32.gmra.mrb[0].mxu0 %v2267
    %v2434 = vpop.f32.mrb[0].mxu0
    %v2435 = vadd.f32 %v2322, %v2434
    %v2436 = vpop.f32.mrb[0].mxu0
    %2437 = vmatprep.mubr.f32.mxu0 0.0
    %2438 = vmatmul.mubr.f32.gmra.mrb[0].mxu0 %v2268
    %v2439 = vpop.f32.mrb[0].mxu0
    %v2440 = vadd.f32 %v2322, %v2439
    %v2441 = vpop.f32.mrb[0].mxu0
    %2442 = vmatprep.mubr.f32.mxu0 0.0
    %2443 = vmatmul.mubr.f32.gmra.mrb[0].mxu0 %v2269
    %v2444 = vpop.f32.mrb[0].mxu0
    %v2445 = vadd.f32 %v2322, %v2444
    %v2446 = vpop.f32.mrb[0].mxu0
    %2447 = vmatprep.mubr.f32.mxu0 0.0
    %2448 = vmatmul.mubr.f32.gmra.mrb[0].mxu0 %v2270
    %v2449 = vpop.f32.mrb[0].mxu0
    %v2450 = vadd.f32 %v2322, %v2449
    %v2451 = vpop.f32.mrb[0].mxu0
    %2452 = vmatprep.mubr.f32.mxu0 0.0
    %2453 = vmatmul.mubr.f32.gmra.mrb[0].mxu0 %v2271
    %v2454 = vpop.f32.mrb[0].mxu0
    %v2455 = vadd.f32 %v2322, %v2454
    %v2456 = vpop.f32.mrb[0].mxu0
    %2457 = vmatprep.mubr.f32.mxu0 0.0
    %2458 = vmatmul.mubr.f32.gmra.mrb[0].mxu0 %v2272
    %v2459 = vpop.f32.mrb[0].mxu0
    %v2460 = vadd.f32 %v2322, %v2459
    %v2461 = vpop.f32.mrb[0].mxu0
    %2462 = vmatprep.mubr.f32.mxu0 0.0
    %2463 = vmatmul.mubr.f32.gmra.mrb[0].mxu0 %v2273
    %v2464 = vpop.f32.mrb[0].mxu0
    %v2465 = vadd.f32 %v2322, %v2464
    %v2466 = vpop.f32.mrb[0].mxu0
    %2467 = vmatprep.mubr.f32.mxu0 0.0
    %2468 = vmatmul.mubr.f32.gmra.mrb[0].mxu0 %v2274
    %v2469 = vpop.f32.mrb[0].mxu0
    %v2470 = vadd.f32 %v2322, %v2469
    %v2471 = vpop.f32.mrb[0].mxu0
    %2472 = vmatprep.mubr.f32.mxu0 0.0
    %2473 = vmatmul.mubr.f32.gmra.mrb[0].mxu0 %v2275
    %v2474 = vpop.f32.mrb[0].mxu0
    %v2475 = vadd.f32 %v2322, %v2474
    %v2476 = vpop.f32.mrb[0].mxu0
    %2477 = vmatprep.mubr.f32.mxu0 0.0
    %2478 = vmatmul.mubr.f32.gmra.mrb[0].mxu0 %v2276
    %v2479 = vpop.f32.mrb[0].mxu0
    %v2480 = vadd.f32 %v2322, %v2479
    %v2481 = vpop.f32.mrb[0].mxu0
    %2482 = vmatprep.mubr.f32.mxu0 0.0
    %2483 = vmatmul.mubr.f32.gmra.mrb[0].mxu0 %v2277
    %v2484 = vpop.f32.mrb[0].mxu0
    %v2485 = vadd.f32 %v2322, %v2484
    %v2486 = vpop.f32.mrb[0].mxu0
    %2487 = vmatprep.mubr.f32.mxu0 0.0
    %2488 = vmatmul.mubr.f32.gmra.mrb[0].mxu0 %v2278
    %v2489 = vpop.f32.mrb[0].mxu0
    %v2490 = vadd.f32 %v2322, %v2489
    %v2491 = vpop.f32.mrb[0].mxu0
    %2492 = vmatprep.mubr.f32.mxu0 0.0
    %2493 = vmatmul.mubr.f32.gmra.mrb[0].mxu0 %v2279
    %v2494 = vpop.f32.mrb[0].mxu0
    %v2495 = vadd.f32 %v2322, %v2494
    %v2496 = vpop.f32.mrb[0].mxu0
    %2497 = vmatprep.mubr.f32.mxu0 0.0
    %2498 = vmatmul.mubr.f32.gmra.mrb[0].mxu0 %v2280
    %v2499 = vpop.f32.mrb[0].mxu0
    %v2500 = vadd.f32 %v2322, %v2499
    %v2501 = vpop.f32.mrb[0].mxu0
    %2502 = vmatprep.mubr.f32.mxu0 0.0
    %2503 = vmatmul.mubr.f32.gmra.mrb[0].mxu0 %v2281
    %v2504 = vpop.f32.mrb[0].mxu0
    %v2505 = vadd.f32 %v2322, %v2504
    %v2506 = vpop.f32.mrb[0].mxu0
    %2507 = vmatprep.mubr.f32.mxu0 0.0
    %2508 = vmatmul.mubr.f32.gmra.mrb[0].mxu0 %v2282
    %v2509 = vpop.f32.mrb[0].mxu0
    %v2510 = vadd.f32 %v2322, %v2509
    %v2511 = vpop.f32.mrb[0].mxu0
    %2512 = vmatprep.mubr.f32.mxu0 0.0
    %2513 = vmatmul.mubr.f32.gmra.mrb[0].mxu0 %v2283
    %v2514 = vpop.f32.mrb[0].mxu0
    %v2515 = vadd.f32 %v2322, %v2514
    %v2516 = vpop.f32.mrb[0].mxu0
    %2517 = vmatprep.mubr.f32.mxu0 0.0
    %2518 = vmatmul.mubr.f32.gmra.mrb[0].mxu0 %v2284
    %v2519 = vpop.f32.mrb[0].mxu0
    %v2520 = vadd.f32 %v2322, %v2519
    %v2521 = vpop.f32.mrb[0].mxu0
    %2522 = vmatprep.mubr.f32.mxu0 0.0
    %2523 = vmatmul.mubr.f32.gmra.mrb[0].mxu0 %v2285
    %v2524 = vpop.f32.mrb[0].mxu0
    %v2525 = vadd.f32 %v2322, %v2524
    %v2526 = vpop.f32.mrb[0].mxu0
    %2527 = vmatprep.mubr.f32.mxu0 0.0
    %2528 = vmatmul.mubr.f32.gmra.mrb[0].mxu0 %v2286
    %v2529 = vpop.f32.mrb[0].mxu0
    %v2530 = vadd.f32 %v2322, %v2529
    %v2531 = vpop.f32.mrb[0].mxu0
    %2532 = vmatprep.mubr.f32.mxu0 0.0
    %2533 = vmatmul.mubr.f32.gmra.mrb[0].mxu0 %v2287
    %v2534 = vpop.f32.mrb[0].mxu0
    %v2535 = vadd.f32 %v2322, %v2534
    %v2536 = vpop.f32.mrb[0].mxu0
    %2537 = vmatprep.mubr.f32.mxu0 0.0
    %2538 = vmatmul.mubr.f32.gmra.mrb[0].mxu0 %v2288
    %v2539 = vpop.f32.mrb[0].mxu0
    %v2540 = vadd.f32 %v2322, %v2539
    %v2541 = vpop.f32.mrb[0].mxu0
    %2542 = vmatprep.mubr.f32.mxu0 0.0
    %2543 = vmatmul.mubr.f32.gmra.mrb[0].mxu0 %v2289
    %v2544 = vpop.f32.mrb[0].mxu0
    %v2545 = vadd.f32 %v2322, %v2544
    %v2546 = vpop.f32.mrb[0].mxu0
    %2547 = vdwg.mxu0
    %v2548 = vmax.f32 %v2390, -20.0
    %v2549 = vmax.f32 %v2395, -20.0
    %v2550 = vmax.f32 %v2400, -20.0
    %v2551 = vmax.f32 %v2405, -20.0
    %v2552 = vmax.f32 %v2410, -20.0
    %v2553 = vmax.f32 %v2415, -20.0
    %v2554 = vmax.f32 %v2420, -20.0
    %v2555 = vmax.f32 %v2425, -20.0
    %v2556 = vmax.f32 %v2430, -20.0
    %v2557 = vmax.f32 %v2435, -20.0
    %v2558 = vmax.f32 %v2440, -20.0
    %v2559 = vmax.f32 %v2445, -20.0
    %v2560 = vmax.f32 %v2450, -20.0
    %v2561 = vmax.f32 %v2455, -20.0
    %v2562 = vmax.f32 %v2460, -20.0
    %v2563 = vmax.f32 %v2465, -20.0
    %v2564 = vmax.f32 %v2470, -20.0
    %v2565 = vmax.f32 %v2475, -20.0
    %v2566 = vmax.f32 %v2480, -20.0
    %v2567 = vmax.f32 %v2485, -20.0
    %v2568 = vmax.f32 %v2490, -20.0
    %v2569 = vmax.f32 %v2495, -20.0
    %v2570 = vmax.f32 %v2500, -20.0
    %v2571 = vmax.f32 %v2505, -20.0
    %v2572 = vmax.f32 %v2510, -20.0
    %v2573 = vmax.f32 %v2515, -20.0
    %v2574 = vmax.f32 %v2520, -20.0
    %v2575 = vmax.f32 %v2525, -20.0
    %v2576 = vmax.f32 %v2530, -20.0
    %v2577 = vmax.f32 %v2535, -20.0
    %v2578 = vmax.f32 %v2540, -20.0
    %v2579 = vmax.f32 %v2545, -20.0
    %v2580 = vmin.f32 %v2548, 20.0
    %v2581 = vmin.f32 %v2549, 20.0
    %v2582 = vmin.f32 %v2550, 20.0
    %v2583 = vmin.f32 %v2551, 20.0
    %v2584 = vmin.f32 %v2552, 20.0
    %v2585 = vmin.f32 %v2553, 20.0
    %v2586 = vmin.f32 %v2554, 20.0
    %v2587 = vmin.f32 %v2555, 20.0
    %v2588 = vmin.f32 %v2556, 20.0
    %v2589 = vmin.f32 %v2557, 20.0
    %v2590 = vmin.f32 %v2558, 20.0
    %v2591 = vmin.f32 %v2559, 20.0
    %v2592 = vmin.f32 %v2560, 20.0
    %v2593 = vmin.f32 %v2561, 20.0
    %v2594 = vmin.f32 %v2562, 20.0
    %v2595 = vmin.f32 %v2563, 20.0
    %v2596 = vmin.f32 %v2564, 20.0
    %v2597 = vmin.f32 %v2565, 20.0
    %v2598 = vmin.f32 %v2566, 20.0
    %v2599 = vmin.f32 %v2567, 20.0
    %v2600 = vmin.f32 %v2568, 20.0
    %v2601 = vmin.f32 %v2569, 20.0
    %v2602 = vmin.f32 %v2570, 20.0
    %v2603 = vmin.f32 %v2571, 20.0
    %v2604 = vmin.f32 %v2572, 20.0
    %v2605 = vmin.f32 %v2573, 20.0
    %v2606 = vmin.f32 %v2574, 20.0
    %v2607 = vmin.f32 %v2575, 20.0
    %v2608 = vmin.f32 %v2576, 20.0
    %v2609 = vmin.f32 %v2577, 20.0
    %v2610 = vmin.f32 %v2578, 20.0
    %v2611 = vmin.f32 %v2579, 20.0
    %vm2612 = vcmask 130048
    %v2613 = vsel %vm2612, %v2580, -inf
    %2614 = vmax.xlane.f32.xlu0 %v2613
    %v2615 = vpop.xlane.xlu0 %2614
    %v2616 = vsel %vm2612, %v2581, -inf
    %2617 = vmax.xlane.f32.xlu0 %v2616
    %v2618 = vpop.xlane.xlu0 %2617
    %v2619 = vsel %vm2612, %v2582, -inf
    %2620 = vmax.xlane.f32.xlu0 %v2619
    %v2621 = vpop.xlane.xlu0 %2620
    %v2622 = vsel %vm2612, %v2583, -inf
    %2623 = vmax.xlane.f32.xlu0 %v2622
    %v2624 = vpop.xlane.xlu0 %2623
    %v2625 = vsel %vm2612, %v2584, -inf
    %2626 = vmax.xlane.f32.xlu0 %v2625
    %v2627 = vpop.xlane.xlu0 %2626
    %v2628 = vsel %vm2612, %v2585, -inf
    %2629 = vmax.xlane.f32.xlu0 %v2628
    %v2630 = vpop.xlane.xlu0 %2629
    %v2631 = vsel %vm2612, %v2586, -inf
    %2632 = vmax.xlane.f32.xlu0 %v2631
    %v2633 = vpop.xlane.xlu0 %2632
    %v2634 = vsel %vm2612, %v2587, -inf
    %2635 = vmax.xlane.f32.xlu0 %v2634
    %v2636 = vpop.xlane.xlu0 %2635
    %v2637 = vsel %vm2612, %v2588, -inf
    %2638 = vmax.xlane.f32.xlu0 %v2637
    %v2639 = vpop.xlane.xlu0 %2638
    %v2640 = vsel %vm2612, %v2589, -inf
    %2641 = vmax.xlane.f32.xlu0 %v2640
    %v2642 = vpop.xlane.xlu0 %2641
    %v2643 = vsel %vm2612, %v2590, -inf
    %2644 = vmax.xlane.f32.xlu0 %v2643
    %v2645 = vpop.xlane.xlu0 %2644
    %v2646 = vsel %vm2612, %v2591, -inf
    %2647 = vmax.xlane.f32.xlu0 %v2646
    %v2648 = vpop.xlane.xlu0 %2647
    %v2649 = vsel %vm2612, %v2592, -inf
    %2650 = vmax.xlane.f32.xlu0 %v2649
    %v2651 = vpop.xlane.xlu0 %2650
    %v2652 = vsel %vm2612, %v2593, -inf
    %2653 = vmax.xlane.f32.xlu0 %v2652
    %v2654 = vpop.xlane.xlu0 %2653
    %v2655 = vsel %vm2612, %v2594, -inf
    %2656 = vmax.xlane.f32.xlu0 %v2655
    %v2657 = vpop.xlane.xlu0 %2656
    %v2658 = vsel %vm2612, %v2595, -inf
    %2659 = vmax.xlane.f32.xlu0 %v2658
    %v2660 = vpop.xlane.xlu0 %2659
    %v2661 = vsel %vm2612, %v2596, -inf
    %2662 = vmax.xlane.f32.xlu0 %v2661
    %v2663 = vpop.xlane.xlu0 %2662
    %v2664 = vsel %vm2612, %v2597, -inf
    %2665 = vmax.xlane.f32.xlu0 %v2664
    %v2666 = vpop.xlane.xlu0 %2665
    %v2667 = vsel %vm2612, %v2598, -inf
    %2668 = vmax.xlane.f32.xlu0 %v2667
    %v2669 = vpop.xlane.xlu0 %2668
    %v2670 = vsel %vm2612, %v2599, -inf
    %2671 = vmax.xlane.f32.xlu0 %v2670
    %v2672 = vpop.xlane.xlu0 %2671
    %v2673 = vsel %vm2612, %v2600, -inf
    %2674 = vmax.xlane.f32.xlu0 %v2673
    %v2675 = vpop.xlane.xlu0 %2674
    %v2676 = vsel %vm2612, %v2601, -inf
    %2677 = vmax.xlane.f32.xlu0 %v2676
    %v2678 = vpop.xlane.xlu0 %2677
    %v2679 = vsel %vm2612, %v2602, -inf
    %2680 = vmax.xlane.f32.xlu0 %v2679
    %v2681 = vpop.xlane.xlu0 %2680
    %v2682 = vsel %vm2612, %v2603, -inf
    %2683 = vmax.xlane.f32.xlu0 %v2682
    %v2684 = vpop.xlane.xlu0 %2683
    %v2685 = vsel %vm2612, %v2604, -inf
    %2686 = vmax.xlane.f32.xlu0 %v2685
    %v2687 = vpop.xlane.xlu0 %2686
    %v2688 = vsel %vm2612, %v2605, -inf
    %2689 = vmax.xlane.f32.xlu0 %v2688
    %v2690 = vpop.xlane.xlu0 %2689
    %v2691 = vsel %vm2612, %v2606, -inf
    %2692 = vmax.xlane.f32.xlu0 %v2691
    %v2693 = vpop.xlane.xlu0 %2692
    %v2694 = vsel %vm2612, %v2607, -inf
    %2695 = vmax.xlane.f32.xlu0 %v2694
    %v2696 = vpop.xlane.xlu0 %2695
    %v2697 = vsel %vm2612, %v2608, -inf
    %2698 = vmax.xlane.f32.xlu0 %v2697
    %v2699 = vpop.xlane.xlu0 %2698
    %v2700 = vsel %vm2612, %v2609, -inf
    %2701 = vmax.xlane.f32.xlu0 %v2700
    %v2702 = vpop.xlane.xlu0 %2701
    %v2703 = vsel %vm2612, %v2610, -inf
    %2704 = vmax.xlane.f32.xlu0 %v2703
    %v2705 = vpop.xlane.xlu0 %2704
    %v2706 = vsel %vm2612, %v2611, -inf
    %2707 = vmax.xlane.f32.xlu0 %v2706
    %v2708 = vpop.xlane.xlu0 %2707
    %v2709 = vsub.f32 %v2580, %v2615
    %v2710 = vsub.f32 %v2581, %v2618
    %v2711 = vsub.f32 %v2582, %v2621
    %v2712 = vsub.f32 %v2583, %v2624
    %v2713 = vsub.f32 %v2584, %v2627
    %v2714 = vsub.f32 %v2585, %v2630
    %v2715 = vsub.f32 %v2586, %v2633
    %v2716 = vsub.f32 %v2587, %v2636
    %v2717 = vsub.f32 %v2588, %v2639
    %v2718 = vsub.f32 %v2589, %v2642
    %v2719 = vsub.f32 %v2590, %v2645
    %v2720 = vsub.f32 %v2591, %v2648
    %v2721 = vsub.f32 %v2592, %v2651
    %v2722 = vsub.f32 %v2593, %v2654
    %v2723 = vsub.f32 %v2594, %v2657
    %v2724 = vsub.f32 %v2595, %v2660
    %v2725 = vsub.f32 %v2596, %v2663
    %v2726 = vsub.f32 %v2597, %v2666
    %v2727 = vsub.f32 %v2598, %v2669
    %v2728 = vsub.f32 %v2599, %v2672
    %v2729 = vsub.f32 %v2600, %v2675
    %v2730 = vsub.f32 %v2601, %v2678
    %v2731 = vsub.f32 %v2602, %v2681
    %v2732 = vsub.f32 %v2603, %v2684
    %v2733 = vsub.f32 %v2604, %v2687
    %v2734 = vsub.f32 %v2605, %v2690
    %v2735 = vsub.f32 %v2606, %v2693
    %v2736 = vsub.f32 %v2607, %v2696
    %v2737 = vsub.f32 %v2608, %v2699
    %v2738 = vsub.f32 %v2609, %v2702
    %v2739 = vsub.f32 %v2610, %v2705
    %v2740 = vsub.f32 %v2611, %v2708
    %v2741 = vmul.f32 %v2709, 1.442695
    %v2742 = vpow.pop %v2741
    %v2743 = vmul.f32 %v2710, 1.442695
    %v2744 = vpow.pop %v2743
    %v2745 = vmul.f32 %v2711, 1.442695
    %v2746 = vpow.pop %v2745
    %v2747 = vmul.f32 %v2712, 1.442695
    %v2748 = vpow.pop %v2747
    %v2749 = vmul.f32 %v2713, 1.442695
    %v2750 = vpow.pop %v2749
    %v2751 = vmul.f32 %v2714, 1.442695
    %v2752 = vpow.pop %v2751
    %v2753 = vmul.f32 %v2715, 1.442695
    %v2754 = vpow.pop %v2753
    %v2755 = vmul.f32 %v2716, 1.442695
    %v2756 = vpow.pop %v2755
    %v2757 = vmul.f32 %v2717, 1.442695
    %v2758 = vpow.pop %v2757
    %v2759 = vmul.f32 %v2718, 1.442695
    %v2760 = vpow.pop %v2759
    %v2761 = vmul.f32 %v2719, 1.442695
    %v2762 = vpow.pop %v2761
    %v2763 = vmul.f32 %v2720, 1.442695
    %v2764 = vpow.pop %v2763
    %v2765 = vmul.f32 %v2721, 1.442695
    %v2766 = vpow.pop %v2765
    %v2767 = vmul.f32 %v2722, 1.442695
    %v2768 = vpow.pop %v2767
    %v2769 = vmul.f32 %v2723, 1.442695
    %v2770 = vpow.pop %v2769
    %v2771 = vmul.f32 %v2724, 1.442695
    %v2772 = vpow.pop %v2771
    %v2773 = vmul.f32 %v2725, 1.442695
    %v2774 = vpow.pop %v2773
    %v2775 = vmul.f32 %v2726, 1.442695
    %v2776 = vpow.pop %v2775
    %v2777 = vmul.f32 %v2727, 1.442695
    %v2778 = vpow.pop %v2777
    %v2779 = vmul.f32 %v2728, 1.442695
    %v2780 = vpow.pop %v2779
    %v2781 = vmul.f32 %v2729, 1.442695
    %v2782 = vpow.pop %v2781
    %v2783 = vmul.f32 %v2730, 1.442695
    %v2784 = vpow.pop %v2783
    %v2785 = vmul.f32 %v2731, 1.442695
    %v2786 = vpow.pop %v2785
    %v2787 = vmul.f32 %v2732, 1.442695
    %v2788 = vpow.pop %v2787
    %v2789 = vmul.f32 %v2733, 1.442695
    %v2790 = vpow.pop %v2789
    %v2791 = vmul.f32 %v2734, 1.442695
    %v2792 = vpow.pop %v2791
    %v2793 = vmul.f32 %v2735, 1.442695
    %v2794 = vpow.pop %v2793
    %v2795 = vmul.f32 %v2736, 1.442695
    %v2796 = vpow.pop %v2795
    %v2797 = vmul.f32 %v2737, 1.442695
    %v2798 = vpow.pop %v2797
    %v2799 = vmul.f32 %v2738, 1.442695
    %v2800 = vpow.pop %v2799
    %v2801 = vmul.f32 %v2739, 1.442695
    %v2802 = vpow.pop %v2801
    %v2803 = vmul.f32 %v2740, 1.442695
    %v2804 = vpow.pop %v2803
    %v2805 = vsel %vm2612, %v2742, 0.0
    %2806 = vadd.xlane.f32.xlu0 %v2805
    %v2807 = vpop.xlane.xlu0 %2806
    %v2808 = vsel %vm2612, %v2744, 0.0
    %2809 = vadd.xlane.f32.xlu0 %v2808
    %v2810 = vpop.xlane.xlu0 %2809
    %v2811 = vsel %vm2612, %v2746, 0.0
    %2812 = vadd.xlane.f32.xlu0 %v2811
    %v2813 = vpop.xlane.xlu0 %2812
    %v2814 = vsel %vm2612, %v2748, 0.0
    %2815 = vadd.xlane.f32.xlu0 %v2814
    %v2816 = vpop.xlane.xlu0 %2815
    %v2817 = vsel %vm2612, %v2750, 0.0
    %2818 = vadd.xlane.f32.xlu0 %v2817
    %v2819 = vpop.xlane.xlu0 %2818
    %v2820 = vsel %vm2612, %v2752, 0.0
    %2821 = vadd.xlane.f32.xlu0 %v2820
    %v2822 = vpop.xlane.xlu0 %2821
    %v2823 = vsel %vm2612, %v2754, 0.0
    %2824 = vadd.xlane.f32.xlu0 %v2823
    %v2825 = vpop.xlane.xlu0 %2824
    %v2826 = vsel %vm2612, %v2756, 0.0
    %2827 = vadd.xlane.f32.xlu0 %v2826
    %v2828 = vpop.xlane.xlu0 %2827
    %v2829 = vsel %vm2612, %v2758, 0.0
    %2830 = vadd.xlane.f32.xlu0 %v2829
    %v2831 = vpop.xlane.xlu0 %2830
    %v2832 = vsel %vm2612, %v2760, 0.0
    %2833 = vadd.xlane.f32.xlu0 %v2832
    %v2834 = vpop.xlane.xlu0 %2833
    %v2835 = vsel %vm2612, %v2762, 0.0
    %2836 = vadd.xlane.f32.xlu0 %v2835
    %v2837 = vpop.xlane.xlu0 %2836
    %v2838 = vsel %vm2612, %v2764, 0.0
    %2839 = vadd.xlane.f32.xlu0 %v2838
    %v2840 = vpop.xlane.xlu0 %2839
    %v2841 = vsel %vm2612, %v2766, 0.0
    %2842 = vadd.xlane.f32.xlu0 %v2841
    %v2843 = vpop.xlane.xlu0 %2842
    %v2844 = vsel %vm2612, %v2768, 0.0
    %2845 = vadd.xlane.f32.xlu0 %v2844
    %v2846 = vpop.xlane.xlu0 %2845
    %v2847 = vsel %vm2612, %v2770, 0.0
    %2848 = vadd.xlane.f32.xlu0 %v2847
    %v2849 = vpop.xlane.xlu0 %2848
    %v2850 = vsel %vm2612, %v2772, 0.0
    %2851 = vadd.xlane.f32.xlu0 %v2850
    %v2852 = vpop.xlane.xlu0 %2851
    %v2853 = vsel %vm2612, %v2774, 0.0
    %2854 = vadd.xlane.f32.xlu0 %v2853
    %v2855 = vpop.xlane.xlu0 %2854
    %v2856 = vsel %vm2612, %v2776, 0.0
    %2857 = vadd.xlane.f32.xlu0 %v2856
    %v2858 = vpop.xlane.xlu0 %2857
    %v2859 = vsel %vm2612, %v2778, 0.0
    %2860 = vadd.xlane.f32.xlu0 %v2859
    %v2861 = vpop.xlane.xlu0 %2860
    %v2862 = vsel %vm2612, %v2780, 0.0
    %2863 = vadd.xlane.f32.xlu0 %v2862
    %v2864 = vpop.xlane.xlu0 %2863
    %v2865 = vsel %vm2612, %v2782, 0.0
    %2866 = vadd.xlane.f32.xlu0 %v2865
    %v2867 = vpop.xlane.xlu0 %2866
    %v2868 = vsel %vm2612, %v2784, 0.0
    %2869 = vadd.xlane.f32.xlu0 %v2868
    %v2870 = vpop.xlane.xlu0 %2869
    %v2871 = vsel %vm2612, %v2786, 0.0
    %2872 = vadd.xlane.f32.xlu0 %v2871
    %v2873 = vpop.xlane.xlu0 %2872
    %v2874 = vsel %vm2612, %v2788, 0.0
    %2875 = vadd.xlane.f32.xlu0 %v2874
    %v2876 = vpop.xlane.xlu0 %2875
    %v2877 = vsel %vm2612, %v2790, 0.0
    %2878 = vadd.xlane.f32.xlu0 %v2877
    %v2879 = vpop.xlane.xlu0 %2878
    %v2880 = vsel %vm2612, %v2792, 0.0
    %2881 = vadd.xlane.f32.xlu0 %v2880
    %v2882 = vpop.xlane.xlu0 %2881
    %v2883 = vsel %vm2612, %v2794, 0.0
    %2884 = vadd.xlane.f32.xlu0 %v2883
    %v2885 = vpop.xlane.xlu0 %2884
    %v2886 = vsel %vm2612, %v2796, 0.0
    %2887 = vadd.xlane.f32.xlu0 %v2886
    %v2888 = vpop.xlane.xlu0 %2887
    %v2889 = vsel %vm2612, %v2798, 0.0
    %2890 = vadd.xlane.f32.xlu0 %v2889
    %v2891 = vpop.xlane.xlu0 %2890
    %v2892 = vsel %vm2612, %v2800, 0.0
    %2893 = vadd.xlane.f32.xlu0 %v2892
    %v2894 = vpop.xlane.xlu0 %2893
    %v2895 = vsel %vm2612, %v2802, 0.0
    %2896 = vadd.xlane.f32.xlu0 %v2895
    %v2897 = vpop.xlane.xlu0 %2896
    %v2898 = vsel %vm2612, %v2804, 0.0
    %2899 = vadd.xlane.f32.xlu0 %v2898
    %v2900 = vpop.xlane.xlu0 %2899
    %v2901 = vrcp.pop %v2807
    %v2902 = vmul.f32 %v2742, %v2901
    %v2903 = vrcp.pop %v2810
    %v2904 = vmul.f32 %v2744, %v2903
    %v2905 = vrcp.pop %v2813
    %v2906 = vmul.f32 %v2746, %v2905
    %v2907 = vrcp.pop %v2816
    %v2908 = vmul.f32 %v2748, %v2907
    %v2909 = vrcp.pop %v2819
    %v2910 = vmul.f32 %v2750, %v2909
    %v2911 = vrcp.pop %v2822
    %v2912 = vmul.f32 %v2752, %v2911
    %v2913 = vrcp.pop %v2825
    %v2914 = vmul.f32 %v2754, %v2913
    %v2915 = vrcp.pop %v2828
    %v2916 = vmul.f32 %v2756, %v2915
    %v2917 = vrcp.pop %v2831
    %v2918 = vmul.f32 %v2758, %v2917
    %v2919 = vrcp.pop %v2834
    %v2920 = vmul.f32 %v2760, %v2919
    %v2921 = vrcp.pop %v2837
    %v2922 = vmul.f32 %v2762, %v2921
    %v2923 = vrcp.pop %v2840
    %v2924 = vmul.f32 %v2764, %v2923
    %v2925 = vrcp.pop %v2843
    %v2926 = vmul.f32 %v2766, %v2925
    %v2927 = vrcp.pop %v2846
    %v2928 = vmul.f32 %v2768, %v2927
    %v2929 = vrcp.pop %v2849
    %v2930 = vmul.f32 %v2770, %v2929
    %v2931 = vrcp.pop %v2852
    %v2932 = vmul.f32 %v2772, %v2931
    %v2933 = vrcp.pop %v2855
    %v2934 = vmul.f32 %v2774, %v2933
    %v2935 = vrcp.pop %v2858
    %v2936 = vmul.f32 %v2776, %v2935
    %v2937 = vrcp.pop %v2861
    %v2938 = vmul.f32 %v2778, %v2937
    %v2939 = vrcp.pop %v2864
    %v2940 = vmul.f32 %v2780, %v2939
    %v2941 = vrcp.pop %v2867
    %v2942 = vmul.f32 %v2782, %v2941
    %v2943 = vrcp.pop %v2870
    %v2944 = vmul.f32 %v2784, %v2943
    %v2945 = vrcp.pop %v2873
    %v2946 = vmul.f32 %v2786, %v2945
    %v2947 = vrcp.pop %v2876
    %v2948 = vmul.f32 %v2788, %v2947
    %v2949 = vrcp.pop %v2879
    %v2950 = vmul.f32 %v2790, %v2949
    %v2951 = vrcp.pop %v2882
    %v2952 = vmul.f32 %v2792, %v2951
    %v2953 = vrcp.pop %v2885
    %v2954 = vmul.f32 %v2794, %v2953
    %v2955 = vrcp.pop %v2888
    %v2956 = vmul.f32 %v2796, %v2955
    %v2957 = vrcp.pop %v2891
    %v2958 = vmul.f32 %v2798, %v2957
    %v2959 = vrcp.pop %v2894
    %v2960 = vmul.f32 %v2800, %v2959
    %v2961 = vrcp.pop %v2897
    %v2962 = vmul.f32 %v2802, %v2961
    %v2963 = vrcp.pop %v2900
    %v2964 = vmul.f32 %v2804, %v2963
    %2965 = vxpose.xlu0.b32.start [1/16] %v2902, 128
    %2966 = vxpose.xlu0.b32.cont [2/16] %v2904, 128
    %2967 = vxpose.xlu0.b32.cont [3/16] %v2906, 128
    %2968 = vxpose.xlu0.b32.cont [4/16] %v2908, 128
    %2969 = vxpose.xlu0.b32.cont [5/16] %v2910, 128
    %2970 = vxpose.xlu0.b32.cont [6/16] %v2912, 128
    %2971 = vxpose.xlu0.b32.cont [7/16] %v2914, 128
    %2972 = vxpose.xlu0.b32.cont [8/16] %v2916, 128
    %2973 = vxpose.xlu0.b32.cont [9/16] %v2918, 128
    %2974 = vxpose.xlu0.b32.cont [10/16] %v2920, 128
    %2975 = vxpose.xlu0.b32.cont [11/16] %v2922, 128
    %2976 = vxpose.xlu0.b32.cont [12/16] %v2924, 128
    %2977 = vxpose.xlu0.b32.cont [13/16] %v2926, 128
    %2978 = vxpose.xlu0.b32.cont [14/16] %v2928, 128
    %2979 = vxpose.xlu0.b32.cont [15/16] %v2930, 128
    %2980 = vxpose.xlu0.b32.end [16/16] %v2932, 128
    %v2981 = vpop.trf.xlu0
    %v2982 = vpop.trf.xlu0
    %v2983 = vpop.trf.xlu0
    %v2984 = vpop.trf.xlu0
    %v2985 = vpop.trf.xlu0
    %v2986 = vpop.trf.xlu0
    %v2987 = vpop.trf.xlu0
    %v2988 = vpop.trf.xlu0
    %v2989 = vpop.trf.xlu0
    %v2990 = vpop.trf.xlu0
    %v2991 = vpop.trf.xlu0
    %v2992 = vpop.trf.xlu0
    %v2993 = vpop.trf.xlu0
    %v2994 = vpop.trf.xlu0
    %v2995 = vpop.trf.xlu0
    %v2996 = vpop.trf.xlu0
    %2997 = vxpose.xlu0.b32.start [1/16] %v2934, 128
    %2998 = vxpose.xlu0.b32.cont [2/16] %v2936, 128
    %2999 = vxpose.xlu0.b32.cont [3/16] %v2938, 128
    %3000 = vxpose.xlu0.b32.cont [4/16] %v2940, 128
    %3001 = vxpose.xlu0.b32.cont [5/16] %v2942, 128
    %3002 = vxpose.xlu0.b32.cont [6/16] %v2944, 128
    %3003 = vxpose.xlu0.b32.cont [7/16] %v2946, 128
    %3004 = vxpose.xlu0.b32.cont [8/16] %v2948, 128
    %3005 = vxpose.xlu0.b32.cont [9/16] %v2950, 128
    %3006 = vxpose.xlu0.b32.cont [10/16] %v2952, 128
    %3007 = vxpose.xlu0.b32.cont [11/16] %v2954, 128
    %3008 = vxpose.xlu0.b32.cont [12/16] %v2956, 128
    %3009 = vxpose.xlu0.b32.cont [13/16] %v2958, 128
    %3010 = vxpose.xlu0.b32.cont [14/16] %v2960, 128
    %3011 = vxpose.xlu0.b32.cont [15/16] %v2962, 128
    %3012 = vxpose.xlu0.b32.end [16/16] %v2964, 128
    %v3013 = vpop.trf.xlu0
    %v3014 = vpop.trf.xlu0
    %v3015 = vpop.trf.xlu0
    %v3016 = vpop.trf.xlu0
    %v3017 = vpop.trf.xlu0
    %v3018 = vpop.trf.xlu0
    %v3019 = vpop.trf.xlu0
    %v3020 = vpop.trf.xlu0
    %v3021 = vpop.trf.xlu0
    %v3022 = vpop.trf.xlu0
    %v3023 = vpop.trf.xlu0
    %v3024 = vpop.trf.xlu0
    %v3025 = vpop.trf.xlu0
    %v3026 = vpop.trf.xlu0
    %v3027 = vpop.trf.xlu0
    %v3028 = vpop.trf.xlu0
    %3029 = vst [vmem:[#allocation6] sm:$0xff] %v2981
    %3030 = vst [vmem:[#allocation6 + $0x8] sm:$0xff] %v2982
    %s3031 = scalar_lea.vmem [#allocation6], 24
    %3032 = vst [vmem:[%s3031] sm:$0xff] %v3013
    %3033 = vst [vmem:[%s3031 + $0x8] sm:$0xff] %v3014
    %3034 = vst [vmem:[#allocation6 + $0x10] sm:$0xff] 0.0
    %3035 = vst [vmem:[#allocation6 + $0x28] sm:$0xff] 0.0
    %v3036 = vld [vmem:[#allocation2 + $0x184] sm:$0xf]
    %v3037 = vld [vmem:[#allocation2 + $0x188] sm:$0xf]
    %v3038 = vld [vmem:[#allocation2 + $0x18c] sm:$0xf]
    %v3039 = vld [vmem:[#allocation2 + $0x190] sm:$0xf]
    %v3040 = vld [vmem:[#allocation2 + $0x194] sm:$0xf]
    %v3041 = vld [vmem:[#allocation2 + $0x198] sm:$0xf]
    %v3042 = vld [vmem:[#allocation2 + $0x19c] sm:$0xf]
    %v3043 = vld [vmem:[#allocation2 + $0x1a0] sm:$0xf]
    %v3044 = vld [vmem:[#allocation2 + $0x1a4] sm:$0xf]
    %v3045 = vld [vmem:[#allocation2 + $0x1a8] sm:$0xf]
    %v3046 = vld [vmem:[#allocation2 + $0x1ac] sm:$0xf]
    %v3047 = vld [vmem:[#allocation2 + $0x1b0] sm:$0xf]
    %v3048 = vld [vmem:[#allocation2 + $0x1b4] sm:$0xf]
    %v3049 = vld [vmem:[#allocation2 + $0x1b8] sm:$0xf]
    %v3050 = vld [vmem:[#allocation2 + $0x1bc] sm:$0xf]
    %v3051 = vld [vmem:[#allocation2 + $0x1c0] sm:$0xf]
    %v3052 = vunpack.c.l.bf16 %v3036
    %v3053 = vunpack.c.l.bf16 %v3037
    %v3054 = vunpack.c.l.bf16 %v3038
    %v3055 = vunpack.c.l.bf16 %v3039
    %v3056 = vunpack.c.l.bf16 %v3040
    %v3057 = vunpack.c.l.bf16 %v3041
    %v3058 = vunpack.c.l.bf16 %v3042
    %v3059 = vunpack.c.l.bf16 %v3043
    %v3060 = vunpack.c.l.bf16 %v3044
    %v3061 = vunpack.c.l.bf16 %v3045
    %v3062 = vunpack.c.l.bf16 %v3046
    %v3063 = vunpack.c.l.bf16 %v3047
    %v3064 = vunpack.c.l.bf16 %v3048
    %v3065 = vunpack.c.l.bf16 %v3049
    %v3066 = vunpack.c.l.bf16 %v3050
    %v3067 = vunpack.c.l.bf16 %v3051
    %v3068 = vld [vmem:[#allocation2 + $0x1c4] sm:$0xf]
    %v3069 = vld [vmem:[#allocation2 + $0x1c8] sm:$0xf]
    %v3070 = vld [vmem:[#allocation2 + $0x1cc] sm:$0xf]
    %v3071 = vld [vmem:[#allocation2 + $0x1d0] sm:$0xf]
    %v3072 = vld [vmem:[#allocation2 + $0x1d4] sm:$0xf]
    %v3073 = vld [vmem:[#allocation2 + $0x1d8] sm:$0xf]
    %v3074 = vld [vmem:[#allocation2 + $0x1dc] sm:$0xf]
    %v3075 = vld [vmem:[#allocation2 + $0x1e0] sm:$0xf]
    %v3076 = vld [vmem:[#allocation2 + $0x1e4] sm:$0xf]
    %v3077 = vld [vmem:[#allocation2 + $0x1e8] sm:$0xf]
    %v3078 = vld [vmem:[#allocation2 + $0x1ec] sm:$0xf]
    %v3079 = vld [vmem:[#allocation2 + $0x1f0] sm:$0xf]
    %v3080 = vld [vmem:[#allocation2 + $0x1f4] sm:$0xf]
    %v3081 = vld [vmem:[#allocation2 + $0x1f8] sm:$0xf]
    %v3082 = vld [vmem:[#allocation2 + $0x1fc] sm:$0xf]
    %v3083 = vld [vmem:[#allocation2 + $0x200] sm:$0xf]
    %v3084 = vunpack.c.l.bf16 %v3068
    %v3085 = vunpack.c.l.bf16 %v3069
    %v3086 = vunpack.c.l.bf16 %v3070
    %v3087 = vunpack.c.l.bf16 %v3071
    %v3088 = vunpack.c.l.bf16 %v3072
    %v3089 = vunpack.c.l.bf16 %v3073
    %v3090 = vunpack.c.l.bf16 %v3074
    %v3091 = vunpack.c.l.bf16 %v3075
    %v3092 = vunpack.c.l.bf16 %v3076
    %v3093 = vunpack.c.l.bf16 %v3077
    %v3094 = vunpack.c.l.bf16 %v3078
    %v3095 = vunpack.c.l.bf16 %v3079
    %v3096 = vunpack.c.l.bf16 %v3080
    %v3097 = vunpack.c.l.bf16 %v3081
    %v3098 = vunpack.c.l.bf16 %v3082
    %v3099 = vunpack.c.l.bf16 %v3083
    %3100 = vmatprep.subr.mxu0 0.0
    %3101 = vmatpush1.msra.mxu0 %v3084
    %3102 = vmatprep.subr.mxu0 0.0
    %3103 = vmatpush1.msra.mxu0 %v3085
    %3104 = vmatprep.subr.mxu0 0.0
    %3105 = vmatpush1.msra.mxu0 %v3086
    %3106 = vmatprep.subr.mxu0 0.0
    %3107 = vmatpush1.msra.mxu0 %v3087
    %3108 = vmatprep.subr.mxu0 0.0
    %3109 = vmatpush1.msra.mxu0 %v3088
    %3110 = vmatprep.subr.mxu0 0.0
    %3111 = vmatpush1.msra.mxu0 %v3089
    %3112 = vmatprep.subr.mxu0 0.0
    %3113 = vmatpush1.msra.mxu0 %v3090
    %3114 = vmatprep.subr.mxu0 0.0
    %3115 = vmatpush1.msra.mxu0 %v3091
    %3116 = vmatprep.subr.mxu0 0.0
    %3117 = vmatpush1.msra.mxu0 %v3092
    %3118 = vmatprep.subr.mxu0 0.0
    %3119 = vmatpush1.msra.mxu0 %v3093
    %3120 = vmatprep.subr.mxu0 0.0
    %3121 = vmatpush1.msra.mxu0 %v3094
    %3122 = vmatprep.subr.mxu0 0.0
    %3123 = vmatpush1.msra.mxu0 %v3095
    %3124 = vmatprep.subr.mxu0 0.0
    %3125 = vmatpush1.msra.mxu0 %v3096
    %3126 = vmatprep.subr.mxu0 0.0
    %3127 = vmatpush1.msra.mxu0 %v3097
    %3128 = vmatprep.subr.mxu0 0.0
    %3129 = vmatpush1.msra.mxu0 %v3098
    %3130 = vmatprep.subr.mxu0 0.0
    %3131 = vmatpush1.msra.mxu0 %v3099
    %3132 = vmatprep.subr.mxu0 0.0
    %3133 = vmatpush1.msra.mxu0 0.0
    %3134 = vmatprep.subr.mxu0 0.0
    %3135 = vmatpush1.msra.mxu0 0.0
    %3136 = vmatprep.subr.mxu0 0.0
    %3137 = vmatpush1.msra.mxu0 0.0
    %3138 = vmatprep.subr.mxu0 0.0
    %3139 = vmatpush1.msra.mxu0 0.0
    %3140 = vmatprep.subr.mxu0 0.0
    %3141 = vmatpush1.msra.mxu0 0.0
    %3142 = vmatprep.subr.mxu0 0.0
    %3143 = vmatpush1.msra.mxu0 0.0
    %3144 = vmatprep.subr.mxu0 0.0
    %3145 = vmatpush1.msra.mxu0 0.0
    %3146 = vmatprep.subr.mxu0 0.0
    %3147 = vmatpush1.msra.mxu0 0.0
    %3148 = vmatprep.subr.mxu0 0.0
    %3149 = vmatpush1.msra.mxu0 0.0
    %3150 = vmatprep.subr.mxu0 0.0
    %3151 = vmatpush1.msra.mxu0 0.0
    %3152 = vmatprep.subr.mxu0 0.0
    %3153 = vmatpush1.msra.mxu0 0.0
    %3154 = vmatprep.subr.mxu0 0.0
    %3155 = vmatpush1.msra.mxu0 0.0
    %3156 = vmatprep.subr.mxu0 0.0
    %3157 = vmatpush1.msra.mxu0 0.0
    %3158 = vmatprep.subr.mxu0 0.0
    %3159 = vmatpush1.msra.mxu0 0.0
    %3160 = vmatprep.subr.mxu0 0.0
    %3161 = vmatpush1.msra.mxu0 0.0
    %3162 = vmatprep.subr.mxu0 0.0
    %3163 = vmatpush1.msra.mxu0 0.0
    %3164 = vmatprep.mubr.f32.mxu0 0.0
    %3165 = vmatmul.mubr.f32.gmra.mrb[0].mxu0 %v1709
    %v3166 = vpop.f32.mrb[0].mxu0
    %v3167 = vadd.f32 0.0, %v3166
    %v3168 = vpop.f32.mrb[0].mxu0
    %3169 = vdwg.mxu0
    %3170 = vmatprep.subr.mxu0 0.0
    %3171 = vmatpush1.msra.mxu0 %v3052
    %3172 = vmatprep.subr.mxu0 0.0
    %3173 = vmatpush1.msra.mxu0 %v3053
    %3174 = vmatprep.subr.mxu0 0.0
    %3175 = vmatpush1.msra.mxu0 %v3054
    %3176 = vmatprep.subr.mxu0 0.0
    %3177 = vmatpush1.msra.mxu0 %v3055
    %3178 = vmatprep.subr.mxu0 0.0
    %3179 = vmatpush1.msra.mxu0 %v3056
    %3180 = vmatprep.subr.mxu0 0.0
    %3181 = vmatpush1.msra.mxu0 %v3057
    %3182 = vmatprep.subr.mxu0 0.0
    %3183 = vmatpush1.msra.mxu0 %v3058
    %3184 = vmatprep.subr.mxu0 0.0
    %3185 = vmatpush1.msra.mxu0 %v3059
    %3186 = vmatprep.subr.mxu0 0.0
    %3187 = vmatpush1.msra.mxu0 %v3060
    %3188 = vmatprep.subr.mxu0 0.0
    %3189 = vmatpush1.msra.mxu0 %v3061
    %3190 = vmatprep.subr.mxu0 0.0
    %3191 = vmatpush1.msra.mxu0 %v3062
    %3192 = vmatprep.subr.mxu0 0.0
    %3193 = vmatpush1.msra.mxu0 %v3063
    %3194 = vmatprep.subr.mxu0 0.0
    %3195 = vmatpush1.msra.mxu0 %v3064
    %3196 = vmatprep.subr.mxu0 0.0
    %3197 = vmatpush1.msra.mxu0 %v3065
    %3198 = vmatprep.subr.mxu0 0.0
    %3199 = vmatpush1.msra.mxu0 %v3066
    %3200 = vmatprep.subr.mxu0 0.0
    %3201 = vmatpush1.msra.mxu0 %v3067
    %3202 = vmatprep.subr.mxu0 0.0
    %3203 = vmatpush1.msra.mxu0 0.0
    %3204 = vmatprep.subr.mxu0 0.0
    %3205 = vmatpush1.msra.mxu0 0.0
    %3206 = vmatprep.subr.mxu0 0.0
    %3207 = vmatpush1.msra.mxu0 0.0
    %3208 = vmatprep.subr.mxu0 0.0
    %3209 = vmatpush1.msra.mxu0 0.0
    %3210 = vmatprep.subr.mxu0 0.0
    %3211 = vmatpush1.msra.mxu0 0.0
    %3212 = vmatprep.subr.mxu0 0.0
    %3213 = vmatpush1.msra.mxu0 0.0
    %3214 = vmatprep.subr.mxu0 0.0
    %3215 = vmatpush1.msra.mxu0 0.0
    %3216 = vmatprep.subr.mxu0 0.0
    %3217 = vmatpush1.msra.mxu0 0.0
    %3218 = vmatprep.subr.mxu0 0.0
    %3219 = vmatpush1.msra.mxu0 0.0
    %3220 = vmatprep.subr.mxu0 0.0
    %3221 = vmatpush1.msra.mxu0 0.0
    %3222 = vmatprep.subr.mxu0 0.0
    %3223 = vmatpush1.msra.mxu0 0.0
    %3224 = vmatprep.subr.mxu0 0.0
    %3225 = vmatpush1.msra.mxu0 0.0
    %3226 = vmatprep.subr.mxu0 0.0
    %3227 = vmatpush1.msra.mxu0 0.0
    %3228 = vmatprep.subr.mxu0 0.0
    %3229 = vmatpush1.msra.mxu0 0.0
    %3230 = vmatprep.subr.mxu0 0.0
    %3231 = vmatpush1.msra.mxu0 0.0
    %3232 = vmatprep.subr.mxu0 0.0
    %3233 = vmatpush1.msra.mxu0 0.0
    %3234 = vmatprep.mubr.f32.mxu0 0.0
    %3235 = vmatmul.mubr.f32.gmra.mrb[0].mxu0 %v1666
    %v3236 = vpop.f32.mrb[0].mxu0
    %v3237 = vadd.f32 %v3167, %v3236
    %v3238 = vpop.f32.mrb[0].mxu0
    %3239 = vdwg.mxu0
    %v3240 = vld [vmem:[%s2 + $0x6] ss:$0 sm:$0xff]
    %v3241 = vadd.f32 %v3237, %v3240
    %v3242 = vmax.f32 %v3241, 0.0
    %v3243 = vld [vmem:[#allocation2 + $0x204] sm:$0xf]
    %v3244 = vld [vmem:[#allocation2 + $0x208] sm:$0xf]
    %v3245 = vld [vmem:[#allocation2 + $0x20c] sm:$0xf]
    %v3246 = vld [vmem:[#allocation2 + $0x210] sm:$0xf]
    %v3247 = vld [vmem:[#allocation2 + $0x214] sm:$0xf]
    %v3248 = vld [vmem:[#allocation2 + $0x218] sm:$0xf]
    %v3249 = vld [vmem:[#allocation2 + $0x21c] sm:$0xf]
    %v3250 = vld [vmem:[#allocation2 + $0x220] sm:$0xf]
    %v3251 = vld [vmem:[#allocation2 + $0x224] sm:$0xf]
    %v3252 = vld [vmem:[#allocation2 + $0x228] sm:$0xf]
    %v3253 = vld [vmem:[#allocation2 + $0x22c] sm:$0xf]
    %v3254 = vld [vmem:[#allocation2 + $0x230] sm:$0xf]
    %v3255 = vld [vmem:[#allocation2 + $0x234] sm:$0xf]
    %v3256 = vld [vmem:[#allocation2 + $0x238] sm:$0xf]
    %v3257 = vld [vmem:[#allocation2 + $0x23c] sm:$0xf]
    %v3258 = vld [vmem:[#allocation2 + $0x240] sm:$0xf]
    %v3259 = vunpack.c.l.bf16 %v3243
    %v3260 = vunpack.c.l.bf16 %v3244
    %v3261 = vunpack.c.l.bf16 %v3245
    %v3262 = vunpack.c.l.bf16 %v3246
    %v3263 = vunpack.c.l.bf16 %v3247
    %v3264 = vunpack.c.l.bf16 %v3248
    %v3265 = vunpack.c.l.bf16 %v3249
    %v3266 = vunpack.c.l.bf16 %v3250
    %v3267 = vunpack.c.l.bf16 %v3251
    %v3268 = vunpack.c.l.bf16 %v3252
    %v3269 = vunpack.c.l.bf16 %v3253
    %v3270 = vunpack.c.l.bf16 %v3254
    %v3271 = vunpack.c.l.bf16 %v3255
    %v3272 = vunpack.c.l.bf16 %v3256
    %v3273 = vunpack.c.l.bf16 %v3257
    %v3274 = vunpack.c.l.bf16 %v3258
    %v3275 = vld [vmem:[%s2 + $0x7] ss:$0 sm:$0xff]
    %3276 = vmatprep.subr.mxu0 0.0
    %3277 = vmatpush1.msra.mxu0 %v3259
    %3278 = vmatprep.subr.mxu0 0.0
    %3279 = vmatpush1.msra.mxu0 %v3260
    %3280 = vmatprep.subr.mxu0 0.0
    %3281 = vmatpush1.msra.mxu0 %v3261
    %3282 = vmatprep.subr.mxu0 0.0
    %3283 = vmatpush1.msra.mxu0 %v3262
    %3284 = vmatprep.subr.mxu0 0.0
    %3285 = vmatpush1.msra.mxu0 %v3263
    %3286 = vmatprep.subr.mxu0 0.0
    %3287 = vmatpush1.msra.mxu0 %v3264
    %3288 = vmatprep.subr.mxu0 0.0
    %3289 = vmatpush1.msra.mxu0 %v3265
    %3290 = vmatprep.subr.mxu0 0.0
    %3291 = vmatpush1.msra.mxu0 %v3266
    %3292 = vmatprep.subr.mxu0 0.0
    %3293 = vmatpush1.msra.mxu0 %v3267
    %3294 = vmatprep.subr.mxu0 0.0
    %3295 = vmatpush1.msra.mxu0 %v3268
    %3296 = vmatprep.subr.mxu0 0.0
    %3297 = vmatpush1.msra.mxu0 %v3269
    %3298 = vmatprep.subr.mxu0 0.0
    %3299 = vmatpush1.msra.mxu0 %v3270
    %3300 = vmatprep.subr.mxu0 0.0
    %3301 = vmatpush1.msra.mxu0 %v3271
    %3302 = vmatprep.subr.mxu0 0.0
    %3303 = vmatpush1.msra.mxu0 %v3272
    %3304 = vmatprep.subr.mxu0 0.0
    %3305 = vmatpush1.msra.mxu0 %v3273
    %3306 = vmatprep.subr.mxu0 0.0
    %3307 = vmatpush1.msra.mxu0 %v3274
    %3308 = vmatprep.subr.mxu0 0.0
    %3309 = vmatpush1.msra.mxu0 0.0
    %3310 = vmatprep.subr.mxu0 0.0
    %3311 = vmatpush1.msra.mxu0 0.0
    %3312 = vmatprep.subr.mxu0 0.0
    %3313 = vmatpush1.msra.mxu0 0.0
    %3314 = vmatprep.subr.mxu0 0.0
    %3315 = vmatpush1.msra.mxu0 0.0
    %3316 = vmatprep.subr.mxu0 0.0
    %3317 = vmatpush1.msra.mxu0 0.0
    %3318 = vmatprep.subr.mxu0 0.0
    %3319 = vmatpush1.msra.mxu0 0.0
    %3320 = vmatprep.subr.mxu0 0.0
    %3321 = vmatpush1.msra.mxu0 0.0
    %3322 = vmatprep.subr.mxu0 0.0
    %3323 = vmatpush1.msra.mxu0 0.0
    %3324 = vmatprep.subr.mxu0 0.0
    %3325 = vmatpush1.msra.mxu0 0.0
    %3326 = vmatprep.subr.mxu0 0.0
    %3327 = vmatpush1.msra.mxu0 0.0
    %3328 = vmatprep.subr.mxu0 0.0
    %3329 = vmatpush1.msra.mxu0 0.0
    %3330 = vmatprep.subr.mxu0 0.0
    %3331 = vmatpush1.msra.mxu0 0.0
    %3332 = vmatprep.subr.mxu0 0.0
    %3333 = vmatpush1.msra.mxu0 0.0
    %3334 = vmatprep.subr.mxu0 0.0
    %3335 = vmatpush1.msra.mxu0 0.0
    %3336 = vmatprep.subr.mxu0 0.0
    %3337 = vmatpush1.msra.mxu0 0.0
    %3338 = vmatprep.subr.mxu0 0.0
    %3339 = vmatpush1.msra.mxu0 0.0
    %3340 = vmatprep.mubr.f32.mxu0 0.0
    %3341 = vmatmul.mubr.f32.gmra.mrb[0].mxu0 %v3242
    %v3342 = vpop.f32.mrb[0].mxu0
    %v3343 = vadd.f32 %v3275, %v3342
    %v3344 = vpop.f32.mrb[0].mxu0
    %3345 = vdwg.mxu0
    %v3346 = vmax.f32 %v3343, 0.0
    %v3347 = vld [vmem:[#allocation2 + $0x244] sm:$0xf]
    %v3348 = vld [vmem:[#allocation2 + $0x248] sm:$0xf]
    %v3349 = vld [vmem:[#allocation2 + $0x24c] sm:$0xf]
    %v3350 = vld [vmem:[#allocation2 + $0x250] sm:$0xf]
    %v3351 = vld [vmem:[#allocation2 + $0x254] sm:$0xf]
    %v3352 = vld [vmem:[#allocation2 + $0x258] sm:$0xf]
    %v3353 = vld [vmem:[#allocation2 + $0x25c] sm:$0xf]
    %v3354 = vld [vmem:[#allocation2 + $0x260] sm:$0xf]
    %v3355 = vunpack.c.l.bf16 %v3347
    %v3356 = vunpack.c.l.bf16 %v3348
    %v3357 = vunpack.c.l.bf16 %v3349
    %v3358 = vunpack.c.l.bf16 %v3350
    %v3359 = vunpack.c.l.bf16 %v3351
    %v3360 = vunpack.c.l.bf16 %v3352
    %v3361 = vunpack.c.l.bf16 %v3353
    %v3362 = vunpack.c.l.bf16 %v3354
    %v3363 = vld [vmem:[%s2 + $0x10] ss:$0 sm:$0xff]
    %vm3364 = vcmask 523264
    %v3366 = vsel %vm3364, %v3346, 0
    %3368 = vmatprep.subr.mxu0 0.0
    %3369 = vmatpush1.msra.mxu0 %v3355
    %3370 = vmatprep.subr.mxu0 0.0
    %3371 = vmatpush1.msra.mxu0 %v3356
    %3372 = vmatprep.subr.mxu0 0.0
    %3373 = vmatpush1.msra.mxu0 %v3357
    %3374 = vmatprep.subr.mxu0 0.0
    %3375 = vmatpush1.msra.mxu0 %v3358
    %3376 = vmatprep.subr.mxu0 0.0
    %3377 = vmatpush1.msra.mxu0 %v3359
    %3378 = vmatprep.subr.mxu0 0.0
    %3379 = vmatpush1.msra.mxu0 %v3360
    %3380 = vmatprep.subr.mxu0 0.0
    %3381 = vmatpush1.msra.mxu0 %v3361
    %3382 = vmatprep.subr.mxu0 0.0
    %3383 = vmatpush1.msra.mxu0 %v3362
    %3384 = vmatprep.subr.mxu0 0.0
    %3385 = vmatpush1.msra.mxu0 0.0
    %3386 = vmatprep.subr.mxu0 0.0
    %3387 = vmatpush1.msra.mxu0 0.0
    %3388 = vmatprep.subr.mxu0 0.0
    %3389 = vmatpush1.msra.mxu0 0.0
    %3390 = vmatprep.subr.mxu0 0.0
    %3391 = vmatpush1.msra.mxu0 0.0
    %3392 = vmatprep.subr.mxu0 0.0
    %3393 = vmatpush1.msra.mxu0 0.0
    %3394 = vmatprep.subr.mxu0 0.0
    %3395 = vmatpush1.msra.mxu0 0.0
    %3396 = vmatprep.subr.mxu0 0.0
    %3397 = vmatpush1.msra.mxu0 0.0
    %3398 = vmatprep.subr.mxu0 0.0
    %3399 = vmatpush1.msra.mxu0 0.0
    %3400 = vmatprep.subr.mxu0 0.0
    %3401 = vmatpush1.msra.mxu0 0.0
    %3402 = vmatprep.subr.mxu0 0.0
    %3403 = vmatpush1.msra.mxu0 0.0
    %3404 = vmatprep.subr.mxu0 0.0
    %3405 = vmatpush1.msra.mxu0 0.0
    %3406 = vmatprep.subr.mxu0 0.0
    %3407 = vmatpush1.msra.mxu0 0.0
    %3408 = vmatprep.subr.mxu0 0.0
    %3409 = vmatpush1.msra.mxu0 0.0
    %3410 = vmatprep.subr.mxu0 0.0
    %3411 = vmatpush1.msra.mxu0 0.0
    %3412 = vmatprep.subr.mxu0 0.0
    %3413 = vmatpush1.msra.mxu0 0.0
    %3414 = vmatprep.subr.mxu0 0.0
    %3415 = vmatpush1.msra.mxu0 0.0
    %3416 = vmatprep.subr.mxu0 0.0
    %3417 = vmatpush1.msra.mxu0 0.0
    %3418 = vmatprep.subr.mxu0 0.0
    %3419 = vmatpush1.msra.mxu0 0.0
    %3420 = vmatprep.subr.mxu0 0.0
    %3421 = vmatpush1.msra.mxu0 0.0
    %3422 = vmatprep.subr.mxu0 0.0
    %3423 = vmatpush1.msra.mxu0 0.0
    %3424 = vmatprep.subr.mxu0 0.0
    %3425 = vmatpush1.msra.mxu0 0.0
    %3426 = vmatprep.subr.mxu0 0.0
    %3427 = vmatpush1.msra.mxu0 0.0
    %3428 = vmatprep.subr.mxu0 0.0
    %3429 = vmatpush1.msra.mxu0 0.0
    %3430 = vmatprep.subr.mxu0 0.0
    %3431 = vmatpush1.msra.mxu0 0.0
    %3432 = vmatprep.mubr.f32.mxu0 0.0
    %3433 = vmatmul.mubr.f32.gmra.mrb[0].mxu0 %v3366
    %v3434 = vpop.f32.mrb[0].mxu0
    %v3435 = vadd.f32 %v3363, %v3434
    %v3436 = vpop.f32.mrb[0].mxu0
    %3437 = vdwg.mxu0
    %v3438 = vmax.f32 %v3435, 0.0
    %v3439 = vld [vmem:[#allocation2 + $0x264] sm:$0xf]
    %v3440 = vld [vmem:[#allocation2 + $0x268] sm:$0xf]
    %v3441 = vld [vmem:[#allocation2 + $0x26c] sm:$0xf]
    %v3442 = vld [vmem:[#allocation2 + $0x270] sm:$0xf]
    %v3443 = vunpack.c.l.bf16 %v3439
    %v3444 = vunpack.c.l.bf16 %v3440
    %v3445 = vunpack.c.l.bf16 %v3441
    %v3446 = vunpack.c.l.bf16 %v3442
    %v3447 = vld [vmem:[%s2 + $0x11] ss:$0 sm:$0xff]
    %vm3448 = vcmask 261120
    %v3450 = vsel %vm3448, %v3438, 0
    %3452 = vmatprep.subr.mxu0 0.0
    %3453 = vmatpush1.msra.mxu0 %v3443
    %3454 = vmatprep.subr.mxu0 0.0
    %3455 = vmatpush1.msra.mxu0 %v3444
    %3456 = vmatprep.subr.mxu0 0.0
    %3457 = vmatpush1.msra.mxu0 %v3445
    %3458 = vmatprep.subr.mxu0 0.0
    %3459 = vmatpush1.msra.mxu0 %v3446
    %3460 = vmatprep.subr.mxu0 0.0
    %3461 = vmatpush1.msra.mxu0 0.0
    %3462 = vmatprep.subr.mxu0 0.0
    %3463 = vmatpush1.msra.mxu0 0.0
    %3464 = vmatprep.subr.mxu0 0.0
    %3465 = vmatpush1.msra.mxu0 0.0
    %3466 = vmatprep.subr.mxu0 0.0
    %3467 = vmatpush1.msra.mxu0 0.0
    %3468 = vmatprep.subr.mxu0 0.0
    %3469 = vmatpush1.msra.mxu0 0.0
    %3470 = vmatprep.subr.mxu0 0.0
    %3471 = vmatpush1.msra.mxu0 0.0
    %3472 = vmatprep.subr.mxu0 0.0
    %3473 = vmatpush1.msra.mxu0 0.0
    %3474 = vmatprep.subr.mxu0 0.0
    %3475 = vmatpush1.msra.mxu0 0.0
    %3476 = vmatprep.subr.mxu0 0.0
    %3477 = vmatpush1.msra.mxu0 0.0
    %3478 = vmatprep.subr.mxu0 0.0
    %3479 = vmatpush1.msra.mxu0 0.0
    %3480 = vmatprep.subr.mxu0 0.0
    %3481 = vmatpush1.msra.mxu0 0.0
    %3482 = vmatprep.subr.mxu0 0.0
    %3483 = vmatpush1.msra.mxu0 0.0
    %3484 = vmatprep.subr.mxu0 0.0
    %3485 = vmatpush1.msra.mxu0 0.0
    %3486 = vmatprep.subr.mxu0 0.0
    %3487 = vmatpush1.msra.mxu0 0.0
    %3488 = vmatprep.subr.mxu0 0.0
    %3489 = vmatpush1.msra.mxu0 0.0
    %3490 = vmatprep.subr.mxu0 0.0
    %3491 = vmatpush1.msra.mxu0 0.0
    %3492 = vmatprep.subr.mxu0 0.0
    %3493 = vmatpush1.msra.mxu0 0.0
    %3494 = vmatprep.subr.mxu0 0.0
    %3495 = vmatpush1.msra.mxu0 0.0
    %3496 = vmatprep.subr.mxu0 0.0
    %3497 = vmatpush1.msra.mxu0 0.0
    %3498 = vmatprep.subr.mxu0 0.0
    %3499 = vmatpush1.msra.mxu0 0.0
    %3500 = vmatprep.subr.mxu0 0.0
    %3501 = vmatpush1.msra.mxu0 0.0
    %3502 = vmatprep.subr.mxu0 0.0
    %3503 = vmatpush1.msra.mxu0 0.0
    %3504 = vmatprep.subr.mxu0 0.0
    %3505 = vmatpush1.msra.mxu0 0.0
    %3506 = vmatprep.subr.mxu0 0.0
    %3507 = vmatpush1.msra.mxu0 0.0
    %3508 = vmatprep.subr.mxu0 0.0
    %3509 = vmatpush1.msra.mxu0 0.0
    %3510 = vmatprep.subr.mxu0 0.0
    %3511 = vmatpush1.msra.mxu0 0.0
    %3512 = vmatprep.subr.mxu0 0.0
    %3513 = vmatpush1.msra.mxu0 0.0
    %3514 = vmatprep.subr.mxu0 0.0
    %3515 = vmatpush1.msra.mxu0 0.0
    %3516 = vmatprep.mubr.f32.mxu0 0.0
    %3517 = vmatmul.mubr.f32.gmra.mrb[0].mxu0 %v3450
    %v3518 = vpop.f32.mrb[0].mxu0
    %v3519 = vadd.f32 %v3447, %v3518
    %v3520 = vpop.f32.mrb[0].mxu0
    %3521 = vdwg.mxu0
    %v3522 = vmax.f32 %v3519, -20.0
    %v3523 = vmin.f32 %v3522, 20.0
    %vm3524 = vcmask 123904
    %3525 = vst.msk [vmem:[%s5] sm:$0x3] %vm3524, %v3523
    %vm3526 = vcmask 189568
    %3527 = vst.msk [vmem:[%s5] sm:$0x3] %vm3526, 0.0
    // Predicated region
    $region18: #{primitive_fitting_net_forward.1} parent=1 // pred_check
      _
    $region19: #{primitive_fitting_net_forward.1} parent=1 // pred_check_branch
      %3529 = sbr.rel (0) target = $region21
    $region20: #{primitive_fitting_net_forward.1} parent=1 // pred_region
      %s3531 = ssub.s32 4096, 4096
      %3532 = vsyncadd [#allocation4], %s3531
      %s3533 = sshll.u32 [#allocation5], 4
      %s3534 = int_to_ptr.vmem [resolvable:$true] %s3533
      %3539 = dma.vmem_to_hbm [thread:$0]  %s3534, 4096, %s3, [#allocation4], 128, 128, 8
    $region21: #{primitive_fitting_net_forward.1} parent=1 // pred_fallthru
      _
    // Predicated region
    $region22: #{primitive_fitting_net_forward.1} parent=1 // pred_check
      _
    $region23: #{primitive_fitting_net_forward.1} parent=1 // pred_check_branch
      %3541 = sbr.rel (0) target = $region25
    $region24: #{primitive_fitting_net_forward.1} parent=1 // pred_region
      %s3543 = ssub.s32 768, 768
      %3544 = vsyncadd [#allocation7], %s3543
      %s3545 = sshll.u32 [#allocation6], 4
      %s3546 = int_to_ptr.vmem [resolvable:$true] %s3545
      %3551 = dma.vmem_to_hbm [thread:$0]  %s3546, 768, %s4, [#allocation7], 128, 128, 8
    $region25: #{primitive_fitting_net_forward.1} parent=1 // pred_fallthru
      _
    // Predicated region
    $region26: #{primitive_fitting_net_forward.1} parent=1 // pred_check
      _
    $region27: #{primitive_fitting_net_forward.1} parent=1 // pred_check_branch
      %3553 = sbr.rel (0) target = $region29
    $region28: #{primitive_fitting_net_forward.1} parent=1 // pred_region
      _
    $region29: #{primitive_fitting_net_forward.1} parent=1 // pred_fallthru
      _
    // Predicated region
    $region30: #{primitive_fitting_net_forward.1} parent=1 // pred_check
      _
    $region31: #{primitive_fitting_net_forward.1} parent=1 // pred_check_branch
      %3555 = sbr.rel (0) target = $region33
    $region32: #{primitive_fitting_net_forward.1} parent=1 // pred_region
      %3556 = dma.done [#allocation4], 4096
    $region33: #{primitive_fitting_net_forward.1} parent=1 // pred_fallthru
      _
    // Predicated region
    $region34: #{primitive_fitting_net_forward.1} parent=1 // pred_check
      _
    $region35: #{primitive_fitting_net_forward.1} parent=1 // pred_check_branch
      %3558 = sbr.rel (0) target = $region37
    $region36: #{primitive_fitting_net_forward.1} parent=1 // pred_region
      %3559 = dma.done [#allocation7], 768
    $region37: #{primitive_fitting_net_forward.1} parent=1 // pred_fallthru
      _
    // Predicated region
    $region38: #{primitive_fitting_net_forward.1} parent=1 // pred_check
      _
    $region39: #{primitive_fitting_net_forward.1} parent=1 // pred_check_branch
      %3561 = sbr.rel (0) target = $region41
    $region40: #{primitive_fitting_net_forward.1} parent=1 // pred_region
      _
    $region41: #{primitive_fitting_net_forward.1} parent=1 // pred_fallthru
      _
    %3562 = vsyncpa [#allocation3], 1
    %3563 = vsyncpa [#allocation4], 1
    %3564 = vsyncpa [#allocation7], 1

</llo_original>
